<compile_context>
chip_gen: v6e
topology: v6e:2x2x1
jax: 0.10.0
libtpu: 0.0.40
codegen_flags: <defaults>
</compile_context>

<pallas_src>
import math
from functools import partial

import jax
import jax.numpy as jnp
from jax.experimental import pallas as pl
from jax.experimental.pallas import tpu as pltpu

LANE = 128


# ------------------------------------------------------------------ config ---
class Config:
    block_size = 16
    padded_vocab_size = 64
    n_layer = 2
    n_embd = 32
    n_head = 4
    n_query_groups = 4          # == n_head  -> q_per_kv = 1 (MHA)
    head_size = 8
    intermediate_size = 64
    rotary_percentage = 1.0
    rope_base = 10000
    condense_ratio = 1
    norm_eps = 1e-5
    bias = False
    kernel = "elu"
    attention_normalize = True
    attn_pdrop = 0.0
    embd_pdrop = 0.0
    resid_pdrop = 0.0
    parallel_residual = False
    shared_attention_norm = False


# ------------------------------------------------------------- fused kernel ---
def _rmsnorm(x, w, eps):
    ms = jnp.mean(x * x, axis=-1, keepdims=True)
    return x * jax.lax.rsqrt(ms + eps) * w


def _gpt_kernel(idx_ref, wte_ref, cos_ref, sin_ref, mask_ref,
                n1_ref, wqkv_ref, wproj_ref, n2_ref, w12_ref, w3_ref,
                lnf_ref, lmw_ref, o_ref,
                *, n_layer, n_head, head_size, inter, eps, vocab):
    """Entire GPT forward (embed -> L blocks -> ln_f -> lm_head) in one invocation."""
    H, D, I, V = n_head, head_size, inter, vocab
    HD = H * D
    BT = idx_ref.shape[0]

    # ---- embedding gather as an exact one-hot matmul (keeps everything in-kernel)
    iota = jax.lax.broadcasted_iota(jnp.int32, (BT, V), 1)
    onehot = (iota == idx_ref[...]).astype(jnp.float32)          # (BT, V)
    x = jnp.dot(onehot, wte_ref[...], preferred_element_type=jnp.float32)   # (BT, C)

    cos = cos_ref[...]        # (BT, D//2) f32 (bf16-quantized values), rows ordered (b, t)
    sin = sin_ref[...]
    mask = mask_ref[...]      # (BT, BT) f32: block-diagonal causal * (1/sqrt(D))

    def rope_elu(zh):
        # lit-gpt non-interleaved rotate-half RoPE (rotary_percentage == 1.0),
        # then the elu(x)+1 feature map.
        z1, z2 = zh[:, :D // 2], zh[:, D // 2:]
        zr = jnp.concatenate([z1 * cos - z2 * sin, z1 * sin + z2 * cos], axis=-1)
        return jnp.where(zr > 0, zr + 1.0, jnp.exp(jnp.minimum(zr, 0.0)))

    for l in range(n_layer):              # L=2: unrolled, weights fully VMEM-resident
        # ---------------- attention half ----------------
        n1 = _rmsnorm(x, n1_ref[l], eps)
        qkv = jnp.dot(n1.astype(jnp.bfloat16), wqkv_ref[l],
                      preferred_element_type=jnp.float32)        # (BT, 3*H*D)
        q, k, v = qkv[:, :HD], qkv[:, HD:2 * HD], qkv[:, 2 * HD:]

        ys = []
        for h in range(H):                # H=4, unrolled at trace time
            qh = rope_elu(q[:, h * D:(h + 1) * D])
            kh = rope_elu(k[:, h * D:(h + 1) * D])
            vh = v[:, h * D:(h + 1) * D]
            # s = q @ k^T (contract head dim directly; no materialized transpose)
            s = jax.lax.dot_general(qh, kh, (((1,), (1,)), ((), ())),
                                    preferred_element_type=jnp.float32)
            s = s * mask                  # scale folded into the 0/scale mask (exact)
            attn = s / (jnp.sum(s, axis=-1, keepdims=True) + 1e-8)   # 'elu' normalization
            ys.append(jnp.dot(attn, vh, preferred_element_type=jnp.float32))
        y = jnp.concatenate(ys, axis=-1)                          # (BT, C), (h, d) order

        x = x + jnp.dot(y.astype(jnp.bfloat16), wproj_ref[l],
                        preferred_element_type=jnp.float32)

        # ---------------- SwiGLU MLP half ----------------
        n2 = _rmsnorm(x, n2_ref[l], eps)
        h12 = jnp.dot(n2.astype(jnp.bfloat16), w12_ref[l],       # lane-dense (C, 2I=128)
                      preferred_element_type=jnp.float32)
        a, b = h12[:, :I], h12[:, I:]
        g = a * (1.0 / (1.0 + jnp.exp(-a))) * b                  # silu(a) * b  (exact recip)
        x = x + jnp.dot(g.astype(jnp.bfloat16), w3_ref[l],
                        preferred_element_type=jnp.float32)

    # ---------------- ln_f + lm_head epilogue (lane-dense padded-vocab store) ----------------
    nf = _rmsnorm(x, lnf_ref[...], eps)
    o_ref[...] = jnp.dot(nf.astype(jnp.bfloat16), lmw_ref[...],
                         preferred_element_type=jnp.float32)


def gpt_pallas(idx_flat, consts, fused, cfg):
    BT = idx_flat.shape[0]
    C, D, I, L, H = cfg.n_embd, cfg.head_size, cfg.intermediate_size, cfg.n_layer, cfg.n_head
    V = cfg.padded_vocab_size
    Vp = fused["lm_w"].shape[1]

    def full(*shape):
        return pl.BlockSpec(shape, lambda i, _s=shape: (0,) * len(_s))

    kern = partial(_gpt_kernel, n_layer=L, n_head=H, head_size=D,
                   inter=I, eps=cfg.norm_eps, vocab=V)
    return pl.pallas_call(
        kern,
        out_shape=jax.ShapeDtypeStruct((BT, Vp), jnp.float32),
        grid=(1,),                                       # single step: everything resident
        in_specs=[
            full(BT, 1),                                 # token ids
            full(V, C),                                  # wte (f32: exact gather)
            full(BT, D // 2),                            # cos (batch-tiled)
            full(BT, D // 2),                            # sin
            full(BT, BT),                                # block-diag causal mask * scale
            full(L, 1, C),                               # norm1 weights
            full(L, C, 3 * H * D),                       # qkv weights
            full(L, C, C),                               # proj weights
            full(L, 1, C),                               # norm2 weights
            full(L, C, 2 * I),                           # fused w1|w2 (lane-dense)
            full(L, I, C),                               # w3
            full(1, C),                                  # ln_f weight
            full(C, Vp),                                 # lm_head, padded to 128 lanes
        ],
        out_specs=full(BT, Vp),
        compiler_params=pltpu.CompilerParams(dimension_semantics=("arbitrary",)),
    )(idx_flat, fused["wte"], consts["cos"], consts["sin"], consts["mask"],
      fused["n1"], fused["wqkv"], fused["wproj"], fused["n2"],
      fused["w12"], fused["w3"], fused["ln_f2d"], fused["lm_w"])


# ------------------------------------------------------------------ glue ---
def build_rope_cache(seq_len, n_elem, base=10000, condense_ratio=1):
    theta = 1.0 / base ** (jnp.arange(0, n_elem, 2, dtype=jnp.float32) / n_elem)
    seq_idx = jnp.arange(seq_len, dtype=jnp.float32) / condense_ratio
    idx_theta = jnp.outer(seq_idx, theta)
    # the torch module caches cos/sin in bfloat16
    return jnp.cos(idx_theta).astype(jnp.bfloat16), jnp.sin(idx_theta).astype(jnp.bfloat16)


def prepare_constants(cfg, B, T):
    """One-time host-side constants (hoisted out of the forward): rope tables tiled
    across batch, and the block-diagonal causal mask with 1/sqrt(D) folded in."""
    D = cfg.head_size
    cos, sin = build_rope_cache(cfg.block_size, int(cfg.rotary_percentage * D),
                                base=cfg.rope_base, condense_ratio=cfg.condense_ratio)
    cos = jnp.tile(cos[:T].astype(jnp.float32), (B, 1))      # (B*T, D//2), rows (b, t)
    sin = jnp.tile(sin[:T].astype(jnp.float32), (B, 1))
    scale = 1.0 / math.sqrt(cfg.head_size)
    causal = jnp.tril(jnp.ones((T, T), jnp.float32))
    mask = jnp.kron(jnp.eye(B, dtype=jnp.float32), causal) * scale
    return {"cos": cos, "sin": sin, "mask": mask}


def init_params(cfg, key):
    keys = jax.random.split(key, 2 + 6 * cfg.n_layer)
    std_e = math.sqrt(2.0 / 5 / cfg.n_embd)
    params = {
        "wte": jax.random.normal(keys[0], (cfg.padded_vocab_size, cfg.n_embd), jnp.float32) * std_e,
        "lm_head": jax.random.normal(keys[1], (cfg.n_embd, cfg.padded_vocab_size), jnp.float32) * std_e,
        "ln_f": jnp.ones((cfg.n_embd,), jnp.float32),
        "blocks": [],
    }
    qkv_out = (cfg.n_head + 2 * cfg.n_query_groups) * cfg.head_size
    for l in range(cfg.n_layer):
        k = keys[2 + 6 * l: 2 + 6 * (l + 1)]
        blk = {
            "norm1": jnp.ones((cfg.n_embd,), jnp.float32),
            "norm2": jnp.ones((cfg.n_embd,), jnp.float32),
            # weights stored as (in, out) so the kernel does x @ W directly
            "attn_w": jax.random.normal(k[0], (cfg.n_embd, qkv_out), jnp.float32) * std_e,
            "proj_w": jax.random.normal(k[1], (cfg.n_embd, cfg.n_embd), jnp.float32) * std_e,
            "mlp_w1": jax.random.normal(k[2], (cfg.n_embd, cfg.intermediate_size), jnp.float32) * std_e,
            "mlp_w2": jax.random.normal(k[3], (cfg.n_embd, cfg.intermediate_size), jnp.float32) * std_e,
            "mlp_w3": jax.random.normal(k[4], (cfg.intermediate_size, cfg.n_embd), jnp.float32)
                      * (1.0 / math.sqrt(cfg.intermediate_size) / cfg.n_layer),
        }
        params["blocks"].append(blk)
    return params


def prepare_fused_params(params, cfg):
    """One-time host-side repack: stack per-layer weights with a leading L dim, permute
    qkv columns to [q|k|v] head-major, fuse w1|w2 (lane-dense 2I=128), pad lm_head to
    128 lanes, and cast dense matmul weights to bf16 (f32 MXU accumulation in-kernel)."""
    C, H, D, I = cfg.n_embd, cfg.n_head, cfg.head_size, cfg.intermediate_size
    G = cfg.n_query_groups
    q_per_kv = H // G
    assert q_per_kv == 1  # TODO(synk): GQA (n_query_groups < n_head) repeat_interleave path not implemented

    def perm_qkv(w):
        # torch column order: (group, [q..q, k, v], d)  ->  [all q | all k | all v], head-major
        w = w.reshape(C, G, q_per_kv + 2, D)
        q = w[:, :, :q_per_kv, :].reshape(C, H * D)
        k = w[:, :, q_per_kv:q_per_kv + 1, :].reshape(C, G * D)
        v = w[:, :, q_per_kv + 1:, :].reshape(C, G * D)
        return jnp.concatenate([q, k, v], axis=1)

    blocks = params["blocks"]
    fused = {
        "wte": params["wte"],                                        # f32 -> exact one-hot gather
        "ln_f2d": params["ln_f"].reshape(1, C),
        "n1": jnp.stack([b["norm1"] for b in blocks])[:, None, :],   # (L,1,C)
        "n2": jnp.stack([b["norm2"] for b in blocks])[:, None, :],
        "wqkv": jnp.stack([perm_qkv(b["attn_w"]) for b in blocks]).astype(jnp.bfloat16),
        "wproj": jnp.stack([b["proj_w"] for b in blocks]).astype(jnp.bfloat16),
        "w12": jnp.stack([jnp.concatenate([b["mlp_w1"], b["mlp_w2"]], axis=1)
                          for b in blocks]).astype(jnp.bfloat16),
        "w3": jnp.stack([b["mlp_w3"] for b in blocks]).astype(jnp.bfloat16),
    }
    V = cfg.padded_vocab_size
    Vp = max(LANE, ((V + LANE - 1) // LANE) * LANE)
    fused["lm_w"] = jnp.zeros((C, Vp), jnp.bfloat16).at[:, :V].set(
        params["lm_head"].astype(jnp.bfloat16))
    return fused


def gpt_forward(fused, consts, idx, cfg):
    B, T = idx.shape
    idx_flat = idx.reshape(B * T, 1).astype(jnp.int32)
    logits_p = gpt_pallas(idx_flat, consts, fused, cfg)          # (B*T, 128) lane-dense
    V = cfg.padded_vocab_size
    # TODO(synk): kv-cache / input_pos decode path, output_attention and all_hiddens returns not implemented.
    return logits_p[:, :V].reshape(B, T, V)


# ------------------------------------------------------------------- main ---
if __name__ == "__main__":
    cfg = Config()
    key = jax.random.PRNGKey(0)
    pkey, ikey = jax.random.split(key)
    params = init_params(cfg, pkey)
    fused = prepare_fused_params(params, cfg)

    B, T = 2, 8
    consts = prepare_constants(cfg, B, T)
    idx = jax.random.randint(ikey, (B, T), 0, cfg.padded_vocab_size, dtype=jnp.int32)

    fwd = jax.jit(partial(gpt_forward, cfg=cfg))
    logits = fwd(fused, consts, idx)
    jax.block_until_ready(logits)
    assert logits.shape == (B, T, cfg.padded_vocab_size)
    print("KERNEL_OK")
</pallas_src>

<mosaic_0001>
module attributes {stable_mosaic.version = 11 : i64} {
  func.func @_gpt_kernel(%arg0: i32, %arg1: memref<16x1xi32, #tpu.memory_space<vmem>>, %arg2: memref<64x32xf32, #tpu.memory_space<vmem>>, %arg3: memref<16x4xf32, #tpu.memory_space<vmem>>, %arg4: memref<16x4xf32, #tpu.memory_space<vmem>>, %arg5: memref<16x16xf32, #tpu.memory_space<vmem>>, %arg6: memref<2x1x32xf32, #tpu.memory_space<vmem>>, %arg7: memref<2x32x96xbf16, #tpu.memory_space<vmem>>, %arg8: memref<2x32x32xbf16, #tpu.memory_space<vmem>>, %arg9: memref<2x1x32xf32, #tpu.memory_space<vmem>>, %arg10: memref<2x32x128xbf16, #tpu.memory_space<vmem>>, %arg11: memref<2x64x32xbf16, #tpu.memory_space<vmem>>, %arg12: memref<1x32xf32, #tpu.memory_space<vmem>>, %arg13: memref<32x128xbf16, #tpu.memory_space<vmem>>, %arg14: memref<16x128xf32, #tpu.memory_space<vmem>>) attributes {dimension_semantics = [#tpu.dimension_semantics<arbitrary>], iteration_bounds = array<i64: 1>, scalar_prefetch = 0 : i64, scratch_operands = 0 : i64, tpu.core_type = #tpu.core_type<tc>, window_params = [{pipeline_mode = #tpu.pipeline_mode<synchronous>, transform_indices = @transform_0, window_bounds = array<i64: 16, 1>}, {pipeline_mode = #tpu.pipeline_mode<synchronous>, transform_indices = @transform_1, window_bounds = array<i64: 64, 32>}, {pipeline_mode = #tpu.pipeline_mode<synchronous>, transform_indices = @transform_2, window_bounds = array<i64: 16, 4>}, {pipeline_mode = #tpu.pipeline_mode<synchronous>, transform_indices = @transform_3, window_bounds = array<i64: 16, 4>}, {pipeline_mode = #tpu.pipeline_mode<synchronous>, transform_indices = @transform_4, window_bounds = array<i64: 16, 16>}, {pipeline_mode = #tpu.pipeline_mode<synchronous>, transform_indices = @transform_5, window_bounds = array<i64: 2, 1, 32>}, {pipeline_mode = #tpu.pipeline_mode<synchronous>, transform_indices = @transform_6, window_bounds = array<i64: 2, 32, 96>}, {pipeline_mode = #tpu.pipeline_mode<synchronous>, transform_indices = @transform_7, window_bounds = array<i64: 2, 32, 32>}, {pipeline_mode = #tpu.pipeline_mode<synchronous>, transform_indices = @transform_8, window_bounds = array<i64: 2, 1, 32>}, {pipeline_mode = #tpu.pipeline_mode<synchronous>, transform_indices = @transform_9, window_bounds = array<i64: 2, 32, 128>}, {pipeline_mode = #tpu.pipeline_mode<synchronous>, transform_indices = @transform_10, window_bounds = array<i64: 2, 64, 32>}, {pipeline_mode = #tpu.pipeline_mode<synchronous>, transform_indices = @transform_11, window_bounds = array<i64: 1, 32>}, {pipeline_mode = #tpu.pipeline_mode<synchronous>, transform_indices = @transform_12, window_bounds = array<i64: 32, 128>}, {pipeline_mode = #tpu.pipeline_mode<synchronous>, transform_indices = @transform_13, window_bounds = array<i64: 16, 128>}]} {
    %0 = tpu.iota {dimensions = array<i32: 1>} : vector<16x64xi32>
    %c0 = arith.constant 0 : index
    %c0_0 = arith.constant 0 : index
    %1 = vector.load %arg1[%c0, %c0_0] : memref<16x1xi32, #tpu.memory_space<vmem>>, vector<16x1xi32>
    %2 = vector.broadcast %1 : vector<16x1xi32> to vector<16x64xi32>
    %3 = arith.cmpi eq, %0, %2 : vector<16x64xi32>
    %4 = arith.extui %3 : vector<16x64xi1> to vector<16x64xi32>
    %5 = arith.sitofp %4 : vector<16x64xi32> to vector<16x64xf32>
    %c0_1 = arith.constant 0 : index
    %c0_2 = arith.constant 0 : index
    %6 = vector.load %arg2[%c0_1, %c0_2] : memref<64x32xf32, #tpu.memory_space<vmem>>, vector<64x32xf32>
    %cst = arith.constant dense<0.000000e+00> : vector<16x32xf32>
    %7 = tpu.matmul %5, %6, %cst {dimension_numbers = #tpu.dot_dimension_numbers<[1], [0], [0], [1], [0, 0, 1, 1], [], []>} : vector<16x64xf32>, vector<64x32xf32>, vector<16x32xf32> -> vector<16x32xf32>
    %c0_3 = arith.constant 0 : index
    %c0_4 = arith.constant 0 : index
    %8 = vector.load %arg3[%c0_3, %c0_4] : memref<16x4xf32, #tpu.memory_space<vmem>>, vector<16x4xf32>
    %c0_5 = arith.constant 0 : index
    %c0_6 = arith.constant 0 : index
    %9 = vector.load %arg4[%c0_5, %c0_6] : memref<16x4xf32, #tpu.memory_space<vmem>>, vector<16x4xf32>
    %c0_7 = arith.constant 0 : index
    %c0_8 = arith.constant 0 : index
    %10 = vector.load %arg5[%c0_7, %c0_8] : memref<16x16xf32, #tpu.memory_space<vmem>>, vector<16x16xf32>
    %c0_9 = arith.constant 0 : index
    %c0_10 = arith.constant 0 : index
    %c0_11 = arith.constant 0 : index
    %11 = vector.load %arg6[%c0_9, %c0_10, %c0_11] : memref<2x1x32xf32, #tpu.memory_space<vmem>>, vector<1x1x32xf32>
    %12 = vector.shape_cast %11 : vector<1x1x32xf32> to vector<1x32xf32>
    %13 = arith.mulf %7, %7 : vector<16x32xf32>
    %cst_12 = arith.constant dense<0.000000e+00> : vector<16xf32>
    %14 = vector.multi_reduction <add>, %13, %cst_12 [1] : vector<16x32xf32> to vector<16xf32>
    %15 = vector.shape_cast %14 : vector<16xf32> to vector<16x1xf32>
    %cst_13 = arith.constant 3.200000e+01 : f32
    %16 = vector.broadcast %cst_13 : f32 to vector<16x1xf32>
    %17 = arith.divf %15, %16 : vector<16x1xf32>
    %cst_14 = arith.constant 9.99999974E-6 : f32
    %18 = vector.broadcast %cst_14 : f32 to vector<16x1xf32>
    %19 = arith.addf %17, %18 : vector<16x1xf32>
    %20 = math.rsqrt %19 : vector<16x1xf32>
    %21 = vector.broadcast %20 : vector<16x1xf32> to vector<16x32xf32>
    %22 = arith.mulf %7, %21 : vector<16x32xf32>
    %23 = vector.broadcast %12 : vector<1x32xf32> to vector<16x32xf32>
    %24 = arith.mulf %22, %23 : vector<16x32xf32>
    %25 = arith.truncf %24 : vector<16x32xf32> to vector<16x32xbf16>
    %c0_15 = arith.constant 0 : index
    %c0_16 = arith.constant 0 : index
    %c0_17 = arith.constant 0 : index
    %26 = vector.load %arg7[%c0_15, %c0_16, %c0_17] : memref<2x32x96xbf16, #tpu.memory_space<vmem>>, vector<1x32x96xbf16>
    %27 = vector.shape_cast %26 : vector<1x32x96xbf16> to vector<32x96xbf16>
    %cst_18 = arith.constant dense<0.000000e+00> : vector<16x96xf32>
    %28 = tpu.matmul %25, %27, %cst_18 {dimension_numbers = #tpu.dot_dimension_numbers<[1], [0], [0], [1], [0, 0, 1, 1], [], []>} : vector<16x32xbf16>, vector<32x96xbf16>, vector<16x96xf32> -> vector<16x96xf32>
    %29 = vector.extract_strided_slice %28 {offsets = [0, 0], sizes = [16, 32], strides = [1, 1]} : vector<16x96xf32> to vector<16x32xf32>
    %30 = vector.extract_strided_slice %28 {offsets = [0, 32], sizes = [16, 32], strides = [1, 1]} : vector<16x96xf32> to vector<16x32xf32>
    %31 = vector.extract_strided_slice %28 {offsets = [0, 64], sizes = [16, 32], strides = [1, 1]} : vector<16x96xf32> to vector<16x32xf32>
    %32 = vector.extract_strided_slice %29 {offsets = [0, 0], sizes = [16, 8], strides = [1, 1]} : vector<16x32xf32> to vector<16x8xf32>
    %33 = vector.extract_strided_slice %32 {offsets = [0, 0], sizes = [16, 4], strides = [1, 1]} : vector<16x8xf32> to vector<16x4xf32>
    %34 = vector.extract_strided_slice %32 {offsets = [0, 4], sizes = [16, 4], strides = [1, 1]} : vector<16x8xf32> to vector<16x4xf32>
    %35 = arith.mulf %33, %8 : vector<16x4xf32>
    %36 = arith.mulf %34, %9 : vector<16x4xf32>
    %37 = arith.subf %35, %36 : vector<16x4xf32>
    %38 = arith.mulf %33, %9 : vector<16x4xf32>
    %39 = arith.mulf %34, %8 : vector<16x4xf32>
    %40 = arith.addf %38, %39 : vector<16x4xf32>
    %41 = tpu.concatenate %37, %40 in 1 : vector<16x4xf32>, vector<16x4xf32> -> vector<16x8xf32>
    %cst_19 = arith.constant 0.000000e+00 : f32
    %42 = vector.broadcast %cst_19 : f32 to vector<16x8xf32>
    %43 = arith.cmpf ogt, %41, %42 : vector<16x8xf32>
    %cst_20 = arith.constant 1.000000e+00 : f32
    %44 = vector.broadcast %cst_20 : f32 to vector<16x8xf32>
    %45 = arith.addf %41, %44 : vector<16x8xf32>
    %cst_21 = arith.constant 0.000000e+00 : f32
    %46 = vector.broadcast %cst_21 : f32 to vector<16x8xf32>
    %47 = arith.minimumf %41, %46 : vector<16x8xf32>
    %48 = math.exp %47 : vector<16x8xf32>
    %49 = arith.select %43, %45, %48 : vector<16x8xi1>, vector<16x8xf32>
    %50 = vector.extract_strided_slice %30 {offsets = [0, 0], sizes = [16, 8], strides = [1, 1]} : vector<16x32xf32> to vector<16x8xf32>
    %51 = vector.extract_strided_slice %50 {offsets = [0, 0], sizes = [16, 4], strides = [1, 1]} : vector<16x8xf32> to vector<16x4xf32>
    %52 = vector.extract_strided_slice %50 {offsets = [0, 4], sizes = [16, 4], strides = [1, 1]} : vector<16x8xf32> to vector<16x4xf32>
    %53 = arith.mulf %51, %8 : vector<16x4xf32>
    %54 = arith.mulf %52, %9 : vector<16x4xf32>
    %55 = arith.subf %53, %54 : vector<16x4xf32>
    %56 = arith.mulf %51, %9 : vector<16x4xf32>
    %57 = arith.mulf %52, %8 : vector<16x4xf32>
    %58 = arith.addf %56, %57 : vector<16x4xf32>
    %59 = tpu.concatenate %55, %58 in 1 : vector<16x4xf32>, vector<16x4xf32> -> vector<16x8xf32>
    %cst_22 = arith.constant 0.000000e+00 : f32
    %60 = vector.broadcast %cst_22 : f32 to vector<16x8xf32>
    %61 = arith.cmpf ogt, %59, %60 : vector<16x8xf32>
    %cst_23 = arith.constant 1.000000e+00 : f32
    %62 = vector.broadcast %cst_23 : f32 to vector<16x8xf32>
    %63 = arith.addf %59, %62 : vector<16x8xf32>
    %cst_24 = arith.constant 0.000000e+00 : f32
    %64 = vector.broadcast %cst_24 : f32 to vector<16x8xf32>
    %65 = arith.minimumf %59, %64 : vector<16x8xf32>
    %66 = math.exp %65 : vector<16x8xf32>
    %67 = arith.select %61, %63, %66 : vector<16x8xi1>, vector<16x8xf32>
    %68 = vector.extract_strided_slice %31 {offsets = [0, 0], sizes = [16, 8], strides = [1, 1]} : vector<16x32xf32> to vector<16x8xf32>
    %cst_25 = arith.constant dense<0.000000e+00> : vector<16x16xf32>
    %69 = tpu.matmul %49, %67, %cst_25 {dimension_numbers = #tpu.dot_dimension_numbers<[1], [1], [0], [0], [0, 0, 1, 0], [], []>} : vector<16x8xf32>, vector<16x8xf32>, vector<16x16xf32> -> vector<16x16xf32>
    %70 = arith.mulf %69, %10 : vector<16x16xf32>
    %cst_26 = arith.constant dense<0.000000e+00> : vector<16xf32>
    %71 = vector.multi_reduction <add>, %70, %cst_26 [1] : vector<16x16xf32> to vector<16xf32>
    %72 = vector.shape_cast %71 : vector<16xf32> to vector<16x1xf32>
    %cst_27 = arith.constant 9.99999993E-9 : f32
    %73 = vector.broadcast %cst_27 : f32 to vector<16x1xf32>
    %74 = arith.addf %72, %73 : vector<16x1xf32>
    %75 = vector.broadcast %74 : vector<16x1xf32> to vector<16x16xf32>
    %76 = arith.divf %70, %75 : vector<16x16xf32>
    %cst_28 = arith.constant dense<0.000000e+00> : vector<16x8xf32>
    %77 = tpu.matmul %76, %68, %cst_28 {dimension_numbers = #tpu.dot_dimension_numbers<[1], [0], [0], [1], [0, 0, 1, 1], [], []>} : vector<16x16xf32>, vector<16x8xf32>, vector<16x8xf32> -> vector<16x8xf32>
    %78 = vector.extract_strided_slice %29 {offsets = [0, 8], sizes = [16, 8], strides = [1, 1]} : vector<16x32xf32> to vector<16x8xf32>
    %79 = vector.extract_strided_slice %78 {offsets = [0, 0], sizes = [16, 4], strides = [1, 1]} : vector<16x8xf32> to vector<16x4xf32>
    %80 = vector.extract_strided_slice %78 {offsets = [0, 4], sizes = [16, 4], strides = [1, 1]} : vector<16x8xf32> to vector<16x4xf32>
    %81 = arith.mulf %79, %8 : vector<16x4xf32>
    %82 = arith.mulf %80, %9 : vector<16x4xf32>
    %83 = arith.subf %81, %82 : vector<16x4xf32>
    %84 = arith.mulf %79, %9 : vector<16x4xf32>
    %85 = arith.mulf %80, %8 : vector<16x4xf32>
    %86 = arith.addf %84, %85 : vector<16x4xf32>
    %87 = tpu.concatenate %83, %86 in 1 : vector<16x4xf32>, vector<16x4xf32> -> vector<16x8xf32>
    %cst_29 = arith.constant 0.000000e+00 : f32
    %88 = vector.broadcast %cst_29 : f32 to vector<16x8xf32>
    %89 = arith.cmpf ogt, %87, %88 : vector<16x8xf32>
    %cst_30 = arith.constant 1.000000e+00 : f32
    %90 = vector.broadcast %cst_30 : f32 to vector<16x8xf32>
    %91 = arith.addf %87, %90 : vector<16x8xf32>
    %cst_31 = arith.constant 0.000000e+00 : f32
    %92 = vector.broadcast %cst_31 : f32 to vector<16x8xf32>
    %93 = arith.minimumf %87, %92 : vector<16x8xf32>
    %94 = math.exp %93 : vector<16x8xf32>
    %95 = arith.select %89, %91, %94 : vector<16x8xi1>, vector<16x8xf32>
    %96 = vector.extract_strided_slice %30 {offsets = [0, 8], sizes = [16, 8], strides = [1, 1]} : vector<16x32xf32> to vector<16x8xf32>
    %97 = vector.extract_strided_slice %96 {offsets = [0, 0], sizes = [16, 4], strides = [1, 1]} : vector<16x8xf32> to vector<16x4xf32>
    %98 = vector.extract_strided_slice %96 {offsets = [0, 4], sizes = [16, 4], strides = [1, 1]} : vector<16x8xf32> to vector<16x4xf32>
    %99 = arith.mulf %97, %8 : vector<16x4xf32>
    %100 = arith.mulf %98, %9 : vector<16x4xf32>
    %101 = arith.subf %99, %100 : vector<16x4xf32>
    %102 = arith.mulf %97, %9 : vector<16x4xf32>
    %103 = arith.mulf %98, %8 : vector<16x4xf32>
    %104 = arith.addf %102, %103 : vector<16x4xf32>
    %105 = tpu.concatenate %101, %104 in 1 : vector<16x4xf32>, vector<16x4xf32> -> vector<16x8xf32>
    %cst_32 = arith.constant 0.000000e+00 : f32
    %106 = vector.broadcast %cst_32 : f32 to vector<16x8xf32>
    %107 = arith.cmpf ogt, %105, %106 : vector<16x8xf32>
    %cst_33 = arith.constant 1.000000e+00 : f32
    %108 = vector.broadcast %cst_33 : f32 to vector<16x8xf32>
    %109 = arith.addf %105, %108 : vector<16x8xf32>
    %cst_34 = arith.constant 0.000000e+00 : f32
    %110 = vector.broadcast %cst_34 : f32 to vector<16x8xf32>
    %111 = arith.minimumf %105, %110 : vector<16x8xf32>
    %112 = math.exp %111 : vector<16x8xf32>
    %113 = arith.select %107, %109, %112 : vector<16x8xi1>, vector<16x8xf32>
    %114 = vector.extract_strided_slice %31 {offsets = [0, 8], sizes = [16, 8], strides = [1, 1]} : vector<16x32xf32> to vector<16x8xf32>
    %cst_35 = arith.constant dense<0.000000e+00> : vector<16x16xf32>
    %115 = tpu.matmul %95, %113, %cst_35 {dimension_numbers = #tpu.dot_dimension_numbers<[1], [1], [0], [0], [0, 0, 1, 0], [], []>} : vector<16x8xf32>, vector<16x8xf32>, vector<16x16xf32> -> vector<16x16xf32>
    %116 = arith.mulf %115, %10 : vector<16x16xf32>
    %cst_36 = arith.constant dense<0.000000e+00> : vector<16xf32>
    %117 = vector.multi_reduction <add>, %116, %cst_36 [1] : vector<16x16xf32> to vector<16xf32>
    %118 = vector.shape_cast %117 : vector<16xf32> to vector<16x1xf32>
    %cst_37 = arith.constant 9.99999993E-9 : f32
    %119 = vector.broadcast %cst_37 : f32 to vector<16x1xf32>
    %120 = arith.addf %118, %119 : vector<16x1xf32>
    %121 = vector.broadcast %120 : vector<16x1xf32> to vector<16x16xf32>
    %122 = arith.divf %116, %121 : vector<16x16xf32>
    %cst_38 = arith.constant dense<0.000000e+00> : vector<16x8xf32>
    %123 = tpu.matmul %122, %114, %cst_38 {dimension_numbers = #tpu.dot_dimension_numbers<[1], [0], [0], [1], [0, 0, 1, 1], [], []>} : vector<16x16xf32>, vector<16x8xf32>, vector<16x8xf32> -> vector<16x8xf32>
    %124 = vector.extract_strided_slice %29 {offsets = [0, 16], sizes = [16, 8], strides = [1, 1]} : vector<16x32xf32> to vector<16x8xf32>
    %125 = vector.extract_strided_slice %124 {offsets = [0, 0], sizes = [16, 4], strides = [1, 1]} : vector<16x8xf32> to vector<16x4xf32>
    %126 = vector.extract_strided_slice %124 {offsets = [0, 4], sizes = [16, 4], strides = [1, 1]} : vector<16x8xf32> to vector<16x4xf32>
    %127 = arith.mulf %125, %8 : vector<16x4xf32>
    %128 = arith.mulf %126, %9 : vector<16x4xf32>
    %129 = arith.subf %127, %128 : vector<16x4xf32>
    %130 = arith.mulf %125, %9 : vector<16x4xf32>
    %131 = arith.mulf %126, %8 : vector<16x4xf32>
    %132 = arith.addf %130, %131 : vector<16x4xf32>
    %133 = tpu.concatenate %129, %132 in 1 : vector<16x4xf32>, vector<16x4xf32> -> vector<16x8xf32>
    %cst_39 = arith.constant 0.000000e+00 : f32
    %134 = vector.broadcast %cst_39 : f32 to vector<16x8xf32>
    %135 = arith.cmpf ogt, %133, %134 : vector<16x8xf32>
    %cst_40 = arith.constant 1.000000e+00 : f32
    %136 = vector.broadcast %cst_40 : f32 to vector<16x8xf32>
    %137 = arith.addf %133, %136 : vector<16x8xf32>
    %cst_41 = arith.constant 0.000000e+00 : f32
    %138 = vector.broadcast %cst_41 : f32 to vector<16x8xf32>
    %139 = arith.minimumf %133, %138 : vector<16x8xf32>
    %140 = math.exp %139 : vector<16x8xf32>
    %141 = arith.select %135, %137, %140 : vector<16x8xi1>, vector<16x8xf32>
    %142 = vector.extract_strided_slice %30 {offsets = [0, 16], sizes = [16, 8], strides = [1, 1]} : vector<16x32xf32> to vector<16x8xf32>
    %143 = vector.extract_strided_slice %142 {offsets = [0, 0], sizes = [16, 4], strides = [1, 1]} : vector<16x8xf32> to vector<16x4xf32>
    %144 = vector.extract_strided_slice %142 {offsets = [0, 4], sizes = [16, 4], strides = [1, 1]} : vector<16x8xf32> to vector<16x4xf32>
    %145 = arith.mulf %143, %8 : vector<16x4xf32>
    %146 = arith.mulf %144, %9 : vector<16x4xf32>
    %147 = arith.subf %145, %146 : vector<16x4xf32>
    %148 = arith.mulf %143, %9 : vector<16x4xf32>
    %149 = arith.mulf %144, %8 : vector<16x4xf32>
    %150 = arith.addf %148, %149 : vector<16x4xf32>
    %151 = tpu.concatenate %147, %150 in 1 : vector<16x4xf32>, vector<16x4xf32> -> vector<16x8xf32>
    %cst_42 = arith.constant 0.000000e+00 : f32
    %152 = vector.broadcast %cst_42 : f32 to vector<16x8xf32>
    %153 = arith.cmpf ogt, %151, %152 : vector<16x8xf32>
    %cst_43 = arith.constant 1.000000e+00 : f32
    %154 = vector.broadcast %cst_43 : f32 to vector<16x8xf32>
    %155 = arith.addf %151, %154 : vector<16x8xf32>
    %cst_44 = arith.constant 0.000000e+00 : f32
    %156 = vector.broadcast %cst_44 : f32 to vector<16x8xf32>
    %157 = arith.minimumf %151, %156 : vector<16x8xf32>
    %158 = math.exp %157 : vector<16x8xf32>
    %159 = arith.select %153, %155, %158 : vector<16x8xi1>, vector<16x8xf32>
    %160 = vector.extract_strided_slice %31 {offsets = [0, 16], sizes = [16, 8], strides = [1, 1]} : vector<16x32xf32> to vector<16x8xf32>
    %cst_45 = arith.constant dense<0.000000e+00> : vector<16x16xf32>
    %161 = tpu.matmul %141, %159, %cst_45 {dimension_numbers = #tpu.dot_dimension_numbers<[1], [1], [0], [0], [0, 0, 1, 0], [], []>} : vector<16x8xf32>, vector<16x8xf32>, vector<16x16xf32> -> vector<16x16xf32>
    %162 = arith.mulf %161, %10 : vector<16x16xf32>
    %cst_46 = arith.constant dense<0.000000e+00> : vector<16xf32>
    %163 = vector.multi_reduction <add>, %162, %cst_46 [1] : vector<16x16xf32> to vector<16xf32>
    %164 = vector.shape_cast %163 : vector<16xf32> to vector<16x1xf32>
    %cst_47 = arith.constant 9.99999993E-9 : f32
    %165 = vector.broadcast %cst_47 : f32 to vector<16x1xf32>
    %166 = arith.addf %164, %165 : vector<16x1xf32>
    %167 = vector.broadcast %166 : vector<16x1xf32> to vector<16x16xf32>
    %168 = arith.divf %162, %167 : vector<16x16xf32>
    %cst_48 = arith.constant dense<0.000000e+00> : vector<16x8xf32>
    %169 = tpu.matmul %168, %160, %cst_48 {dimension_numbers = #tpu.dot_dimension_numbers<[1], [0], [0], [1], [0, 0, 1, 1], [], []>} : vector<16x16xf32>, vector<16x8xf32>, vector<16x8xf32> -> vector<16x8xf32>
    %170 = vector.extract_strided_slice %29 {offsets = [0, 24], sizes = [16, 8], strides = [1, 1]} : vector<16x32xf32> to vector<16x8xf32>
    %171 = vector.extract_strided_slice %170 {offsets = [0, 0], sizes = [16, 4], strides = [1, 1]} : vector<16x8xf32> to vector<16x4xf32>
    %172 = vector.extract_strided_slice %170 {offsets = [0, 4], sizes = [16, 4], strides = [1, 1]} : vector<16x8xf32> to vector<16x4xf32>
    %173 = arith.mulf %171, %8 : vector<16x4xf32>
    %174 = arith.mulf %172, %9 : vector<16x4xf32>
    %175 = arith.subf %173, %174 : vector<16x4xf32>
    %176 = arith.mulf %171, %9 : vector<16x4xf32>
    %177 = arith.mulf %172, %8 : vector<16x4xf32>
    %178 = arith.addf %176, %177 : vector<16x4xf32>
    %179 = tpu.concatenate %175, %178 in 1 : vector<16x4xf32>, vector<16x4xf32> -> vector<16x8xf32>
    %cst_49 = arith.constant 0.000000e+00 : f32
    %180 = vector.broadcast %cst_49 : f32 to vector<16x8xf32>
    %181 = arith.cmpf ogt, %179, %180 : vector<16x8xf32>
    %cst_50 = arith.constant 1.000000e+00 : f32
    %182 = vector.broadcast %cst_50 : f32 to vector<16x8xf32>
    %183 = arith.addf %179, %182 : vector<16x8xf32>
    %cst_51 = arith.constant 0.000000e+00 : f32
    %184 = vector.broadcast %cst_51 : f32 to vector<16x8xf32>
    %185 = arith.minimumf %179, %184 : vector<16x8xf32>
    %186 = math.exp %185 : vector<16x8xf32>
    %187 = arith.select %181, %183, %186 : vector<16x8xi1>, vector<16x8xf32>
    %188 = vector.extract_strided_slice %30 {offsets = [0, 24], sizes = [16, 8], strides = [1, 1]} : vector<16x32xf32> to vector<16x8xf32>
    %189 = vector.extract_strided_slice %188 {offsets = [0, 0], sizes = [16, 4], strides = [1, 1]} : vector<16x8xf32> to vector<16x4xf32>
    %190 = vector.extract_strided_slice %188 {offsets = [0, 4], sizes = [16, 4], strides = [1, 1]} : vector<16x8xf32> to vector<16x4xf32>
    %191 = arith.mulf %189, %8 : vector<16x4xf32>
    %192 = arith.mulf %190, %9 : vector<16x4xf32>
    %193 = arith.subf %191, %192 : vector<16x4xf32>
    %194 = arith.mulf %189, %9 : vector<16x4xf32>
    %195 = arith.mulf %190, %8 : vector<16x4xf32>
    %196 = arith.addf %194, %195 : vector<16x4xf32>
    %197 = tpu.concatenate %193, %196 in 1 : vector<16x4xf32>, vector<16x4xf32> -> vector<16x8xf32>
    %cst_52 = arith.constant 0.000000e+00 : f32
    %198 = vector.broadcast %cst_52 : f32 to vector<16x8xf32>
    %199 = arith.cmpf ogt, %197, %198 : vector<16x8xf32>
    %cst_53 = arith.constant 1.000000e+00 : f32
    %200 = vector.broadcast %cst_53 : f32 to vector<16x8xf32>
    %201 = arith.addf %197, %200 : vector<16x8xf32>
    %cst_54 = arith.constant 0.000000e+00 : f32
    %202 = vector.broadcast %cst_54 : f32 to vector<16x8xf32>
    %203 = arith.minimumf %197, %202 : vector<16x8xf32>
    %204 = math.exp %203 : vector<16x8xf32>
    %205 = arith.select %199, %201, %204 : vector<16x8xi1>, vector<16x8xf32>
    %206 = vector.extract_strided_slice %31 {offsets = [0, 24], sizes = [16, 8], strides = [1, 1]} : vector<16x32xf32> to vector<16x8xf32>
    %cst_55 = arith.constant dense<0.000000e+00> : vector<16x16xf32>
    %207 = tpu.matmul %187, %205, %cst_55 {dimension_numbers = #tpu.dot_dimension_numbers<[1], [1], [0], [0], [0, 0, 1, 0], [], []>} : vector<16x8xf32>, vector<16x8xf32>, vector<16x16xf32> -> vector<16x16xf32>
    %208 = arith.mulf %207, %10 : vector<16x16xf32>
    %cst_56 = arith.constant dense<0.000000e+00> : vector<16xf32>
    %209 = vector.multi_reduction <add>, %208, %cst_56 [1] : vector<16x16xf32> to vector<16xf32>
    %210 = vector.shape_cast %209 : vector<16xf32> to vector<16x1xf32>
    %cst_57 = arith.constant 9.99999993E-9 : f32
    %211 = vector.broadcast %cst_57 : f32 to vector<16x1xf32>
    %212 = arith.addf %210, %211 : vector<16x1xf32>
    %213 = vector.broadcast %212 : vector<16x1xf32> to vector<16x16xf32>
    %214 = arith.divf %208, %213 : vector<16x16xf32>
    %cst_58 = arith.constant dense<0.000000e+00> : vector<16x8xf32>
    %215 = tpu.matmul %214, %206, %cst_58 {dimension_numbers = #tpu.dot_dimension_numbers<[1], [0], [0], [1], [0, 0, 1, 1], [], []>} : vector<16x16xf32>, vector<16x8xf32>, vector<16x8xf32> -> vector<16x8xf32>
    %216 = tpu.concatenate %77, %123, %169, %215 in 1 : vector<16x8xf32>, vector<16x8xf32>, vector<16x8xf32>, vector<16x8xf32> -> vector<16x32xf32>
    %217 = arith.truncf %216 : vector<16x32xf32> to vector<16x32xbf16>
    %c0_59 = arith.constant 0 : index
    %c0_60 = arith.constant 0 : index
    %c0_61 = arith.constant 0 : index
    %218 = vector.load %arg8[%c0_59, %c0_60, %c0_61] : memref<2x32x32xbf16, #tpu.memory_space<vmem>>, vector<1x32x32xbf16>
    %219 = vector.shape_cast %218 : vector<1x32x32xbf16> to vector<32x32xbf16>
    %cst_62 = arith.constant dense<0.000000e+00> : vector<16x32xf32>
    %220 = tpu.matmul %217, %219, %cst_62 {dimension_numbers = #tpu.dot_dimension_numbers<[1], [0], [0], [1], [0, 0, 1, 1], [], []>} : vector<16x32xbf16>, vector<32x32xbf16>, vector<16x32xf32> -> vector<16x32xf32>
    %221 = arith.addf %7, %220 : vector<16x32xf32>
    %c0_63 = arith.constant 0 : index
    %c0_64 = arith.constant 0 : index
    %c0_65 = arith.constant 0 : index
    %222 = vector.load %arg9[%c0_63, %c0_64, %c0_65] : memref<2x1x32xf32, #tpu.memory_space<vmem>>, vector<1x1x32xf32>
    %223 = vector.shape_cast %222 : vector<1x1x32xf32> to vector<1x32xf32>
    %224 = arith.mulf %221, %221 : vector<16x32xf32>
    %cst_66 = arith.constant dense<0.000000e+00> : vector<16xf32>
    %225 = vector.multi_reduction <add>, %224, %cst_66 [1] : vector<16x32xf32> to vector<16xf32>
    %226 = vector.shape_cast %225 : vector<16xf32> to vector<16x1xf32>
    %cst_67 = arith.constant 3.200000e+01 : f32
    %227 = vector.broadcast %cst_67 : f32 to vector<16x1xf32>
    %228 = arith.divf %226, %227 : vector<16x1xf32>
    %cst_68 = arith.constant 9.99999974E-6 : f32
    %229 = vector.broadcast %cst_68 : f32 to vector<16x1xf32>
    %230 = arith.addf %228, %229 : vector<16x1xf32>
    %231 = math.rsqrt %230 : vector<16x1xf32>
    %232 = vector.broadcast %231 : vector<16x1xf32> to vector<16x32xf32>
    %233 = arith.mulf %221, %232 : vector<16x32xf32>
    %234 = vector.broadcast %223 : vector<1x32xf32> to vector<16x32xf32>
    %235 = arith.mulf %233, %234 : vector<16x32xf32>
    %236 = arith.truncf %235 : vector<16x32xf32> to vector<16x32xbf16>
    %c0_69 = arith.constant 0 : index
    %c0_70 = arith.constant 0 : index
    %c0_71 = arith.constant 0 : index
    %237 = vector.load %arg10[%c0_69, %c0_70, %c0_71] : memref<2x32x128xbf16, #tpu.memory_space<vmem>>, vector<1x32x128xbf16>
    %238 = vector.shape_cast %237 : vector<1x32x128xbf16> to vector<32x128xbf16>
    %cst_72 = arith.constant dense<0.000000e+00> : vector<16x128xf32>
    %239 = tpu.matmul %236, %238, %cst_72 {dimension_numbers = #tpu.dot_dimension_numbers<[1], [0], [0], [1], [0, 0, 1, 1], [], []>} : vector<16x32xbf16>, vector<32x128xbf16>, vector<16x128xf32> -> vector<16x128xf32>
    %240 = vector.extract_strided_slice %239 {offsets = [0, 0], sizes = [16, 64], strides = [1, 1]} : vector<16x128xf32> to vector<16x64xf32>
    %241 = vector.extract_strided_slice %239 {offsets = [0, 64], sizes = [16, 64], strides = [1, 1]} : vector<16x128xf32> to vector<16x64xf32>
    %cst_73 = arith.constant 0.000000e+00 : f32
    %242 = vector.broadcast %cst_73 : f32 to vector<16x64xf32>
    %243 = arith.subf %242, %240 : vector<16x64xf32>
    %244 = math.exp %243 : vector<16x64xf32>
    %cst_74 = arith.constant 1.000000e+00 : f32
    %245 = vector.broadcast %cst_74 : f32 to vector<16x64xf32>
    %246 = arith.addf %245, %244 : vector<16x64xf32>
    %cst_75 = arith.constant 1.000000e+00 : f32
    %247 = vector.broadcast %cst_75 : f32 to vector<16x64xf32>
    %248 = arith.divf %247, %246 : vector<16x64xf32>
    %249 = arith.mulf %240, %248 : vector<16x64xf32>
    %250 = arith.mulf %249, %241 : vector<16x64xf32>
    %251 = arith.truncf %250 : vector<16x64xf32> to vector<16x64xbf16>
    %c0_76 = arith.constant 0 : index
    %c0_77 = arith.constant 0 : index
    %c0_78 = arith.constant 0 : index
    %252 = vector.load %arg11[%c0_76, %c0_77, %c0_78] : memref<2x64x32xbf16, #tpu.memory_space<vmem>>, vector<1x64x32xbf16>
    %253 = vector.shape_cast %252 : vector<1x64x32xbf16> to vector<64x32xbf16>
    %cst_79 = arith.constant dense<0.000000e+00> : vector<16x32xf32>
    %254 = tpu.matmul %251, %253, %cst_79 {dimension_numbers = #tpu.dot_dimension_numbers<[1], [0], [0], [1], [0, 0, 1, 1], [], []>} : vector<16x64xbf16>, vector<64x32xbf16>, vector<16x32xf32> -> vector<16x32xf32>
    %255 = arith.addf %221, %254 : vector<16x32xf32>
    %c1 = arith.constant 1 : index
    %c0_80 = arith.constant 0 : index
    %c0_81 = arith.constant 0 : index
    %256 = vector.load %arg6[%c1, %c0_80, %c0_81] : memref<2x1x32xf32, #tpu.memory_space<vmem>>, vector<1x1x32xf32>
    %257 = vector.shape_cast %256 : vector<1x1x32xf32> to vector<1x32xf32>
    %258 = arith.mulf %255, %255 : vector<16x32xf32>
    %cst_82 = arith.constant dense<0.000000e+00> : vector<16xf32>
    %259 = vector.multi_reduction <add>, %258, %cst_82 [1] : vector<16x32xf32> to vector<16xf32>
    %260 = vector.shape_cast %259 : vector<16xf32> to vector<16x1xf32>
    %cst_83 = arith.constant 3.200000e+01 : f32
    %261 = vector.broadcast %cst_83 : f32 to vector<16x1xf32>
    %262 = arith.divf %260, %261 : vector<16x1xf32>
    %cst_84 = arith.constant 9.99999974E-6 : f32
    %263 = vector.broadcast %cst_84 : f32 to vector<16x1xf32>
    %264 = arith.addf %262, %263 : vector<16x1xf32>
    %265 = math.rsqrt %264 : vector<16x1xf32>
    %266 = vector.broadcast %265 : vector<16x1xf32> to vector<16x32xf32>
    %267 = arith.mulf %255, %266 : vector<16x32xf32>
    %268 = vector.broadcast %257 : vector<1x32xf32> to vector<16x32xf32>
    %269 = arith.mulf %267, %268 : vector<16x32xf32>
    %270 = arith.truncf %269 : vector<16x32xf32> to vector<16x32xbf16>
    %c1_85 = arith.constant 1 : index
    %c0_86 = arith.constant 0 : index
    %c0_87 = arith.constant 0 : index
    %271 = vector.load %arg7[%c1_85, %c0_86, %c0_87] : memref<2x32x96xbf16, #tpu.memory_space<vmem>>, vector<1x32x96xbf16>
    %272 = vector.shape_cast %271 : vector<1x32x96xbf16> to vector<32x96xbf16>
    %cst_88 = arith.constant dense<0.000000e+00> : vector<16x96xf32>
    %273 = tpu.matmul %270, %272, %cst_88 {dimension_numbers = #tpu.dot_dimension_numbers<[1], [0], [0], [1], [0, 0, 1, 1], [], []>} : vector<16x32xbf16>, vector<32x96xbf16>, vector<16x96xf32> -> vector<16x96xf32>
    %274 = vector.extract_strided_slice %273 {offsets = [0, 0], sizes = [16, 32], strides = [1, 1]} : vector<16x96xf32> to vector<16x32xf32>
    %275 = vector.extract_strided_slice %273 {offsets = [0, 32], sizes = [16, 32], strides = [1, 1]} : vector<16x96xf32> to vector<16x32xf32>
    %276 = vector.extract_strided_slice %273 {offsets = [0, 64], sizes = [16, 32], strides = [1, 1]} : vector<16x96xf32> to vector<16x32xf32>
    %277 = vector.extract_strided_slice %274 {offsets = [0, 0], sizes = [16, 8], strides = [1, 1]} : vector<16x32xf32> to vector<16x8xf32>
    %278 = vector.extract_strided_slice %277 {offsets = [0, 0], sizes = [16, 4], strides = [1, 1]} : vector<16x8xf32> to vector<16x4xf32>
    %279 = vector.extract_strided_slice %277 {offsets = [0, 4], sizes = [16, 4], strides = [1, 1]} : vector<16x8xf32> to vector<16x4xf32>
    %280 = arith.mulf %278, %8 : vector<16x4xf32>
    %281 = arith.mulf %279, %9 : vector<16x4xf32>
    %282 = arith.subf %280, %281 : vector<16x4xf32>
    %283 = arith.mulf %278, %9 : vector<16x4xf32>
    %284 = arith.mulf %279, %8 : vector<16x4xf32>
    %285 = arith.addf %283, %284 : vector<16x4xf32>
    %286 = tpu.concatenate %282, %285 in 1 : vector<16x4xf32>, vector<16x4xf32> -> vector<16x8xf32>
    %cst_89 = arith.constant 0.000000e+00 : f32
    %287 = vector.broadcast %cst_89 : f32 to vector<16x8xf32>
    %288 = arith.cmpf ogt, %286, %287 : vector<16x8xf32>
    %cst_90 = arith.constant 1.000000e+00 : f32
    %289 = vector.broadcast %cst_90 : f32 to vector<16x8xf32>
    %290 = arith.addf %286, %289 : vector<16x8xf32>
    %cst_91 = arith.constant 0.000000e+00 : f32
    %291 = vector.broadcast %cst_91 : f32 to vector<16x8xf32>
    %292 = arith.minimumf %286, %291 : vector<16x8xf32>
    %293 = math.exp %292 : vector<16x8xf32>
    %294 = arith.select %288, %290, %293 : vector<16x8xi1>, vector<16x8xf32>
    %295 = vector.extract_strided_slice %275 {offsets = [0, 0], sizes = [16, 8], strides = [1, 1]} : vector<16x32xf32> to vector<16x8xf32>
    %296 = vector.extract_strided_slice %295 {offsets = [0, 0], sizes = [16, 4], strides = [1, 1]} : vector<16x8xf32> to vector<16x4xf32>
    %297 = vector.extract_strided_slice %295 {offsets = [0, 4], sizes = [16, 4], strides = [1, 1]} : vector<16x8xf32> to vector<16x4xf32>
    %298 = arith.mulf %296, %8 : vector<16x4xf32>
    %299 = arith.mulf %297, %9 : vector<16x4xf32>
    %300 = arith.subf %298, %299 : vector<16x4xf32>
    %301 = arith.mulf %296, %9 : vector<16x4xf32>
    %302 = arith.mulf %297, %8 : vector<16x4xf32>
    %303 = arith.addf %301, %302 : vector<16x4xf32>
    %304 = tpu.concatenate %300, %303 in 1 : vector<16x4xf32>, vector<16x4xf32> -> vector<16x8xf32>
    %cst_92 = arith.constant 0.000000e+00 : f32
    %305 = vector.broadcast %cst_92 : f32 to vector<16x8xf32>
    %306 = arith.cmpf ogt, %304, %305 : vector<16x8xf32>
    %cst_93 = arith.constant 1.000000e+00 : f32
    %307 = vector.broadcast %cst_93 : f32 to vector<16x8xf32>
    %308 = arith.addf %304, %307 : vector<16x8xf32>
    %cst_94 = arith.constant 0.000000e+00 : f32
    %309 = vector.broadcast %cst_94 : f32 to vector<16x8xf32>
    %310 = arith.minimumf %304, %309 : vector<16x8xf32>
    %311 = math.exp %310 : vector<16x8xf32>
    %312 = arith.select %306, %308, %311 : vector<16x8xi1>, vector<16x8xf32>
    %313 = vector.extract_strided_slice %276 {offsets = [0, 0], sizes = [16, 8], strides = [1, 1]} : vector<16x32xf32> to vector<16x8xf32>
    %cst_95 = arith.constant dense<0.000000e+00> : vector<16x16xf32>
    %314 = tpu.matmul %294, %312, %cst_95 {dimension_numbers = #tpu.dot_dimension_numbers<[1], [1], [0], [0], [0, 0, 1, 0], [], []>} : vector<16x8xf32>, vector<16x8xf32>, vector<16x16xf32> -> vector<16x16xf32>
    %315 = arith.mulf %314, %10 : vector<16x16xf32>
    %cst_96 = arith.constant dense<0.000000e+00> : vector<16xf32>
    %316 = vector.multi_reduction <add>, %315, %cst_96 [1] : vector<16x16xf32> to vector<16xf32>
    %317 = vector.shape_cast %316 : vector<16xf32> to vector<16x1xf32>
    %cst_97 = arith.constant 9.99999993E-9 : f32
    %318 = vector.broadcast %cst_97 : f32 to vector<16x1xf32>
    %319 = arith.addf %317, %318 : vector<16x1xf32>
    %320 = vector.broadcast %319 : vector<16x1xf32> to vector<16x16xf32>
    %321 = arith.divf %315, %320 : vector<16x16xf32>
    %cst_98 = arith.constant dense<0.000000e+00> : vector<16x8xf32>
    %322 = tpu.matmul %321, %313, %cst_98 {dimension_numbers = #tpu.dot_dimension_numbers<[1], [0], [0], [1], [0, 0, 1, 1], [], []>} : vector<16x16xf32>, vector<16x8xf32>, vector<16x8xf32> -> vector<16x8xf32>
    %323 = vector.extract_strided_slice %274 {offsets = [0, 8], sizes = [16, 8], strides = [1, 1]} : vector<16x32xf32> to vector<16x8xf32>
    %324 = vector.extract_strided_slice %323 {offsets = [0, 0], sizes = [16, 4], strides = [1, 1]} : vector<16x8xf32> to vector<16x4xf32>
    %325 = vector.extract_strided_slice %323 {offsets = [0, 4], sizes = [16, 4], strides = [1, 1]} : vector<16x8xf32> to vector<16x4xf32>
    %326 = arith.mulf %324, %8 : vector<16x4xf32>
    %327 = arith.mulf %325, %9 : vector<16x4xf32>
    %328 = arith.subf %326, %327 : vector<16x4xf32>
    %329 = arith.mulf %324, %9 : vector<16x4xf32>
    %330 = arith.mulf %325, %8 : vector<16x4xf32>
    %331 = arith.addf %329, %330 : vector<16x4xf32>
    %332 = tpu.concatenate %328, %331 in 1 : vector<16x4xf32>, vector<16x4xf32> -> vector<16x8xf32>
    %cst_99 = arith.constant 0.000000e+00 : f32
    %333 = vector.broadcast %cst_99 : f32 to vector<16x8xf32>
    %334 = arith.cmpf ogt, %332, %333 : vector<16x8xf32>
    %cst_100 = arith.constant 1.000000e+00 : f32
    %335 = vector.broadcast %cst_100 : f32 to vector<16x8xf32>
    %336 = arith.addf %332, %335 : vector<16x8xf32>
    %cst_101 = arith.constant 0.000000e+00 : f32
    %337 = vector.broadcast %cst_101 : f32 to vector<16x8xf32>
    %338 = arith.minimumf %332, %337 : vector<16x8xf32>
    %339 = math.exp %338 : vector<16x8xf32>
    %340 = arith.select %334, %336, %339 : vector<16x8xi1>, vector<16x8xf32>
    %341 = vector.extract_strided_slice %275 {offsets = [0, 8], sizes = [16, 8], strides = [1, 1]} : vector<16x32xf32> to vector<16x8xf32>
    %342 = vector.extract_strided_slice %341 {offsets = [0, 0], sizes = [16, 4], strides = [1, 1]} : vector<16x8xf32> to vector<16x4xf32>
    %343 = vector.extract_strided_slice %341 {offsets = [0, 4], sizes = [16, 4], strides = [1, 1]} : vector<16x8xf32> to vector<16x4xf32>
    %344 = arith.mulf %342, %8 : vector<16x4xf32>
    %345 = arith.mulf %343, %9 : vector<16x4xf32>
    %346 = arith.subf %344, %345 : vector<16x4xf32>
    %347 = arith.mulf %342, %9 : vector<16x4xf32>
    %348 = arith.mulf %343, %8 : vector<16x4xf32>
    %349 = arith.addf %347, %348 : vector<16x4xf32>
    %350 = tpu.concatenate %346, %349 in 1 : vector<16x4xf32>, vector<16x4xf32> -> vector<16x8xf32>
    %cst_102 = arith.constant 0.000000e+00 : f32
    %351 = vector.broadcast %cst_102 : f32 to vector<16x8xf32>
    %352 = arith.cmpf ogt, %350, %351 : vector<16x8xf32>
    %cst_103 = arith.constant 1.000000e+00 : f32
    %353 = vector.broadcast %cst_103 : f32 to vector<16x8xf32>
    %354 = arith.addf %350, %353 : vector<16x8xf32>
    %cst_104 = arith.constant 0.000000e+00 : f32
    %355 = vector.broadcast %cst_104 : f32 to vector<16x8xf32>
    %356 = arith.minimumf %350, %355 : vector<16x8xf32>
    %357 = math.exp %356 : vector<16x8xf32>
    %358 = arith.select %352, %354, %357 : vector<16x8xi1>, vector<16x8xf32>
    %359 = vector.extract_strided_slice %276 {offsets = [0, 8], sizes = [16, 8], strides = [1, 1]} : vector<16x32xf32> to vector<16x8xf32>
    %cst_105 = arith.constant dense<0.000000e+00> : vector<16x16xf32>
    %360 = tpu.matmul %340, %358, %cst_105 {dimension_numbers = #tpu.dot_dimension_numbers<[1], [1], [0], [0], [0, 0, 1, 0], [], []>} : vector<16x8xf32>, vector<16x8xf32>, vector<16x16xf32> -> vector<16x16xf32>
    %361 = arith.mulf %360, %10 : vector<16x16xf32>
    %cst_106 = arith.constant dense<0.000000e+00> : vector<16xf32>
    %362 = vector.multi_reduction <add>, %361, %cst_106 [1] : vector<16x16xf32> to vector<16xf32>
    %363 = vector.shape_cast %362 : vector<16xf32> to vector<16x1xf32>
    %cst_107 = arith.constant 9.99999993E-9 : f32
    %364 = vector.broadcast %cst_107 : f32 to vector<16x1xf32>
    %365 = arith.addf %363, %364 : vector<16x1xf32>
    %366 = vector.broadcast %365 : vector<16x1xf32> to vector<16x16xf32>
    %367 = arith.divf %361, %366 : vector<16x16xf32>
    %cst_108 = arith.constant dense<0.000000e+00> : vector<16x8xf32>
    %368 = tpu.matmul %367, %359, %cst_108 {dimension_numbers = #tpu.dot_dimension_numbers<[1], [0], [0], [1], [0, 0, 1, 1], [], []>} : vector<16x16xf32>, vector<16x8xf32>, vector<16x8xf32> -> vector<16x8xf32>
    %369 = vector.extract_strided_slice %274 {offsets = [0, 16], sizes = [16, 8], strides = [1, 1]} : vector<16x32xf32> to vector<16x8xf32>
    %370 = vector.extract_strided_slice %369 {offsets = [0, 0], sizes = [16, 4], strides = [1, 1]} : vector<16x8xf32> to vector<16x4xf32>
    %371 = vector.extract_strided_slice %369 {offsets = [0, 4], sizes = [16, 4], strides = [1, 1]} : vector<16x8xf32> to vector<16x4xf32>
    %372 = arith.mulf %370, %8 : vector<16x4xf32>
    %373 = arith.mulf %371, %9 : vector<16x4xf32>
    %374 = arith.subf %372, %373 : vector<16x4xf32>
    %375 = arith.mulf %370, %9 : vector<16x4xf32>
    %376 = arith.mulf %371, %8 : vector<16x4xf32>
    %377 = arith.addf %375, %376 : vector<16x4xf32>
    %378 = tpu.concatenate %374, %377 in 1 : vector<16x4xf32>, vector<16x4xf32> -> vector<16x8xf32>
    %cst_109 = arith.constant 0.000000e+00 : f32
    %379 = vector.broadcast %cst_109 : f32 to vector<16x8xf32>
    %380 = arith.cmpf ogt, %378, %379 : vector<16x8xf32>
    %cst_110 = arith.constant 1.000000e+00 : f32
    %381 = vector.broadcast %cst_110 : f32 to vector<16x8xf32>
    %382 = arith.addf %378, %381 : vector<16x8xf32>
    %cst_111 = arith.constant 0.000000e+00 : f32
    %383 = vector.broadcast %cst_111 : f32 to vector<16x8xf32>
    %384 = arith.minimumf %378, %383 : vector<16x8xf32>
    %385 = math.exp %384 : vector<16x8xf32>
    %386 = arith.select %380, %382, %385 : vector<16x8xi1>, vector<16x8xf32>
    %387 = vector.extract_strided_slice %275 {offsets = [0, 16], sizes = [16, 8], strides = [1, 1]} : vector<16x32xf32> to vector<16x8xf32>
    %388 = vector.extract_strided_slice %387 {offsets = [0, 0], sizes = [16, 4], strides = [1, 1]} : vector<16x8xf32> to vector<16x4xf32>
    %389 = vector.extract_strided_slice %387 {offsets = [0, 4], sizes = [16, 4], strides = [1, 1]} : vector<16x8xf32> to vector<16x4xf32>
    %390 = arith.mulf %388, %8 : vector<16x4xf32>
    %391 = arith.mulf %389, %9 : vector<16x4xf32>
    %392 = arith.subf %390, %391 : vector<16x4xf32>
    %393 = arith.mulf %388, %9 : vector<16x4xf32>
    %394 = arith.mulf %389, %8 : vector<16x4xf32>
    %395 = arith.addf %393, %394 : vector<16x4xf32>
    %396 = tpu.concatenate %392, %395 in 1 : vector<16x4xf32>, vector<16x4xf32> -> vector<16x8xf32>
    %cst_112 = arith.constant 0.000000e+00 : f32
    %397 = vector.broadcast %cst_112 : f32 to vector<16x8xf32>
    %398 = arith.cmpf ogt, %396, %397 : vector<16x8xf32>
    %cst_113 = arith.constant 1.000000e+00 : f32
    %399 = vector.broadcast %cst_113 : f32 to vector<16x8xf32>
    %400 = arith.addf %396, %399 : vector<16x8xf32>
    %cst_114 = arith.constant 0.000000e+00 : f32
    %401 = vector.broadcast %cst_114 : f32 to vector<16x8xf32>
    %402 = arith.minimumf %396, %401 : vector<16x8xf32>
    %403 = math.exp %402 : vector<16x8xf32>
    %404 = arith.select %398, %400, %403 : vector<16x8xi1>, vector<16x8xf32>
    %405 = vector.extract_strided_slice %276 {offsets = [0, 16], sizes = [16, 8], strides = [1, 1]} : vector<16x32xf32> to vector<16x8xf32>
    %cst_115 = arith.constant dense<0.000000e+00> : vector<16x16xf32>
    %406 = tpu.matmul %386, %404, %cst_115 {dimension_numbers = #tpu.dot_dimension_numbers<[1], [1], [0], [0], [0, 0, 1, 0], [], []>} : vector<16x8xf32>, vector<16x8xf32>, vector<16x16xf32> -> vector<16x16xf32>
    %407 = arith.mulf %406, %10 : vector<16x16xf32>
    %cst_116 = arith.constant dense<0.000000e+00> : vector<16xf32>
    %408 = vector.multi_reduction <add>, %407, %cst_116 [1] : vector<16x16xf32> to vector<16xf32>
    %409 = vector.shape_cast %408 : vector<16xf32> to vector<16x1xf32>
    %cst_117 = arith.constant 9.99999993E-9 : f32
    %410 = vector.broadcast %cst_117 : f32 to vector<16x1xf32>
    %411 = arith.addf %409, %410 : vector<16x1xf32>
    %412 = vector.broadcast %411 : vector<16x1xf32> to vector<16x16xf32>
    %413 = arith.divf %407, %412 : vector<16x16xf32>
    %cst_118 = arith.constant dense<0.000000e+00> : vector<16x8xf32>
    %414 = tpu.matmul %413, %405, %cst_118 {dimension_numbers = #tpu.dot_dimension_numbers<[1], [0], [0], [1], [0, 0, 1, 1], [], []>} : vector<16x16xf32>, vector<16x8xf32>, vector<16x8xf32> -> vector<16x8xf32>
    %415 = vector.extract_strided_slice %274 {offsets = [0, 24], sizes = [16, 8], strides = [1, 1]} : vector<16x32xf32> to vector<16x8xf32>
    %416 = vector.extract_strided_slice %415 {offsets = [0, 0], sizes = [16, 4], strides = [1, 1]} : vector<16x8xf32> to vector<16x4xf32>
    %417 = vector.extract_strided_slice %415 {offsets = [0, 4], sizes = [16, 4], strides = [1, 1]} : vector<16x8xf32> to vector<16x4xf32>
    %418 = arith.mulf %416, %8 : vector<16x4xf32>
    %419 = arith.mulf %417, %9 : vector<16x4xf32>
    %420 = arith.subf %418, %419 : vector<16x4xf32>
    %421 = arith.mulf %416, %9 : vector<16x4xf32>
    %422 = arith.mulf %417, %8 : vector<16x4xf32>
    %423 = arith.addf %421, %422 : vector<16x4xf32>
    %424 = tpu.concatenate %420, %423 in 1 : vector<16x4xf32>, vector<16x4xf32> -> vector<16x8xf32>
    %cst_119 = arith.constant 0.000000e+00 : f32
    %425 = vector.broadcast %cst_119 : f32 to vector<16x8xf32>
    %426 = arith.cmpf ogt, %424, %425 : vector<16x8xf32>
    %cst_120 = arith.constant 1.000000e+00 : f32
    %427 = vector.broadcast %cst_120 : f32 to vector<16x8xf32>
    %428 = arith.addf %424, %427 : vector<16x8xf32>
    %cst_121 = arith.constant 0.000000e+00 : f32
    %429 = vector.broadcast %cst_121 : f32 to vector<16x8xf32>
    %430 = arith.minimumf %424, %429 : vector<16x8xf32>
    %431 = math.exp %430 : vector<16x8xf32>
    %432 = arith.select %426, %428, %431 : vector<16x8xi1>, vector<16x8xf32>
    %433 = vector.extract_strided_slice %275 {offsets = [0, 24], sizes = [16, 8], strides = [1, 1]} : vector<16x32xf32> to vector<16x8xf32>
    %434 = vector.extract_strided_slice %433 {offsets = [0, 0], sizes = [16, 4], strides = [1, 1]} : vector<16x8xf32> to vector<16x4xf32>
    %435 = vector.extract_strided_slice %433 {offsets = [0, 4], sizes = [16, 4], strides = [1, 1]} : vector<16x8xf32> to vector<16x4xf32>
    %436 = arith.mulf %434, %8 : vector<16x4xf32>
    %437 = arith.mulf %435, %9 : vector<16x4xf32>
    %438 = arith.subf %436, %437 : vector<16x4xf32>
    %439 = arith.mulf %434, %9 : vector<16x4xf32>
    %440 = arith.mulf %435, %8 : vector<16x4xf32>
    %441 = arith.addf %439, %440 : vector<16x4xf32>
    %442 = tpu.concatenate %438, %441 in 1 : vector<16x4xf32>, vector<16x4xf32> -> vector<16x8xf32>
    %cst_122 = arith.constant 0.000000e+00 : f32
    %443 = vector.broadcast %cst_122 : f32 to vector<16x8xf32>
    %444 = arith.cmpf ogt, %442, %443 : vector<16x8xf32>
    %cst_123 = arith.constant 1.000000e+00 : f32
    %445 = vector.broadcast %cst_123 : f32 to vector<16x8xf32>
    %446 = arith.addf %442, %445 : vector<16x8xf32>
    %cst_124 = arith.constant 0.000000e+00 : f32
    %447 = vector.broadcast %cst_124 : f32 to vector<16x8xf32>
    %448 = arith.minimumf %442, %447 : vector<16x8xf32>
    %449 = math.exp %448 : vector<16x8xf32>
    %450 = arith.select %444, %446, %449 : vector<16x8xi1>, vector<16x8xf32>
    %451 = vector.extract_strided_slice %276 {offsets = [0, 24], sizes = [16, 8], strides = [1, 1]} : vector<16x32xf32> to vector<16x8xf32>
    %cst_125 = arith.constant dense<0.000000e+00> : vector<16x16xf32>
    %452 = tpu.matmul %432, %450, %cst_125 {dimension_numbers = #tpu.dot_dimension_numbers<[1], [1], [0], [0], [0, 0, 1, 0], [], []>} : vector<16x8xf32>, vector<16x8xf32>, vector<16x16xf32> -> vector<16x16xf32>
    %453 = arith.mulf %452, %10 : vector<16x16xf32>
    %cst_126 = arith.constant dense<0.000000e+00> : vector<16xf32>
    %454 = vector.multi_reduction <add>, %453, %cst_126 [1] : vector<16x16xf32> to vector<16xf32>
    %455 = vector.shape_cast %454 : vector<16xf32> to vector<16x1xf32>
    %cst_127 = arith.constant 9.99999993E-9 : f32
    %456 = vector.broadcast %cst_127 : f32 to vector<16x1xf32>
    %457 = arith.addf %455, %456 : vector<16x1xf32>
    %458 = vector.broadcast %457 : vector<16x1xf32> to vector<16x16xf32>
    %459 = arith.divf %453, %458 : vector<16x16xf32>
    %cst_128 = arith.constant dense<0.000000e+00> : vector<16x8xf32>
    %460 = tpu.matmul %459, %451, %cst_128 {dimension_numbers = #tpu.dot_dimension_numbers<[1], [0], [0], [1], [0, 0, 1, 1], [], []>} : vector<16x16xf32>, vector<16x8xf32>, vector<16x8xf32> -> vector<16x8xf32>
    %461 = tpu.concatenate %322, %368, %414, %460 in 1 : vector<16x8xf32>, vector<16x8xf32>, vector<16x8xf32>, vector<16x8xf32> -> vector<16x32xf32>
    %462 = arith.truncf %461 : vector<16x32xf32> to vector<16x32xbf16>
    %c1_129 = arith.constant 1 : index
    %c0_130 = arith.constant 0 : index
    %c0_131 = arith.constant 0 : index
    %463 = vector.load %arg8[%c1_129, %c0_130, %c0_131] : memref<2x32x32xbf16, #tpu.memory_space<vmem>>, vector<1x32x32xbf16>
    %464 = vector.shape_cast %463 : vector<1x32x32xbf16> to vector<32x32xbf16>
    %cst_132 = arith.constant dense<0.000000e+00> : vector<16x32xf32>
    %465 = tpu.matmul %462, %464, %cst_132 {dimension_numbers = #tpu.dot_dimension_numbers<[1], [0], [0], [1], [0, 0, 1, 1], [], []>} : vector<16x32xbf16>, vector<32x32xbf16>, vector<16x32xf32> -> vector<16x32xf32>
    %466 = arith.addf %255, %465 : vector<16x32xf32>
    %c1_133 = arith.constant 1 : index
    %c0_134 = arith.constant 0 : index
    %c0_135 = arith.constant 0 : index
    %467 = vector.load %arg9[%c1_133, %c0_134, %c0_135] : memref<2x1x32xf32, #tpu.memory_space<vmem>>, vector<1x1x32xf32>
    %468 = vector.shape_cast %467 : vector<1x1x32xf32> to vector<1x32xf32>
    %469 = arith.mulf %466, %466 : vector<16x32xf32>
    %cst_136 = arith.constant dense<0.000000e+00> : vector<16xf32>
    %470 = vector.multi_reduction <add>, %469, %cst_136 [1] : vector<16x32xf32> to vector<16xf32>
    %471 = vector.shape_cast %470 : vector<16xf32> to vector<16x1xf32>
    %cst_137 = arith.constant 3.200000e+01 : f32
    %472 = vector.broadcast %cst_137 : f32 to vector<16x1xf32>
    %473 = arith.divf %471, %472 : vector<16x1xf32>
    %cst_138 = arith.constant 9.99999974E-6 : f32
    %474 = vector.broadcast %cst_138 : f32 to vector<16x1xf32>
    %475 = arith.addf %473, %474 : vector<16x1xf32>
    %476 = math.rsqrt %475 : vector<16x1xf32>
    %477 = vector.broadcast %476 : vector<16x1xf32> to vector<16x32xf32>
    %478 = arith.mulf %466, %477 : vector<16x32xf32>
    %479 = vector.broadcast %468 : vector<1x32xf32> to vector<16x32xf32>
    %480 = arith.mulf %478, %479 : vector<16x32xf32>
    %481 = arith.truncf %480 : vector<16x32xf32> to vector<16x32xbf16>
    %c1_139 = arith.constant 1 : index
    %c0_140 = arith.constant 0 : index
    %c0_141 = arith.constant 0 : index
    %482 = vector.load %arg10[%c1_139, %c0_140, %c0_141] : memref<2x32x128xbf16, #tpu.memory_space<vmem>>, vector<1x32x128xbf16>
    %483 = vector.shape_cast %482 : vector<1x32x128xbf16> to vector<32x128xbf16>
    %cst_142 = arith.constant dense<0.000000e+00> : vector<16x128xf32>
    %484 = tpu.matmul %481, %483, %cst_142 {dimension_numbers = #tpu.dot_dimension_numbers<[1], [0], [0], [1], [0, 0, 1, 1], [], []>} : vector<16x32xbf16>, vector<32x128xbf16>, vector<16x128xf32> -> vector<16x128xf32>
    %485 = vector.extract_strided_slice %484 {offsets = [0, 0], sizes = [16, 64], strides = [1, 1]} : vector<16x128xf32> to vector<16x64xf32>
    %486 = vector.extract_strided_slice %484 {offsets = [0, 64], sizes = [16, 64], strides = [1, 1]} : vector<16x128xf32> to vector<16x64xf32>
    %cst_143 = arith.constant 0.000000e+00 : f32
    %487 = vector.broadcast %cst_143 : f32 to vector<16x64xf32>
    %488 = arith.subf %487, %485 : vector<16x64xf32>
    %489 = math.exp %488 : vector<16x64xf32>
    %cst_144 = arith.constant 1.000000e+00 : f32
    %490 = vector.broadcast %cst_144 : f32 to vector<16x64xf32>
    %491 = arith.addf %490, %489 : vector<16x64xf32>
    %cst_145 = arith.constant 1.000000e+00 : f32
    %492 = vector.broadcast %cst_145 : f32 to vector<16x64xf32>
    %493 = arith.divf %492, %491 : vector<16x64xf32>
    %494 = arith.mulf %485, %493 : vector<16x64xf32>
    %495 = arith.mulf %494, %486 : vector<16x64xf32>
    %496 = arith.truncf %495 : vector<16x64xf32> to vector<16x64xbf16>
    %c1_146 = arith.constant 1 : index
    %c0_147 = arith.constant 0 : index
    %c0_148 = arith.constant 0 : index
    %497 = vector.load %arg11[%c1_146, %c0_147, %c0_148] : memref<2x64x32xbf16, #tpu.memory_space<vmem>>, vector<1x64x32xbf16>
    %498 = vector.shape_cast %497 : vector<1x64x32xbf16> to vector<64x32xbf16>
    %cst_149 = arith.constant dense<0.000000e+00> : vector<16x32xf32>
    %499 = tpu.matmul %496, %498, %cst_149 {dimension_numbers = #tpu.dot_dimension_numbers<[1], [0], [0], [1], [0, 0, 1, 1], [], []>} : vector<16x64xbf16>, vector<64x32xbf16>, vector<16x32xf32> -> vector<16x32xf32>
    %500 = arith.addf %466, %499 : vector<16x32xf32>
    %c0_150 = arith.constant 0 : index
    %c0_151 = arith.constant 0 : index
    %501 = vector.load %arg12[%c0_150, %c0_151] : memref<1x32xf32, #tpu.memory_space<vmem>>, vector<1x32xf32>
    %502 = arith.mulf %500, %500 : vector<16x32xf32>
    %cst_152 = arith.constant dense<0.000000e+00> : vector<16xf32>
    %503 = vector.multi_reduction <add>, %502, %cst_152 [1] : vector<16x32xf32> to vector<16xf32>
    %504 = vector.shape_cast %503 : vector<16xf32> to vector<16x1xf32>
    %cst_153 = arith.constant 3.200000e+01 : f32
    %505 = vector.broadcast %cst_153 : f32 to vector<16x1xf32>
    %506 = arith.divf %504, %505 : vector<16x1xf32>
    %cst_154 = arith.constant 9.99999974E-6 : f32
    %507 = vector.broadcast %cst_154 : f32 to vector<16x1xf32>
    %508 = arith.addf %506, %507 : vector<16x1xf32>
    %509 = math.rsqrt %508 : vector<16x1xf32>
    %510 = vector.broadcast %509 : vector<16x1xf32> to vector<16x32xf32>
    %511 = arith.mulf %500, %510 : vector<16x32xf32>
    %512 = vector.broadcast %501 : vector<1x32xf32> to vector<16x32xf32>
    %513 = arith.mulf %511, %512 : vector<16x32xf32>
    %514 = arith.truncf %513 : vector<16x32xf32> to vector<16x32xbf16>
    %c0_155 = arith.constant 0 : index
    %c0_156 = arith.constant 0 : index
    %515 = vector.load %arg13[%c0_155, %c0_156] : memref<32x128xbf16, #tpu.memory_space<vmem>>, vector<32x128xbf16>
    %cst_157 = arith.constant dense<0.000000e+00> : vector<16x128xf32>
    %516 = tpu.matmul %514, %515, %cst_157 {dimension_numbers = #tpu.dot_dimension_numbers<[1], [0], [0], [1], [0, 0, 1, 1], [], []>} : vector<16x32xbf16>, vector<32x128xbf16>, vector<16x128xf32> -> vector<16x128xf32>
    %c0_158 = arith.constant 0 : index
    %c0_159 = arith.constant 0 : index
    %517 = vector.load %arg14[%c0_158, %c0_159] : memref<16x128xf32, #tpu.memory_space<vmem>>, vector<16x128xf32>
    tpu.vector_store %arg14[%c0_158, %c0_159], %516 {strides = array<i32>} : memref<16x128xf32, #tpu.memory_space<vmem>>, vector<16x128xf32>,
    return
  }
  func.func @transform_0(%arg0: i32) -> (i32, i32) {
    %c0_i32 = arith.constant 0 : i32
    %c0_i32_0 = arith.constant 0 : i32
    %c0_i32_1 = arith.constant 0 : i32
    return %c0_i32, %c0_i32_0 : i32, i32
  }
  func.func @transform_1(%arg0: i32) -> (i32, i32) {
    %c0_i32 = arith.constant 0 : i32
    %c0_i32_0 = arith.constant 0 : i32
    %c0_i32_1 = arith.constant 0 : i32
    return %c0_i32, %c0_i32_0 : i32, i32
  }
  func.func @transform_2(%arg0: i32) -> (i32, i32) {
    %c0_i32 = arith.constant 0 : i32
    %c0_i32_0 = arith.constant 0 : i32
    %c0_i32_1 = arith.constant 0 : i32
    return %c0_i32, %c0_i32_0 : i32, i32
  }
  func.func @transform_3(%arg0: i32) -> (i32, i32) {
    %c0_i32 = arith.constant 0 : i32
    %c0_i32_0 = arith.constant 0 : i32
    %c0_i32_1 = arith.constant 0 : i32
    return %c0_i32, %c0_i32_0 : i32, i32
  }
  func.func @transform_4(%arg0: i32) -> (i32, i32) {
    %c0_i32 = arith.constant 0 : i32
    %c0_i32_0 = arith.constant 0 : i32
    %c0_i32_1 = arith.constant 0 : i32
    return %c0_i32, %c0_i32_0 : i32, i32
  }
  func.func @transform_5(%arg0: i32) -> (i32, i32, i32) {
    %c0_i32 = arith.constant 0 : i32
    %c0_i32_0 = arith.constant 0 : i32
    %c0_i32_1 = arith.constant 0 : i32
    %c0_i32_2 = arith.constant 0 : i32
    return %c0_i32, %c0_i32_0, %c0_i32_1 : i32, i32, i32
  }
  func.func @transform_6(%arg0: i32) -> (i32, i32, i32) {
    %c0_i32 = arith.constant 0 : i32
    %c0_i32_0 = arith.constant 0 : i32
    %c0_i32_1 = arith.constant 0 : i32
    %c0_i32_2 = arith.constant 0 : i32
    return %c0_i32, %c0_i32_0, %c0_i32_1 : i32, i32, i32
  }
  func.func @transform_7(%arg0: i32) -> (i32, i32, i32) {
    %c0_i32 = arith.constant 0 : i32
    %c0_i32_0 = arith.constant 0 : i32
    %c0_i32_1 = arith.constant 0 : i32
    %c0_i32_2 = arith.constant 0 : i32
    return %c0_i32, %c0_i32_0, %c0_i32_1 : i32, i32, i32
  }
  func.func @transform_8(%arg0: i32) -> (i32, i32, i32) {
    %c0_i32 = arith.constant 0 : i32
    %c0_i32_0 = arith.constant 0 : i32
    %c0_i32_1 = arith.constant 0 : i32
    %c0_i32_2 = arith.constant 0 : i32
    return %c0_i32, %c0_i32_0, %c0_i32_1 : i32, i32, i32
  }
  func.func @transform_9(%arg0: i32) -> (i32, i32, i32) {
    %c0_i32 = arith.constant 0 : i32
    %c0_i32_0 = arith.constant 0 : i32
    %c0_i32_1 = arith.constant 0 : i32
    %c0_i32_2 = arith.constant 0 : i32
    return %c0_i32, %c0_i32_0, %c0_i32_1 : i32, i32, i32
  }
  func.func @transform_10(%arg0: i32) -> (i32, i32, i32) {
    %c0_i32 = arith.constant 0 : i32
    %c0_i32_0 = arith.constant 0 : i32
    %c0_i32_1 = arith.constant 0 : i32
    %c0_i32_2 = arith.constant 0 : i32
    return %c0_i32, %c0_i32_0, %c0_i32_1 : i32, i32, i32
  }
  func.func @transform_11(%arg0: i32) -> (i32, i32) {
    %c0_i32 = arith.constant 0 : i32
    %c0_i32_0 = arith.constant 0 : i32
    %c0_i32_1 = arith.constant 0 : i32
    return %c0_i32, %c0_i32_0 : i32, i32
  }
  func.func @transform_12(%arg0: i32) -> (i32, i32) {
    %c0_i32 = arith.constant 0 : i32
    %c0_i32_0 = arith.constant 0 : i32
    %c0_i32_1 = arith.constant 0 : i32
    return %c0_i32, %c0_i32_0 : i32, i32
  }
  func.func @transform_13(%arg0: i32) -> (i32, i32) {
    %c0_i32 = arith.constant 0 : i32
    %c0_i32_0 = arith.constant 0 : i32
    %c0_i32_1 = arith.constant 0 : i32
    return %c0_i32, %c0_i32_0 : i32, i32
  }
}

</mosaic_0001>

<llo_original>
// kernel: gpt_forward.1
$region0: #{gpt_forward.1}
  #allocation0 [shape = 'u32[]', space=smem, size = 0x4, offset = 0x4, fixed_abs, tag = 'smem constant byte address 0x4 - core index']
  #allocation1 [shape = 'u32[144,128]{1,0:T(1,128)}', space=vmem, size = 0x12000, scoped, tag = 'internal scratch']
  %s0 = inlined_call_operand.vmem [shape: s32[16,1], index: 0, kind: input, shape index: {}]
  %s1 = inlined_call_operand.vmem [shape: f32[64,32], index: 1, kind: input, shape index: {}]
  %s2 = inlined_call_operand.vmem [shape: f32[16,4], index: 2, kind: input, shape index: {}]
  %s3 = inlined_call_operand.vmem [shape: f32[16,4], index: 3, kind: input, shape index: {}]
  %s4 = inlined_call_operand.vmem [shape: f32[16,16], index: 4, kind: input, shape index: {}]
  %s5 = inlined_call_operand.vmem [shape: f32[2,1,32], index: 5, kind: input, shape index: {}]
  %s6 = inlined_call_operand.vmem [shape: bf16[2,32,96], index: 6, kind: input, shape index: {}]
  %s7 = inlined_call_operand.vmem [shape: bf16[2,32,32], index: 7, kind: input, shape index: {}]
  %s8 = inlined_call_operand.vmem [shape: f32[2,1,32], index: 8, kind: input, shape index: {}]
  %s9 = inlined_call_operand.vmem [shape: bf16[2,32,128], index: 9, kind: input, shape index: {}]
  %s10 = inlined_call_operand.vmem [shape: bf16[2,64,32], index: 10, kind: input, shape index: {}]
  %s11 = inlined_call_operand.vmem [shape: f32[1,32], index: 11, kind: input, shape index: {}]
  %s12 = inlined_call_operand.vmem [shape: bf16[32,128], index: 12, kind: input, shape index: {}]
  %s13 = inlined_call_operand.vmem [shape: f32[16,128], index: 13, kind: output, shape index: {}]
  %s14 = sld [smem:[#allocation0]]
  $region62: #{gpt_forward.1} parent=0
    _
  %s16 = ssub.s32 1, %s14
  %s17 = scalar_select 0, %s16, %s14
  // Predicated region
  $region2: #{gpt_forward.1} parent=0 // pred_check
    _
  $region3: #{gpt_forward.1} parent=0 // pred_check_branch
    %19 = sbr.rel (0) target = $region5
  $region4: #{gpt_forward.1} parent=0 // pred_region
    _
  $region5: #{gpt_forward.1} parent=0 // pred_fallthru
    _
  // Predicated region
  $region6: #{gpt_forward.1} parent=0 // pred_check
    _
  $region7: #{gpt_forward.1} parent=0 // pred_check_branch
    %21 = sbr.rel (0) target = $region9
  $region8: #{gpt_forward.1} parent=0 // pred_region
    _
  $region9: #{gpt_forward.1} parent=0 // pred_fallthru
    _
  // Predicated region
  $region10: #{gpt_forward.1} parent=0 // pred_check
    _
  $region11: #{gpt_forward.1} parent=0 // pred_check_branch
    %23 = sbr.rel (0) target = $region13
  $region12: #{gpt_forward.1} parent=0 // pred_region
    _
  $region13: #{gpt_forward.1} parent=0 // pred_fallthru
    _
  // Predicated region
  $region14: #{gpt_forward.1} parent=0 // pred_check
    _
  $region15: #{gpt_forward.1} parent=0 // pred_check_branch
    %25 = sbr.rel (0) target = $region17
  $region16: #{gpt_forward.1} parent=0 // pred_region
    _
  $region17: #{gpt_forward.1} parent=0 // pred_fallthru
    _
  // Predicated region
  $region18: #{gpt_forward.1} parent=0 // pred_check
    _
  $region19: #{gpt_forward.1} parent=0 // pred_check_branch
    %27 = sbr.rel (0) target = $region21
  $region20: #{gpt_forward.1} parent=0 // pred_region
    _
  $region21: #{gpt_forward.1} parent=0 // pred_fallthru
    _
  // Predicated region
  $region22: #{gpt_forward.1} parent=0 // pred_check
    _
  $region23: #{gpt_forward.1} parent=0 // pred_check_branch
    %29 = sbr.rel (0) target = $region25
  $region24: #{gpt_forward.1} parent=0 // pred_region
    _
  $region25: #{gpt_forward.1} parent=0 // pred_fallthru
    _
  // Predicated region
  $region26: #{gpt_forward.1} parent=0 // pred_check
    _
  $region27: #{gpt_forward.1} parent=0 // pred_check_branch
    %31 = sbr.rel (0) target = $region29
  $region28: #{gpt_forward.1} parent=0 // pred_region
    _
  $region29: #{gpt_forward.1} parent=0 // pred_fallthru
    _
  // Predicated region
  $region30: #{gpt_forward.1} parent=0 // pred_check
    _
  $region31: #{gpt_forward.1} parent=0 // pred_check_branch
    %33 = sbr.rel (0) target = $region33
  $region32: #{gpt_forward.1} parent=0 // pred_region
    _
  $region33: #{gpt_forward.1} parent=0 // pred_fallthru
    _
  // Predicated region
  $region34: #{gpt_forward.1} parent=0 // pred_check
    _
  $region35: #{gpt_forward.1} parent=0 // pred_check_branch
    %35 = sbr.rel (0) target = $region37
  $region36: #{gpt_forward.1} parent=0 // pred_region
    _
  $region37: #{gpt_forward.1} parent=0 // pred_fallthru
    _
  // Predicated region
  $region38: #{gpt_forward.1} parent=0 // pred_check
    _
  $region39: #{gpt_forward.1} parent=0 // pred_check_branch
    %37 = sbr.rel (0) target = $region41
  $region40: #{gpt_forward.1} parent=0 // pred_region
    _
  $region41: #{gpt_forward.1} parent=0 // pred_fallthru
    _
  // Predicated region
  $region42: #{gpt_forward.1} parent=0 // pred_check
    _
  $region43: #{gpt_forward.1} parent=0 // pred_check_branch
    %39 = sbr.rel (0) target = $region45
  $region44: #{gpt_forward.1} parent=0 // pred_region
    _
  $region45: #{gpt_forward.1} parent=0 // pred_fallthru
    _
  // Predicated region
  $region46: #{gpt_forward.1} parent=0 // pred_check
    _
  $region47: #{gpt_forward.1} parent=0 // pred_check_branch
    %41 = sbr.rel (0) target = $region49
  $region48: #{gpt_forward.1} parent=0 // pred_region
    _
  $region49: #{gpt_forward.1} parent=0 // pred_fallthru
    _
  // Predicated region
  $region50: #{gpt_forward.1} parent=0 // pred_check
    _
  $region51: #{gpt_forward.1} parent=0 // pred_check_branch
    %43 = sbr.rel (0) target = $region53
  $region52: #{gpt_forward.1} parent=0 // pred_region
    _
  $region53: #{gpt_forward.1} parent=0 // pred_fallthru
    _
  %v45 = vlaneseq
  %v46 = vand.u32 %v45, 127
  %v47 = vld [vmem:[%s0] sm:$0xff]
  %v48 = vld [vmem:[%s0 + $0x8] sm:$0xff]
  %49 = vset.pattern.permute.xlu0 0
  %50 = vperm.xlu0 %49, %v47
  %v51 = vpop.permute.xlu0 %50
  %52 = vset.pattern.permute.xlu0 0
  %53 = vperm.xlu0 %52, %v48
  %v54 = vpop.permute.xlu0 %53
  %vm55 = vcmp.eq.s32.totalorder %v46, %v51
  %vm56 = vcmp.eq.s32.totalorder %v46, %v54
  %v57 = vsel %vm55, 1, 0
  %v58 = vsel %vm56, 1, 0
  %v59 = vcvt.s32.f32 %v57
  %v60 = vcvt.s32.f32 %v58
  %v61 = vld [vmem:[%s1] sm:$0xff]
  %v62 = vld [vmem:[%s1 + $0x8] sm:$0xff]
  %v63 = vld [vmem:[%s1 + $0x10] sm:$0xff]
  %v64 = vld [vmem:[%s1 + $0x18] sm:$0xff]
  %v65 = vld [vmem:[%s1 + $0x20] sm:$0xff]
  %v66 = vld [vmem:[%s1 + $0x28] sm:$0xff]
  %v67 = vld [vmem:[%s1 + $0x30] sm:$0xff]
  %v68 = vld [vmem:[%s1 + $0x38] sm:$0xff]
  %vm69 = vcmask 523264
  %v71 = vsel %vm69, %v59, 0
  %v74 = vsel %vm69, %v60, 0
  %76 = vmatprep.subr.mxu0 0.0
  %77 = vmatpush1.msra.mxu0 0.0
  %78 = vmatprep.subr.mxu0 0.0
  %79 = vmatpush1.msra.mxu0 0.0
  %80 = vmatprep.subr.mxu0 0.0
  %81 = vmatpush1.msra.mxu0 0.0
  %82 = vmatprep.subr.mxu0 0.0
  %83 = vmatpush1.msra.mxu0 0.0
  %84 = vmatprep.subr.mxu0 0.0
  %85 = vmatpush1.msra.mxu0 0.0
  %86 = vmatprep.subr.mxu0 0.0
  %87 = vmatpush1.msra.mxu0 0.0
  %88 = vmatprep.subr.mxu0 0.0
  %89 = vmatpush1.msra.mxu0 0.0
  %90 = vmatprep.subr.mxu0 0.0
  %91 = vmatpush1.msra.mxu0 0.0
  %92 = vmatprep.subr.mxu0 0.0
  %93 = vmatpush1.msra.mxu0 %v68
  %94 = vmatprep.subr.mxu0 0.0
  %95 = vmatpush1.msra.mxu0 %v67
  %96 = vmatprep.subr.mxu0 0.0
  %97 = vmatpush1.msra.mxu0 %v66
  %98 = vmatprep.subr.mxu0 0.0
  %99 = vmatpush1.msra.mxu0 %v65
  %100 = vmatprep.subr.mxu0 0.0
  %101 = vmatpush1.msra.mxu0 %v64
  %102 = vmatprep.subr.mxu0 0.0
  %103 = vmatpush1.msra.mxu0 %v63
  %104 = vmatprep.subr.mxu0 0.0
  %105 = vmatpush1.msra.mxu0 %v62
  %106 = vmatprep.subr.mxu0 0.0
  %107 = vmatpush1.msra.mxu0 %v61
  %108 = vmatprep.subr.mxu0 0.0
  %109 = vmatpush2.msra.mxu0 0.0
  %110 = vmatprep.subr.mxu0 0.0
  %111 = vmatpush2.msra.mxu0 0.0
  %112 = vmatprep.subr.mxu0 0.0
  %113 = vmatpush2.msra.mxu0 0.0
  %114 = vmatprep.subr.mxu0 0.0
  %115 = vmatpush2.msra.mxu0 0.0
  %116 = vmatprep.subr.mxu0 0.0
  %117 = vmatpush2.msra.mxu0 0.0
  %118 = vmatprep.subr.mxu0 0.0
  %119 = vmatpush2.msra.mxu0 0.0
  %120 = vmatprep.subr.mxu0 0.0
  %121 = vmatpush2.msra.mxu0 0.0
  %122 = vmatprep.subr.mxu0 0.0
  %123 = vmatpush2.msra.mxu0 0.0
  %124 = vmatprep.subr.mxu0 0.0
  %125 = vmatpush2.msra.mxu0 0.0
  %126 = vmatprep.subr.mxu0 0.0
  %127 = vmatpush2.msra.mxu0 0.0
  %128 = vmatprep.subr.mxu0 0.0
  %129 = vmatpush2.msra.mxu0 0.0
  %130 = vmatprep.subr.mxu0 0.0
  %131 = vmatpush2.msra.mxu0 0.0
  %132 = vmatprep.subr.mxu0 0.0
  %133 = vmatpush2.msra.mxu0 0.0
  %134 = vmatprep.subr.mxu0 0.0
  %135 = vmatpush2.msra.mxu0 0.0
  %136 = vmatprep.subr.mxu0 0.0
  %137 = vmatpush2.msra.mxu0 0.0
  %138 = vmatprep.subr.mxu0 0.0
  %139 = vmatpush2.msra.mxu0 0.0
  %140 = vmatprep.mubr.f32.mxu0 0.0
  %141 = vmatmul.mubr.f32.gmra.mxu0 %v71
  %v142 = vpop.f32.mrf.mxu0
  %v143 = vadd.f32 0.0, %v142
  %v144 = vpop.f32.mrf.mxu0
  %145 = vmatprep.mubr.f32.mxu0 0.0
  %146 = vmatmul.mubr.f32.gmra.mxu0 %v74
  %v147 = vpop.f32.mrf.mxu0
  %v148 = vadd.f32 0.0, %v147
  %v149 = vpop.f32.mrf.mxu0
  %150 = vdwg.mxu0
  %v151 = vld [vmem:[%s2] sm:$0xff]
  %v152 = vld [vmem:[%s2 + $0x8] sm:$0xff]
  %v153 = vld [vmem:[%s3] sm:$0xff]
  %v154 = vld [vmem:[%s3 + $0x8] sm:$0xff]
  %v155 = vld [vmem:[%s4] sm:$0xff]
  %v156 = vld [vmem:[%s4 + $0x8] sm:$0xff]
  %v157 = vld [vmem:[%s5] sm:$0x1]
  %v158 = vmul.f32 %v143, %v143
  %v159 = vmul.f32 %v148, %v148
  %vm160 = vcmask 261120
  %v161 = vsel %vm160, %v158, 0.0
  %162 = vadd.xlane.f32.xlu0 %v161
  %v163 = vpop.xlane.xlu0 %162
  %v164 = vsel %vm160, %v159, 0.0
  %165 = vadd.xlane.f32.xlu0 %v164
  %v166 = vpop.xlane.xlu0 %165
  %v167 = vrcp.pop 32.0
  %v168 = vmul.f32 %v163, %v167
  %v169 = vmul.f32 %v166, %v167
  %v170 = vadd.f32 %v168, 1e-05
  %v171 = vadd.f32 %v169, 1e-05
  %v172 = vrsqrt.pop %v170
  %v173 = vrsqrt.pop %v171
  %v174 = vmul.f32 %v143, %v172
  %v175 = vmul.f32 %v148, %v173
  %v177 = vlaneseq
  %v178 = vshrl.u32 %v177, 7
  %v179 = vsub.s32 0, %v178
  %v180 = vrot.slane %v157, %v179
  %v182 = vmul.f32 %v174, %v180
  %v183 = vmul.f32 %v175, %v180
  %v184 = vpack.c.bf16 %v183, %v182
  %v185 = vld [vmem:[%s6] sm:$0xf]
  %v186 = vld [vmem:[%s6 + $0x4] sm:$0xf]
  %v187 = vld [vmem:[%s6 + $0x8] sm:$0xf]
  %v188 = vld [vmem:[%s6 + $0xc] sm:$0xf]
  %v193 = vunpack.c.l.b16 %v185
  %v194 = vunpack.c.l.b16 %v186
  %v195 = vunpack.c.l.b16 %v187
  %v196 = vunpack.c.l.b16 %v188
  %v197 = vpack.c.b16 %v194, %v193
  %v198 = vpack.c.b16 %v196, %v195
  %v202 = vsel %vm160, %v184, 0
  %204 = vmatprep.subr.bf16.mxu0 0
  %205 = vmatpush1.bf16.msra.mxu0 0
  %206 = vmatprep.subr.bf16.mxu0 0
  %207 = vmatpush1.bf16.msra.mxu0 0
  %208 = vmatprep.subr.bf16.mxu0 0
  %209 = vmatpush1.bf16.msra.mxu0 0
  %210 = vmatprep.subr.bf16.mxu0 0
  %211 = vmatpush1.bf16.msra.mxu0 0
  %212 = vmatprep.subr.bf16.mxu0 0
  %213 = vmatpush1.bf16.msra.mxu0 0
  %214 = vmatprep.subr.bf16.mxu0 0
  %215 = vmatpush1.bf16.msra.mxu0 0
  %216 = vmatprep.subr.bf16.mxu0 0
  %217 = vmatpush1.bf16.msra.mxu0 %v198
  %218 = vmatprep.subr.bf16.mxu0 0
  %219 = vmatpush1.bf16.msra.mxu0 %v197
  %220 = vmatprep.subr.bf16.mxu0 0
  %221 = vmatpush2.bf16.msra.mxu0 0
  %222 = vmatprep.subr.bf16.mxu0 0
  %223 = vmatpush2.bf16.msra.mxu0 0
  %224 = vmatprep.subr.bf16.mxu0 0
  %225 = vmatpush2.bf16.msra.mxu0 0
  %226 = vmatprep.subr.bf16.mxu0 0
  %227 = vmatpush2.bf16.msra.mxu0 0
  %228 = vmatprep.subr.bf16.mxu0 0
  %229 = vmatpush2.bf16.msra.mxu0 0
  %230 = vmatprep.subr.bf16.mxu0 0
  %231 = vmatpush2.bf16.msra.mxu0 0
  %232 = vmatprep.subr.bf16.mxu0 0
  %233 = vmatpush2.bf16.msra.mxu0 0
  %234 = vmatprep.subr.bf16.mxu0 0
  %235 = vmatpush2.bf16.msra.mxu0 0
  %236 = vmatprep.mubr.bf16.mxu0 0
  %237 = vmatmul.mubr.bf16.gmra.mxu0 %v202
  %v238 = vpop.f32.mrf.mxu0
  %v239 = vadd.f32 0.0, %v238
  %v240 = vpop.f32.mrf.mxu0
  %v241 = vpop.f32.mrf.mxu0
  %v242 = vadd.f32 0.0, %v241
  %v243 = vpop.f32.mrf.mxu0
  %244 = vdwg.mxu0
  %v245 = vmul.f32 %v239, %v151
  %v246 = vmul.f32 %v242, %v152
  %249 = vrot.lane.b32.xlu0 %v153, 4
  %v250 = vpop.permute.xlu0 %249
  %251 = vrot.lane.b32.xlu0 %v154, 4
  %v252 = vpop.permute.xlu0 %251
  %v255 = vmul.f32 %v239, %v250
  %v256 = vmul.f32 %v242, %v252
  %259 = vrot.lane.b32.xlu0 %v255, 124
  %v260 = vpop.permute.xlu0 %259
  %261 = vrot.lane.b32.xlu0 %v256, 124
  %v262 = vpop.permute.xlu0 %261
  %v265 = vsub.f32 %v245, %v260
  %v266 = vsub.f32 %v246, %v262
  %v267 = vmul.f32 %v239, %v153
  %v268 = vmul.f32 %v242, %v154
  %271 = vrot.lane.b32.xlu0 %v151, 4
  %v272 = vpop.permute.xlu0 %271
  %273 = vrot.lane.b32.xlu0 %v152, 4
  %v274 = vpop.permute.xlu0 %273
  %v277 = vmul.f32 %v239, %v272
  %v278 = vmul.f32 %v242, %v274
  %281 = vrot.lane.b32.xlu0 %v277, 124
  %v282 = vpop.permute.xlu0 %281
  %283 = vrot.lane.b32.xlu0 %v278, 124
  %v284 = vpop.permute.xlu0 %283
  %v287 = vadd.f32 %v267, %v282
  %v288 = vadd.f32 %v268, %v284
  %291 = vrot.lane.b32.xlu0 %v287, 4
  %v292 = vpop.permute.xlu0 %291
  %293 = vrot.lane.b32.xlu0 %v288, 4
  %v294 = vpop.permute.xlu0 %293
  %vm297 = vcmask 31744
  %v298 = vsel %vm297, %v265, %v292
  %v299 = vsel %vm297, %v266, %v294
  %vm300 = vcmp.gt.f32.partialorder %v298, 0.0
  %vm301 = vcmp.gt.f32.partialorder %v299, 0.0
  %v302 = vadd.f32 %v298, 1.0
  %v303 = vadd.f32 %v299, 1.0
  %v304 = vmin.f32 %v298, 0.0
  %v305 = vmin.f32 %v299, 0.0
  %v306 = vmul.f32 %v304, 1.442695
  %v307 = vpow.pop %v306
  %v308 = vmul.f32 %v305, 1.442695
  %v309 = vpow.pop %v308
  %v310 = vsel %vm300, %v302, %v307
  %v311 = vsel %vm301, %v303, %v309
  %312 = vrot.lane.b32.xlu0 %v151, 32
  %v313 = vpop.permute.xlu0 %312
  %314 = vrot.lane.b32.xlu0 %v152, 32
  %v315 = vpop.permute.xlu0 %314
  %v318 = vmul.f32 %v239, %v313
  %v319 = vmul.f32 %v242, %v315
  %320 = vrot.lane.b32.xlu0 %v153, 36
  %v321 = vpop.permute.xlu0 %320
  %322 = vrot.lane.b32.xlu0 %v154, 36
  %v323 = vpop.permute.xlu0 %322
  %v326 = vmul.f32 %v239, %v321
  %v327 = vmul.f32 %v242, %v323
  %330 = vrot.lane.b32.xlu0 %v326, 124
  %v331 = vpop.permute.xlu0 %330
  %332 = vrot.lane.b32.xlu0 %v327, 124
  %v333 = vpop.permute.xlu0 %332
  %v336 = vsub.f32 %v318, %v331
  %v337 = vsub.f32 %v319, %v333
  %338 = vrot.lane.b32.xlu0 %v153, 32
  %v339 = vpop.permute.xlu0 %338
  %340 = vrot.lane.b32.xlu0 %v154, 32
  %v341 = vpop.permute.xlu0 %340
  %v344 = vmul.f32 %v239, %v339
  %v345 = vmul.f32 %v242, %v341
  %346 = vrot.lane.b32.xlu0 %v151, 36
  %v347 = vpop.permute.xlu0 %346
  %348 = vrot.lane.b32.xlu0 %v152, 36
  %v349 = vpop.permute.xlu0 %348
  %v352 = vmul.f32 %v239, %v347
  %v353 = vmul.f32 %v242, %v349
  %356 = vrot.lane.b32.xlu0 %v352, 124
  %v357 = vpop.permute.xlu0 %356
  %358 = vrot.lane.b32.xlu0 %v353, 124
  %v359 = vpop.permute.xlu0 %358
  %v362 = vadd.f32 %v344, %v357
  %v363 = vadd.f32 %v345, %v359
  %366 = vrot.lane.b32.xlu0 %v336, 96
  %v367 = vpop.permute.xlu0 %366
  %368 = vrot.lane.b32.xlu0 %v337, 96
  %v369 = vpop.permute.xlu0 %368
  %374 = vrot.lane.b32.xlu0 %v362, 100
  %v375 = vpop.permute.xlu0 %374
  %376 = vrot.lane.b32.xlu0 %v363, 100
  %v377 = vpop.permute.xlu0 %376
  %v380 = vsel %vm297, %v367, %v375
  %v381 = vsel %vm297, %v369, %v377
  %vm382 = vcmp.gt.f32.partialorder %v380, 0.0
  %vm383 = vcmp.gt.f32.partialorder %v381, 0.0
  %v384 = vadd.f32 %v380, 1.0
  %v385 = vadd.f32 %v381, 1.0
  %v386 = vmin.f32 %v380, 0.0
  %v387 = vmin.f32 %v381, 0.0
  %v388 = vmul.f32 %v386, 1.442695
  %v389 = vpow.pop %v388
  %v390 = vmul.f32 %v387, 1.442695
  %v391 = vpow.pop %v390
  %v392 = vsel %vm382, %v384, %v389
  %v393 = vsel %vm383, %v385, %v391
  %vm394 = vcmask 64512
  %v396 = vsel %vm394, %v310, 0
  %v399 = vsel %vm394, %v311, 0
  %v402 = vsel %vm394, %v392, 0
  %v405 = vsel %vm394, %v393, 0
  %407 = vmatprep.subr.mxu0 0.0
  %408 = vmatpush1.xpose.msra.mxu0 0.0
  %409 = vmatprep.subr.mxu0 0.0
  %410 = vmatpush1.xpose.msra.mxu0 0.0
  %411 = vmatprep.subr.mxu0 0.0
  %412 = vmatpush1.xpose.msra.mxu0 0.0
  %413 = vmatprep.subr.mxu0 0.0
  %414 = vmatpush1.xpose.msra.mxu0 0.0
  %415 = vmatprep.subr.mxu0 0.0
  %416 = vmatpush1.xpose.msra.mxu0 0.0
  %417 = vmatprep.subr.mxu0 0.0
  %418 = vmatpush1.xpose.msra.mxu0 0.0
  %419 = vmatprep.subr.mxu0 0.0
  %420 = vmatpush1.xpose.msra.mxu0 0.0
  %421 = vmatprep.subr.mxu0 0.0
  %422 = vmatpush1.xpose.msra.mxu0 0.0
  %423 = vmatprep.subr.mxu0 0.0
  %424 = vmatpush1.xpose.msra.mxu0 0.0
  %425 = vmatprep.subr.mxu0 0.0
  %426 = vmatpush1.xpose.msra.mxu0 0.0
  %427 = vmatprep.subr.mxu0 0.0
  %428 = vmatpush1.xpose.msra.mxu0 0.0
  %429 = vmatprep.subr.mxu0 0.0
  %430 = vmatpush1.xpose.msra.mxu0 0.0
  %431 = vmatprep.subr.mxu0 0.0
  %432 = vmatpush1.xpose.msra.mxu0 0.0
  %433 = vmatprep.subr.mxu0 0.0
  %434 = vmatpush1.xpose.msra.mxu0 0.0
  %435 = vmatprep.subr.mxu0 0.0
  %436 = vmatpush1.xpose.msra.mxu0 %v405
  %437 = vmatprep.subr.mxu0 0.0
  %438 = vmatpush1.xpose.msra.mxu0 %v402
  %439 = vmatprep.subr.mxu0 0.0
  %440 = vmatpush2.xpose.msra.mxu0 0.0
  %441 = vmatprep.subr.mxu0 0.0
  %442 = vmatpush2.xpose.msra.mxu0 0.0
  %443 = vmatprep.subr.mxu0 0.0
  %444 = vmatpush2.xpose.msra.mxu0 0.0
  %445 = vmatprep.subr.mxu0 0.0
  %446 = vmatpush2.xpose.msra.mxu0 0.0
  %447 = vmatprep.subr.mxu0 0.0
  %448 = vmatpush2.xpose.msra.mxu0 0.0
  %449 = vmatprep.subr.mxu0 0.0
  %450 = vmatpush2.xpose.msra.mxu0 0.0
  %451 = vmatprep.subr.mxu0 0.0
  %452 = vmatpush2.xpose.msra.mxu0 0.0
  %453 = vmatprep.subr.mxu0 0.0
  %454 = vmatpush2.xpose.msra.mxu0 0.0
  %455 = vmatprep.subr.mxu0 0.0
  %456 = vmatpush2.xpose.msra.mxu0 0.0
  %457 = vmatprep.subr.mxu0 0.0
  %458 = vmatpush2.xpose.msra.mxu0 0.0
  %459 = vmatprep.subr.mxu0 0.0
  %460 = vmatpush2.xpose.msra.mxu0 0.0
  %461 = vmatprep.subr.mxu0 0.0
  %462 = vmatpush2.xpose.msra.mxu0 0.0
  %463 = vmatprep.subr.mxu0 0.0
  %464 = vmatpush2.xpose.msra.mxu0 0.0
  %465 = vmatprep.subr.mxu0 0.0
  %466 = vmatpush2.xpose.msra.mxu0 0.0
  %467 = vmatprep.subr.mxu0 0.0
  %468 = vmatpush2.xpose.msra.mxu0 0.0
  %469 = vmatprep.subr.mxu0 0.0
  %470 = vmatpush2.xpose.msra.mxu0 0.0
  %471 = vmatprep.mubr.f32.mxu0 0.0
  %472 = vmatmul.mubr.f32.gmra.mxu0 %v396
  %v473 = vpop.f32.mrf.mxu0
  %v474 = vadd.f32 0.0, %v473
  %v475 = vpop.f32.mrf.mxu0
  %476 = vmatprep.mubr.f32.mxu0 0.0
  %477 = vmatmul.mubr.f32.gmra.mxu0 %v399
  %v478 = vpop.f32.mrf.mxu0
  %v479 = vadd.f32 0.0, %v478
  %v480 = vpop.f32.mrf.mxu0
  %481 = vdwg.mxu0
  %v482 = vmul.f32 %v474, %v155
  %v483 = vmul.f32 %v479, %v156
  %vm484 = vcmask 130048
  %v485 = vsel %vm484, %v482, 0.0
  %486 = vadd.xlane.f32.xlu0 %v485
  %v487 = vpop.xlane.xlu0 %486
  %v488 = vsel %vm484, %v483, 0.0
  %489 = vadd.xlane.f32.xlu0 %v488
  %v490 = vpop.xlane.xlu0 %489
  %v491 = vadd.f32 %v487, 1e-08
  %v492 = vadd.f32 %v490, 1e-08
  %v493 = vrcp.pop %v491
  %v494 = vmul.f32 %v482, %v493
  %v495 = vrcp.pop %v492
  %v496 = vmul.f32 %v483, %v495
  %499 = vrot.lane.b32.xlu0 %v239, 64
  %v500 = vpop.permute.xlu0 %499
  %501 = vrot.lane.b32.xlu0 %v242, 64
  %v502 = vpop.permute.xlu0 %501
  %v506 = vsel %vm484, %v494, 0
  %v509 = vsel %vm484, %v496, 0
  %511 = vmatprep.subr.mxu0 0.0
  %512 = vmatpush1.msra.mxu0 0.0
  %513 = vmatprep.subr.mxu0 0.0
  %514 = vmatpush1.msra.mxu0 0.0
  %515 = vmatprep.subr.mxu0 0.0
  %516 = vmatpush1.msra.mxu0 0.0
  %517 = vmatprep.subr.mxu0 0.0
  %518 = vmatpush1.msra.mxu0 0.0
  %519 = vmatprep.subr.mxu0 0.0
  %520 = vmatpush1.msra.mxu0 0.0
  %521 = vmatprep.subr.mxu0 0.0
  %522 = vmatpush1.msra.mxu0 0.0
  %523 = vmatprep.subr.mxu0 0.0
  %524 = vmatpush1.msra.mxu0 0.0
  %525 = vmatprep.subr.mxu0 0.0
  %526 = vmatpush1.msra.mxu0 0.0
  %527 = vmatprep.subr.mxu0 0.0
  %528 = vmatpush1.msra.mxu0 0.0
  %529 = vmatprep.subr.mxu0 0.0
  %530 = vmatpush1.msra.mxu0 0.0
  %531 = vmatprep.subr.mxu0 0.0
  %532 = vmatpush1.msra.mxu0 0.0
  %533 = vmatprep.subr.mxu0 0.0
  %534 = vmatpush1.msra.mxu0 0.0
  %535 = vmatprep.subr.mxu0 0.0
  %536 = vmatpush1.msra.mxu0 0.0
  %537 = vmatprep.subr.mxu0 0.0
  %538 = vmatpush1.msra.mxu0 0.0
  %539 = vmatprep.subr.mxu0 0.0
  %540 = vmatpush1.msra.mxu0 %v502
  %541 = vmatprep.subr.mxu0 0.0
  %542 = vmatpush1.msra.mxu0 %v500
  %543 = vmatprep.subr.mxu0 0.0
  %544 = vmatpush2.msra.mxu0 0.0
  %545 = vmatprep.subr.mxu0 0.0
  %546 = vmatpush2.msra.mxu0 0.0
  %547 = vmatprep.subr.mxu0 0.0
  %548 = vmatpush2.msra.mxu0 0.0
  %549 = vmatprep.subr.mxu0 0.0
  %550 = vmatpush2.msra.mxu0 0.0
  %551 = vmatprep.subr.mxu0 0.0
  %552 = vmatpush2.msra.mxu0 0.0
  %553 = vmatprep.subr.mxu0 0.0
  %554 = vmatpush2.msra.mxu0 0.0
  %555 = vmatprep.subr.mxu0 0.0
  %556 = vmatpush2.msra.mxu0 0.0
  %557 = vmatprep.subr.mxu0 0.0
  %558 = vmatpush2.msra.mxu0 0.0
  %559 = vmatprep.subr.mxu0 0.0
  %560 = vmatpush2.msra.mxu0 0.0
  %561 = vmatprep.subr.mxu0 0.0
  %562 = vmatpush2.msra.mxu0 0.0
  %563 = vmatprep.subr.mxu0 0.0
  %564 = vmatpush2.msra.mxu0 0.0
  %565 = vmatprep.subr.mxu0 0.0
  %566 = vmatpush2.msra.mxu0 0.0
  %567 = vmatprep.subr.mxu0 0.0
  %568 = vmatpush2.msra.mxu0 0.0
  %569 = vmatprep.subr.mxu0 0.0
  %570 = vmatpush2.msra.mxu0 0.0
  %571 = vmatprep.subr.mxu0 0.0
  %572 = vmatpush2.msra.mxu0 0.0
  %573 = vmatprep.subr.mxu0 0.0
  %574 = vmatpush2.msra.mxu0 0.0
  %575 = vmatprep.mubr.f32.mxu0 0.0
  %576 = vmatmul.mubr.f32.gmra.mxu0 %v506
  %v577 = vpop.f32.mrf.mxu0
  %v578 = vadd.f32 0.0, %v577
  %v579 = vpop.f32.mrf.mxu0
  %580 = vmatprep.mubr.f32.mxu0 0.0
  %581 = vmatmul.mubr.f32.gmra.mxu0 %v509
  %v582 = vpop.f32.mrf.mxu0
  %v583 = vadd.f32 0.0, %v582
  %v584 = vpop.f32.mrf.mxu0
  %585 = vdwg.mxu0
  %586 = vrot.lane.b32.xlu0 %v151, 8
  %v587 = vpop.permute.xlu0 %586
  %588 = vrot.lane.b32.xlu0 %v152, 8
  %v589 = vpop.permute.xlu0 %588
  %v592 = vmul.f32 %v239, %v587
  %v593 = vmul.f32 %v242, %v589
  %594 = vrot.lane.b32.xlu0 %v153, 12
  %v595 = vpop.permute.xlu0 %594
  %596 = vrot.lane.b32.xlu0 %v154, 12
  %v597 = vpop.permute.xlu0 %596
  %v600 = vmul.f32 %v239, %v595
  %v601 = vmul.f32 %v242, %v597
  %604 = vrot.lane.b32.xlu0 %v600, 124
  %v605 = vpop.permute.xlu0 %604
  %606 = vrot.lane.b32.xlu0 %v601, 124
  %v607 = vpop.permute.xlu0 %606
  %v610 = vsub.f32 %v592, %v605
  %v611 = vsub.f32 %v593, %v607
  %612 = vrot.lane.b32.xlu0 %v153, 8
  %v613 = vpop.permute.xlu0 %612
  %614 = vrot.lane.b32.xlu0 %v154, 8
  %v615 = vpop.permute.xlu0 %614
  %v618 = vmul.f32 %v239, %v613
  %v619 = vmul.f32 %v242, %v615
  %620 = vrot.lane.b32.xlu0 %v151, 12
  %v621 = vpop.permute.xlu0 %620
  %622 = vrot.lane.b32.xlu0 %v152, 12
  %v623 = vpop.permute.xlu0 %622
  %v626 = vmul.f32 %v239, %v621
  %v627 = vmul.f32 %v242, %v623
  %630 = vrot.lane.b32.xlu0 %v626, 124
  %v631 = vpop.permute.xlu0 %630
  %632 = vrot.lane.b32.xlu0 %v627, 124
  %v633 = vpop.permute.xlu0 %632
  %v636 = vadd.f32 %v618, %v631
  %v637 = vadd.f32 %v619, %v633
  %640 = vrot.lane.b32.xlu0 %v610, 120
  %v641 = vpop.permute.xlu0 %640
  %642 = vrot.lane.b32.xlu0 %v611, 120
  %v643 = vpop.permute.xlu0 %642
  %648 = vrot.lane.b32.xlu0 %v636, 124
  %v649 = vpop.permute.xlu0 %648
  %650 = vrot.lane.b32.xlu0 %v637, 124
  %v651 = vpop.permute.xlu0 %650
  %v654 = vsel %vm297, %v641, %v649
  %v655 = vsel %vm297, %v643, %v651
  %vm656 = vcmp.gt.f32.partialorder %v654, 0.0
  %vm657 = vcmp.gt.f32.partialorder %v655, 0.0
  %v658 = vadd.f32 %v654, 1.0
  %v659 = vadd.f32 %v655, 1.0
  %v660 = vmin.f32 %v654, 0.0
  %v661 = vmin.f32 %v655, 0.0
  %v662 = vmul.f32 %v660, 1.442695
  %v663 = vpow.pop %v662
  %v664 = vmul.f32 %v661, 1.442695
  %v665 = vpow.pop %v664
  %v666 = vsel %vm656, %v658, %v663
  %v667 = vsel %vm657, %v659, %v665
  %668 = vrot.lane.b32.xlu0 %v151, 40
  %v669 = vpop.permute.xlu0 %668
  %670 = vrot.lane.b32.xlu0 %v152, 40
  %v671 = vpop.permute.xlu0 %670
  %v674 = vmul.f32 %v239, %v669
  %v675 = vmul.f32 %v242, %v671
  %676 = vrot.lane.b32.xlu0 %v153, 44
  %v677 = vpop.permute.xlu0 %676
  %678 = vrot.lane.b32.xlu0 %v154, 44
  %v679 = vpop.permute.xlu0 %678
  %v682 = vmul.f32 %v239, %v677
  %v683 = vmul.f32 %v242, %v679
  %686 = vrot.lane.b32.xlu0 %v682, 124
  %v687 = vpop.permute.xlu0 %686
  %688 = vrot.lane.b32.xlu0 %v683, 124
  %v689 = vpop.permute.xlu0 %688
  %v692 = vsub.f32 %v674, %v687
  %v693 = vsub.f32 %v675, %v689
  %694 = vrot.lane.b32.xlu0 %v153, 40
  %v695 = vpop.permute.xlu0 %694
  %696 = vrot.lane.b32.xlu0 %v154, 40
  %v697 = vpop.permute.xlu0 %696
  %v700 = vmul.f32 %v239, %v695
  %v701 = vmul.f32 %v242, %v697
  %702 = vrot.lane.b32.xlu0 %v151, 44
  %v703 = vpop.permute.xlu0 %702
  %704 = vrot.lane.b32.xlu0 %v152, 44
  %v705 = vpop.permute.xlu0 %704
  %v708 = vmul.f32 %v239, %v703
  %v709 = vmul.f32 %v242, %v705
  %712 = vrot.lane.b32.xlu0 %v708, 124
  %v713 = vpop.permute.xlu0 %712
  %714 = vrot.lane.b32.xlu0 %v709, 124
  %v715 = vpop.permute.xlu0 %714
  %v718 = vadd.f32 %v700, %v713
  %v719 = vadd.f32 %v701, %v715
  %722 = vrot.lane.b32.xlu0 %v692, 88
  %v723 = vpop.permute.xlu0 %722
  %724 = vrot.lane.b32.xlu0 %v693, 88
  %v725 = vpop.permute.xlu0 %724
  %730 = vrot.lane.b32.xlu0 %v718, 92
  %v731 = vpop.permute.xlu0 %730
  %732 = vrot.lane.b32.xlu0 %v719, 92
  %v733 = vpop.permute.xlu0 %732
  %v736 = vsel %vm297, %v723, %v731
  %v737 = vsel %vm297, %v725, %v733
  %vm738 = vcmp.gt.f32.partialorder %v736, 0.0
  %vm739 = vcmp.gt.f32.partialorder %v737, 0.0
  %v740 = vadd.f32 %v736, 1.0
  %v741 = vadd.f32 %v737, 1.0
  %v742 = vmin.f32 %v736, 0.0
  %v743 = vmin.f32 %v737, 0.0
  %v744 = vmul.f32 %v742, 1.442695
  %v745 = vpow.pop %v744
  %v746 = vmul.f32 %v743, 1.442695
  %v747 = vpow.pop %v746
  %v748 = vsel %vm738, %v740, %v745
  %v749 = vsel %vm739, %v741, %v747
  %v751 = vsel %vm394, %v666, 0
  %v754 = vsel %vm394, %v667, 0
  %v757 = vsel %vm394, %v748, 0
  %v760 = vsel %vm394, %v749, 0
  %762 = vmatprep.subr.mxu0 0.0
  %763 = vmatpush1.xpose.msra.mxu0 0.0
  %764 = vmatprep.subr.mxu0 0.0
  %765 = vmatpush1.xpose.msra.mxu0 0.0
  %766 = vmatprep.subr.mxu0 0.0
  %767 = vmatpush1.xpose.msra.mxu0 0.0
  %768 = vmatprep.subr.mxu0 0.0
  %769 = vmatpush1.xpose.msra.mxu0 0.0
  %770 = vmatprep.subr.mxu0 0.0
  %771 = vmatpush1.xpose.msra.mxu0 0.0
  %772 = vmatprep.subr.mxu0 0.0
  %773 = vmatpush1.xpose.msra.mxu0 0.0
  %774 = vmatprep.subr.mxu0 0.0
  %775 = vmatpush1.xpose.msra.mxu0 0.0
  %776 = vmatprep.subr.mxu0 0.0
  %777 = vmatpush1.xpose.msra.mxu0 0.0
  %778 = vmatprep.subr.mxu0 0.0
  %779 = vmatpush1.xpose.msra.mxu0 0.0
  %780 = vmatprep.subr.mxu0 0.0
  %781 = vmatpush1.xpose.msra.mxu0 0.0
  %782 = vmatprep.subr.mxu0 0.0
  %783 = vmatpush1.xpose.msra.mxu0 0.0
  %784 = vmatprep.subr.mxu0 0.0
  %785 = vmatpush1.xpose.msra.mxu0 0.0
  %786 = vmatprep.subr.mxu0 0.0
  %787 = vmatpush1.xpose.msra.mxu0 0.0
  %788 = vmatprep.subr.mxu0 0.0
  %789 = vmatpush1.xpose.msra.mxu0 0.0
  %790 = vmatprep.subr.mxu0 0.0
  %791 = vmatpush1.xpose.msra.mxu0 %v760
  %792 = vmatprep.subr.mxu0 0.0
  %793 = vmatpush1.xpose.msra.mxu0 %v757
  %794 = vmatprep.subr.mxu0 0.0
  %795 = vmatpush2.xpose.msra.mxu0 0.0
  %796 = vmatprep.subr.mxu0 0.0
  %797 = vmatpush2.xpose.msra.mxu0 0.0
  %798 = vmatprep.subr.mxu0 0.0
  %799 = vmatpush2.xpose.msra.mxu0 0.0
  %800 = vmatprep.subr.mxu0 0.0
  %801 = vmatpush2.xpose.msra.mxu0 0.0
  %802 = vmatprep.subr.mxu0 0.0
  %803 = vmatpush2.xpose.msra.mxu0 0.0
  %804 = vmatprep.subr.mxu0 0.0
  %805 = vmatpush2.xpose.msra.mxu0 0.0
  %806 = vmatprep.subr.mxu0 0.0
  %807 = vmatpush2.xpose.msra.mxu0 0.0
  %808 = vmatprep.subr.mxu0 0.0
  %809 = vmatpush2.xpose.msra.mxu0 0.0
  %810 = vmatprep.subr.mxu0 0.0
  %811 = vmatpush2.xpose.msra.mxu0 0.0
  %812 = vmatprep.subr.mxu0 0.0
  %813 = vmatpush2.xpose.msra.mxu0 0.0
  %814 = vmatprep.subr.mxu0 0.0
  %815 = vmatpush2.xpose.msra.mxu0 0.0
  %816 = vmatprep.subr.mxu0 0.0
  %817 = vmatpush2.xpose.msra.mxu0 0.0
  %818 = vmatprep.subr.mxu0 0.0
  %819 = vmatpush2.xpose.msra.mxu0 0.0
  %820 = vmatprep.subr.mxu0 0.0
  %821 = vmatpush2.xpose.msra.mxu0 0.0
  %822 = vmatprep.subr.mxu0 0.0
  %823 = vmatpush2.xpose.msra.mxu0 0.0
  %824 = vmatprep.subr.mxu0 0.0
  %825 = vmatpush2.xpose.msra.mxu0 0.0
  %826 = vmatprep.mubr.f32.mxu0 0.0
  %827 = vmatmul.mubr.f32.gmra.mxu0 %v751
  %v828 = vpop.f32.mrf.mxu0
  %v829 = vadd.f32 0.0, %v828
  %v830 = vpop.f32.mrf.mxu0
  %831 = vmatprep.mubr.f32.mxu0 0.0
  %832 = vmatmul.mubr.f32.gmra.mxu0 %v754
  %v833 = vpop.f32.mrf.mxu0
  %v834 = vadd.f32 0.0, %v833
  %v835 = vpop.f32.mrf.mxu0
  %836 = vdwg.mxu0
  %v837 = vmul.f32 %v829, %v155
  %v838 = vmul.f32 %v834, %v156
  %v839 = vsel %vm484, %v837, 0.0
  %840 = vadd.xlane.f32.xlu0 %v839
  %v841 = vpop.xlane.xlu0 %840
  %v842 = vsel %vm484, %v838, 0.0
  %843 = vadd.xlane.f32.xlu0 %v842
  %v844 = vpop.xlane.xlu0 %843
  %v845 = vadd.f32 %v841, 1e-08
  %v846 = vadd.f32 %v844, 1e-08
  %v847 = vrcp.pop %v845
  %v848 = vmul.f32 %v837, %v847
  %v849 = vrcp.pop %v846
  %v850 = vmul.f32 %v838, %v849
  %851 = vrot.lane.b32.xlu0 %v239, 56
  %v852 = vpop.permute.xlu0 %851
  %853 = vrot.lane.b32.xlu0 %v242, 56
  %v854 = vpop.permute.xlu0 %853
  %v858 = vsel %vm484, %v848, 0
  %v861 = vsel %vm484, %v850, 0
  %863 = vmatprep.subr.mxu0 0.0
  %864 = vmatpush1.msra.mxu0 0.0
  %865 = vmatprep.subr.mxu0 0.0
  %866 = vmatpush1.msra.mxu0 0.0
  %867 = vmatprep.subr.mxu0 0.0
  %868 = vmatpush1.msra.mxu0 0.0
  %869 = vmatprep.subr.mxu0 0.0
  %870 = vmatpush1.msra.mxu0 0.0
  %871 = vmatprep.subr.mxu0 0.0
  %872 = vmatpush1.msra.mxu0 0.0
  %873 = vmatprep.subr.mxu0 0.0
  %874 = vmatpush1.msra.mxu0 0.0
  %875 = vmatprep.subr.mxu0 0.0
  %876 = vmatpush1.msra.mxu0 0.0
  %877 = vmatprep.subr.mxu0 0.0
  %878 = vmatpush1.msra.mxu0 0.0
  %879 = vmatprep.subr.mxu0 0.0
  %880 = vmatpush1.msra.mxu0 0.0
  %881 = vmatprep.subr.mxu0 0.0
  %882 = vmatpush1.msra.mxu0 0.0
  %883 = vmatprep.subr.mxu0 0.0
  %884 = vmatpush1.msra.mxu0 0.0
  %885 = vmatprep.subr.mxu0 0.0
  %886 = vmatpush1.msra.mxu0 0.0
  %887 = vmatprep.subr.mxu0 0.0
  %888 = vmatpush1.msra.mxu0 0.0
  %889 = vmatprep.subr.mxu0 0.0
  %890 = vmatpush1.msra.mxu0 0.0
  %891 = vmatprep.subr.mxu0 0.0
  %892 = vmatpush1.msra.mxu0 %v854
  %893 = vmatprep.subr.mxu0 0.0
  %894 = vmatpush1.msra.mxu0 %v852
  %895 = vmatprep.subr.mxu0 0.0
  %896 = vmatpush2.msra.mxu0 0.0
  %897 = vmatprep.subr.mxu0 0.0
  %898 = vmatpush2.msra.mxu0 0.0
  %899 = vmatprep.subr.mxu0 0.0
  %900 = vmatpush2.msra.mxu0 0.0
  %901 = vmatprep.subr.mxu0 0.0
  %902 = vmatpush2.msra.mxu0 0.0
  %903 = vmatprep.subr.mxu0 0.0
  %904 = vmatpush2.msra.mxu0 0.0
  %905 = vmatprep.subr.mxu0 0.0
  %906 = vmatpush2.msra.mxu0 0.0
  %907 = vmatprep.subr.mxu0 0.0
  %908 = vmatpush2.msra.mxu0 0.0
  %909 = vmatprep.subr.mxu0 0.0
  %910 = vmatpush2.msra.mxu0 0.0
  %911 = vmatprep.subr.mxu0 0.0
  %912 = vmatpush2.msra.mxu0 0.0
  %913 = vmatprep.subr.mxu0 0.0
  %914 = vmatpush2.msra.mxu0 0.0
  %915 = vmatprep.subr.mxu0 0.0
  %916 = vmatpush2.msra.mxu0 0.0
  %917 = vmatprep.subr.mxu0 0.0
  %918 = vmatpush2.msra.mxu0 0.0
  %919 = vmatprep.subr.mxu0 0.0
  %920 = vmatpush2.msra.mxu0 0.0
  %921 = vmatprep.subr.mxu0 0.0
  %922 = vmatpush2.msra.mxu0 0.0
  %923 = vmatprep.subr.mxu0 0.0
  %924 = vmatpush2.msra.mxu0 0.0
  %925 = vmatprep.subr.mxu0 0.0
  %926 = vmatpush2.msra.mxu0 0.0
  %927 = vmatprep.mubr.f32.mxu0 0.0
  %928 = vmatmul.mubr.f32.gmra.mxu0 %v858
  %v929 = vpop.f32.mrf.mxu0
  %v930 = vadd.f32 0.0, %v929
  %v931 = vpop.f32.mrf.mxu0
  %932 = vmatprep.mubr.f32.mxu0 0.0
  %933 = vmatmul.mubr.f32.gmra.mxu0 %v861
  %v934 = vpop.f32.mrf.mxu0
  %v935 = vadd.f32 0.0, %v934
  %v936 = vpop.f32.mrf.mxu0
  %937 = vdwg.mxu0
  %938 = vrot.lane.b32.xlu0 %v151, 16
  %v939 = vpop.permute.xlu0 %938
  %940 = vrot.lane.b32.xlu0 %v152, 16
  %v941 = vpop.permute.xlu0 %940
  %v944 = vmul.f32 %v239, %v939
  %v945 = vmul.f32 %v242, %v941
  %946 = vrot.lane.b32.xlu0 %v153, 20
  %v947 = vpop.permute.xlu0 %946
  %948 = vrot.lane.b32.xlu0 %v154, 20
  %v949 = vpop.permute.xlu0 %948
  %v952 = vmul.f32 %v239, %v947
  %v953 = vmul.f32 %v242, %v949
  %956 = vrot.lane.b32.xlu0 %v952, 124
  %v957 = vpop.permute.xlu0 %956
  %958 = vrot.lane.b32.xlu0 %v953, 124
  %v959 = vpop.permute.xlu0 %958
  %v962 = vsub.f32 %v944, %v957
  %v963 = vsub.f32 %v945, %v959
  %964 = vrot.lane.b32.xlu0 %v153, 16
  %v965 = vpop.permute.xlu0 %964
  %966 = vrot.lane.b32.xlu0 %v154, 16
  %v967 = vpop.permute.xlu0 %966
  %v970 = vmul.f32 %v239, %v965
  %v971 = vmul.f32 %v242, %v967
  %972 = vrot.lane.b32.xlu0 %v151, 20
  %v973 = vpop.permute.xlu0 %972
  %974 = vrot.lane.b32.xlu0 %v152, 20
  %v975 = vpop.permute.xlu0 %974
  %v978 = vmul.f32 %v239, %v973
  %v979 = vmul.f32 %v242, %v975
  %982 = vrot.lane.b32.xlu0 %v978, 124
  %v983 = vpop.permute.xlu0 %982
  %984 = vrot.lane.b32.xlu0 %v979, 124
  %v985 = vpop.permute.xlu0 %984
  %v988 = vadd.f32 %v970, %v983
  %v989 = vadd.f32 %v971, %v985
  %992 = vrot.lane.b32.xlu0 %v962, 112
  %v993 = vpop.permute.xlu0 %992
  %994 = vrot.lane.b32.xlu0 %v963, 112
  %v995 = vpop.permute.xlu0 %994
  %1000 = vrot.lane.b32.xlu0 %v988, 116
  %v1001 = vpop.permute.xlu0 %1000
  %1002 = vrot.lane.b32.xlu0 %v989, 116
  %v1003 = vpop.permute.xlu0 %1002
  %v1006 = vsel %vm297, %v993, %v1001
  %v1007 = vsel %vm297, %v995, %v1003
  %vm1008 = vcmp.gt.f32.partialorder %v1006, 0.0
  %vm1009 = vcmp.gt.f32.partialorder %v1007, 0.0
  %v1010 = vadd.f32 %v1006, 1.0
  %v1011 = vadd.f32 %v1007, 1.0
  %v1012 = vmin.f32 %v1006, 0.0
  %v1013 = vmin.f32 %v1007, 0.0
  %v1014 = vmul.f32 %v1012, 1.442695
  %v1015 = vpow.pop %v1014
  %v1016 = vmul.f32 %v1013, 1.442695
  %v1017 = vpow.pop %v1016
  %v1018 = vsel %vm1008, %v1010, %v1015
  %v1019 = vsel %vm1009, %v1011, %v1017
  %1020 = vrot.lane.b32.xlu0 %v151, 48
  %v1021 = vpop.permute.xlu0 %1020
  %1022 = vrot.lane.b32.xlu0 %v152, 48
  %v1023 = vpop.permute.xlu0 %1022
  %v1026 = vmul.f32 %v239, %v1021
  %v1027 = vmul.f32 %v242, %v1023
  %1028 = vrot.lane.b32.xlu0 %v153, 52
  %v1029 = vpop.permute.xlu0 %1028
  %1030 = vrot.lane.b32.xlu0 %v154, 52
  %v1031 = vpop.permute.xlu0 %1030
  %v1034 = vmul.f32 %v239, %v1029
  %v1035 = vmul.f32 %v242, %v1031
  %1038 = vrot.lane.b32.xlu0 %v1034, 124
  %v1039 = vpop.permute.xlu0 %1038
  %1040 = vrot.lane.b32.xlu0 %v1035, 124
  %v1041 = vpop.permute.xlu0 %1040
  %v1044 = vsub.f32 %v1026, %v1039
  %v1045 = vsub.f32 %v1027, %v1041
  %1046 = vrot.lane.b32.xlu0 %v153, 48
  %v1047 = vpop.permute.xlu0 %1046
  %1048 = vrot.lane.b32.xlu0 %v154, 48
  %v1049 = vpop.permute.xlu0 %1048
  %v1052 = vmul.f32 %v239, %v1047
  %v1053 = vmul.f32 %v242, %v1049
  %1054 = vrot.lane.b32.xlu0 %v151, 52
  %v1055 = vpop.permute.xlu0 %1054
  %1056 = vrot.lane.b32.xlu0 %v152, 52
  %v1057 = vpop.permute.xlu0 %1056
  %v1060 = vmul.f32 %v239, %v1055
  %v1061 = vmul.f32 %v242, %v1057
  %1064 = vrot.lane.b32.xlu0 %v1060, 124
  %v1065 = vpop.permute.xlu0 %1064
  %1066 = vrot.lane.b32.xlu0 %v1061, 124
  %v1067 = vpop.permute.xlu0 %1066
  %v1070 = vadd.f32 %v1052, %v1065
  %v1071 = vadd.f32 %v1053, %v1067
  %1074 = vrot.lane.b32.xlu0 %v1044, 80
  %v1075 = vpop.permute.xlu0 %1074
  %1076 = vrot.lane.b32.xlu0 %v1045, 80
  %v1077 = vpop.permute.xlu0 %1076
  %1082 = vrot.lane.b32.xlu0 %v1070, 84
  %v1083 = vpop.permute.xlu0 %1082
  %1084 = vrot.lane.b32.xlu0 %v1071, 84
  %v1085 = vpop.permute.xlu0 %1084
  %v1088 = vsel %vm297, %v1075, %v1083
  %v1089 = vsel %vm297, %v1077, %v1085
  %vm1090 = vcmp.gt.f32.partialorder %v1088, 0.0
  %vm1091 = vcmp.gt.f32.partialorder %v1089, 0.0
  %v1092 = vadd.f32 %v1088, 1.0
  %v1093 = vadd.f32 %v1089, 1.0
  %v1094 = vmin.f32 %v1088, 0.0
  %v1095 = vmin.f32 %v1089, 0.0
  %v1096 = vmul.f32 %v1094, 1.442695
  %v1097 = vpow.pop %v1096
  %v1098 = vmul.f32 %v1095, 1.442695
  %v1099 = vpow.pop %v1098
  %v1100 = vsel %vm1090, %v1092, %v1097
  %v1101 = vsel %vm1091, %v1093, %v1099
  %v1103 = vsel %vm394, %v1018, 0
  %v1106 = vsel %vm394, %v1019, 0
  %v1109 = vsel %vm394, %v1100, 0
  %v1112 = vsel %vm394, %v1101, 0
  %1114 = vmatprep.subr.mxu0 0.0
  %1115 = vmatpush1.xpose.msra.mxu0 0.0
  %1116 = vmatprep.subr.mxu0 0.0
  %1117 = vmatpush1.xpose.msra.mxu0 0.0
  %1118 = vmatprep.subr.mxu0 0.0
  %1119 = vmatpush1.xpose.msra.mxu0 0.0
  %1120 = vmatprep.subr.mxu0 0.0
  %1121 = vmatpush1.xpose.msra.mxu0 0.0
  %1122 = vmatprep.subr.mxu0 0.0
  %1123 = vmatpush1.xpose.msra.mxu0 0.0
  %1124 = vmatprep.subr.mxu0 0.0
  %1125 = vmatpush1.xpose.msra.mxu0 0.0
  %1126 = vmatprep.subr.mxu0 0.0
  %1127 = vmatpush1.xpose.msra.mxu0 0.0
  %1128 = vmatprep.subr.mxu0 0.0
  %1129 = vmatpush1.xpose.msra.mxu0 0.0
  %1130 = vmatprep.subr.mxu0 0.0
  %1131 = vmatpush1.xpose.msra.mxu0 0.0
  %1132 = vmatprep.subr.mxu0 0.0
  %1133 = vmatpush1.xpose.msra.mxu0 0.0
  %1134 = vmatprep.subr.mxu0 0.0
  %1135 = vmatpush1.xpose.msra.mxu0 0.0
  %1136 = vmatprep.subr.mxu0 0.0
  %1137 = vmatpush1.xpose.msra.mxu0 0.0
  %1138 = vmatprep.subr.mxu0 0.0
  %1139 = vmatpush1.xpose.msra.mxu0 0.0
  %1140 = vmatprep.subr.mxu0 0.0
  %1141 = vmatpush1.xpose.msra.mxu0 0.0
  %1142 = vmatprep.subr.mxu0 0.0
  %1143 = vmatpush1.xpose.msra.mxu0 %v1112
  %1144 = vmatprep.subr.mxu0 0.0
  %1145 = vmatpush1.xpose.msra.mxu0 %v1109
  %1146 = vmatprep.subr.mxu0 0.0
  %1147 = vmatpush2.xpose.msra.mxu0 0.0
  %1148 = vmatprep.subr.mxu0 0.0
  %1149 = vmatpush2.xpose.msra.mxu0 0.0
  %1150 = vmatprep.subr.mxu0 0.0
  %1151 = vmatpush2.xpose.msra.mxu0 0.0
  %1152 = vmatprep.subr.mxu0 0.0
  %1153 = vmatpush2.xpose.msra.mxu0 0.0
  %1154 = vmatprep.subr.mxu0 0.0
  %1155 = vmatpush2.xpose.msra.mxu0 0.0
  %1156 = vmatprep.subr.mxu0 0.0
  %1157 = vmatpush2.xpose.msra.mxu0 0.0
  %1158 = vmatprep.subr.mxu0 0.0
  %1159 = vmatpush2.xpose.msra.mxu0 0.0
  %1160 = vmatprep.subr.mxu0 0.0
  %1161 = vmatpush2.xpose.msra.mxu0 0.0
  %1162 = vmatprep.subr.mxu0 0.0
  %1163 = vmatpush2.xpose.msra.mxu0 0.0
  %1164 = vmatprep.subr.mxu0 0.0
  %1165 = vmatpush2.xpose.msra.mxu0 0.0
  %1166 = vmatprep.subr.mxu0 0.0
  %1167 = vmatpush2.xpose.msra.mxu0 0.0
  %1168 = vmatprep.subr.mxu0 0.0
  %1169 = vmatpush2.xpose.msra.mxu0 0.0
  %1170 = vmatprep.subr.mxu0 0.0
  %1171 = vmatpush2.xpose.msra.mxu0 0.0
  %1172 = vmatprep.subr.mxu0 0.0
  %1173 = vmatpush2.xpose.msra.mxu0 0.0
  %1174 = vmatprep.subr.mxu0 0.0
  %1175 = vmatpush2.xpose.msra.mxu0 0.0
  %1176 = vmatprep.subr.mxu0 0.0
  %1177 = vmatpush2.xpose.msra.mxu0 0.0
  %1178 = vmatprep.mubr.f32.mxu0 0.0
  %1179 = vmatmul.mubr.f32.gmra.mxu0 %v1103
  %v1180 = vpop.f32.mrf.mxu0
  %v1181 = vadd.f32 0.0, %v1180
  %v1182 = vpop.f32.mrf.mxu0
  %1183 = vmatprep.mubr.f32.mxu0 0.0
  %1184 = vmatmul.mubr.f32.gmra.mxu0 %v1106
  %v1185 = vpop.f32.mrf.mxu0
  %v1186 = vadd.f32 0.0, %v1185
  %v1187 = vpop.f32.mrf.mxu0
  %1188 = vdwg.mxu0
  %v1189 = vmul.f32 %v1181, %v155
  %v1190 = vmul.f32 %v1186, %v156
  %v1191 = vsel %vm484, %v1189, 0.0
  %1192 = vadd.xlane.f32.xlu0 %v1191
  %v1193 = vpop.xlane.xlu0 %1192
  %v1194 = vsel %vm484, %v1190, 0.0
  %1195 = vadd.xlane.f32.xlu0 %v1194
  %v1196 = vpop.xlane.xlu0 %1195
  %v1197 = vadd.f32 %v1193, 1e-08
  %v1198 = vadd.f32 %v1196, 1e-08
  %v1199 = vrcp.pop %v1197
  %v1200 = vmul.f32 %v1189, %v1199
  %v1201 = vrcp.pop %v1198
  %v1202 = vmul.f32 %v1190, %v1201
  %1203 = vrot.lane.b32.xlu0 %v239, 48
  %v1204 = vpop.permute.xlu0 %1203
  %1205 = vrot.lane.b32.xlu0 %v242, 48
  %v1206 = vpop.permute.xlu0 %1205
  %v1210 = vsel %vm484, %v1200, 0
  %v1213 = vsel %vm484, %v1202, 0
  %1215 = vmatprep.subr.mxu0 0.0
  %1216 = vmatpush1.msra.mxu0 0.0
  %1217 = vmatprep.subr.mxu0 0.0
  %1218 = vmatpush1.msra.mxu0 0.0
  %1219 = vmatprep.subr.mxu0 0.0
  %1220 = vmatpush1.msra.mxu0 0.0
  %1221 = vmatprep.subr.mxu0 0.0
  %1222 = vmatpush1.msra.mxu0 0.0
  %1223 = vmatprep.subr.mxu0 0.0
  %1224 = vmatpush1.msra.mxu0 0.0
  %1225 = vmatprep.subr.mxu0 0.0
  %1226 = vmatpush1.msra.mxu0 0.0
  %1227 = vmatprep.subr.mxu0 0.0
  %1228 = vmatpush1.msra.mxu0 0.0
  %1229 = vmatprep.subr.mxu0 0.0
  %1230 = vmatpush1.msra.mxu0 0.0
  %1231 = vmatprep.subr.mxu0 0.0
  %1232 = vmatpush1.msra.mxu0 0.0
  %1233 = vmatprep.subr.mxu0 0.0
  %1234 = vmatpush1.msra.mxu0 0.0
  %1235 = vmatprep.subr.mxu0 0.0
  %1236 = vmatpush1.msra.mxu0 0.0
  %1237 = vmatprep.subr.mxu0 0.0
  %1238 = vmatpush1.msra.mxu0 0.0
  %1239 = vmatprep.subr.mxu0 0.0
  %1240 = vmatpush1.msra.mxu0 0.0
  %1241 = vmatprep.subr.mxu0 0.0
  %1242 = vmatpush1.msra.mxu0 0.0
  %1243 = vmatprep.subr.mxu0 0.0
  %1244 = vmatpush1.msra.mxu0 %v1206
  %1245 = vmatprep.subr.mxu0 0.0
  %1246 = vmatpush1.msra.mxu0 %v1204
  %1247 = vmatprep.subr.mxu0 0.0
  %1248 = vmatpush2.msra.mxu0 0.0
  %1249 = vmatprep.subr.mxu0 0.0
  %1250 = vmatpush2.msra.mxu0 0.0
  %1251 = vmatprep.subr.mxu0 0.0
  %1252 = vmatpush2.msra.mxu0 0.0
  %1253 = vmatprep.subr.mxu0 0.0
  %1254 = vmatpush2.msra.mxu0 0.0
  %1255 = vmatprep.subr.mxu0 0.0
  %1256 = vmatpush2.msra.mxu0 0.0
  %1257 = vmatprep.subr.mxu0 0.0
  %1258 = vmatpush2.msra.mxu0 0.0
  %1259 = vmatprep.subr.mxu0 0.0
  %1260 = vmatpush2.msra.mxu0 0.0
  %1261 = vmatprep.subr.mxu0 0.0
  %1262 = vmatpush2.msra.mxu0 0.0
  %1263 = vmatprep.subr.mxu0 0.0
  %1264 = vmatpush2.msra.mxu0 0.0
  %1265 = vmatprep.subr.mxu0 0.0
  %1266 = vmatpush2.msra.mxu0 0.0
  %1267 = vmatprep.subr.mxu0 0.0
  %1268 = vmatpush2.msra.mxu0 0.0
  %1269 = vmatprep.subr.mxu0 0.0
  %1270 = vmatpush2.msra.mxu0 0.0
  %1271 = vmatprep.subr.mxu0 0.0
  %1272 = vmatpush2.msra.mxu0 0.0
  %1273 = vmatprep.subr.mxu0 0.0
  %1274 = vmatpush2.msra.mxu0 0.0
  %1275 = vmatprep.subr.mxu0 0.0
  %1276 = vmatpush2.msra.mxu0 0.0
  %1277 = vmatprep.subr.mxu0 0.0
  %1278 = vmatpush2.msra.mxu0 0.0
  %1279 = vmatprep.mubr.f32.mxu0 0.0
  %1280 = vmatmul.mubr.f32.gmra.mxu0 %v1210
  %v1281 = vpop.f32.mrf.mxu0
  %v1282 = vadd.f32 0.0, %v1281
  %v1283 = vpop.f32.mrf.mxu0
  %1284 = vmatprep.mubr.f32.mxu0 0.0
  %1285 = vmatmul.mubr.f32.gmra.mxu0 %v1213
  %v1286 = vpop.f32.mrf.mxu0
  %v1287 = vadd.f32 0.0, %v1286
  %v1288 = vpop.f32.mrf.mxu0
  %1289 = vdwg.mxu0
  %1290 = vrot.lane.b32.xlu0 %v151, 24
  %v1291 = vpop.permute.xlu0 %1290
  %1292 = vrot.lane.b32.xlu0 %v152, 24
  %v1293 = vpop.permute.xlu0 %1292
  %v1296 = vmul.f32 %v239, %v1291
  %v1297 = vmul.f32 %v242, %v1293
  %1298 = vrot.lane.b32.xlu0 %v153, 28
  %v1299 = vpop.permute.xlu0 %1298
  %1300 = vrot.lane.b32.xlu0 %v154, 28
  %v1301 = vpop.permute.xlu0 %1300
  %v1304 = vmul.f32 %v239, %v1299
  %v1305 = vmul.f32 %v242, %v1301
  %1308 = vrot.lane.b32.xlu0 %v1304, 124
  %v1309 = vpop.permute.xlu0 %1308
  %1310 = vrot.lane.b32.xlu0 %v1305, 124
  %v1311 = vpop.permute.xlu0 %1310
  %v1314 = vsub.f32 %v1296, %v1309
  %v1315 = vsub.f32 %v1297, %v1311
  %1316 = vrot.lane.b32.xlu0 %v153, 24
  %v1317 = vpop.permute.xlu0 %1316
  %1318 = vrot.lane.b32.xlu0 %v154, 24
  %v1319 = vpop.permute.xlu0 %1318
  %v1322 = vmul.f32 %v239, %v1317
  %v1323 = vmul.f32 %v242, %v1319
  %1324 = vrot.lane.b32.xlu0 %v151, 28
  %v1325 = vpop.permute.xlu0 %1324
  %1326 = vrot.lane.b32.xlu0 %v152, 28
  %v1327 = vpop.permute.xlu0 %1326
  %v1330 = vmul.f32 %v239, %v1325
  %v1331 = vmul.f32 %v242, %v1327
  %1334 = vrot.lane.b32.xlu0 %v1330, 124
  %v1335 = vpop.permute.xlu0 %1334
  %1336 = vrot.lane.b32.xlu0 %v1331, 124
  %v1337 = vpop.permute.xlu0 %1336
  %v1340 = vadd.f32 %v1322, %v1335
  %v1341 = vadd.f32 %v1323, %v1337
  %1344 = vrot.lane.b32.xlu0 %v1314, 104
  %v1345 = vpop.permute.xlu0 %1344
  %1346 = vrot.lane.b32.xlu0 %v1315, 104
  %v1347 = vpop.permute.xlu0 %1346
  %1352 = vrot.lane.b32.xlu0 %v1340, 108
  %v1353 = vpop.permute.xlu0 %1352
  %1354 = vrot.lane.b32.xlu0 %v1341, 108
  %v1355 = vpop.permute.xlu0 %1354
  %v1358 = vsel %vm297, %v1345, %v1353
  %v1359 = vsel %vm297, %v1347, %v1355
  %vm1360 = vcmp.gt.f32.partialorder %v1358, 0.0
  %vm1361 = vcmp.gt.f32.partialorder %v1359, 0.0
  %v1362 = vadd.f32 %v1358, 1.0
  %v1363 = vadd.f32 %v1359, 1.0
  %v1364 = vmin.f32 %v1358, 0.0
  %v1365 = vmin.f32 %v1359, 0.0
  %v1366 = vmul.f32 %v1364, 1.442695
  %v1367 = vpow.pop %v1366
  %v1368 = vmul.f32 %v1365, 1.442695
  %v1369 = vpow.pop %v1368
  %v1370 = vsel %vm1360, %v1362, %v1367
  %v1371 = vsel %vm1361, %v1363, %v1369
  %1372 = vrot.lane.b32.xlu0 %v151, 56
  %v1373 = vpop.permute.xlu0 %1372
  %1374 = vrot.lane.b32.xlu0 %v152, 56
  %v1375 = vpop.permute.xlu0 %1374
  %v1378 = vmul.f32 %v239, %v1373
  %v1379 = vmul.f32 %v242, %v1375
  %1380 = vrot.lane.b32.xlu0 %v153, 60
  %v1381 = vpop.permute.xlu0 %1380
  %1382 = vrot.lane.b32.xlu0 %v154, 60
  %v1383 = vpop.permute.xlu0 %1382
  %v1386 = vmul.f32 %v239, %v1381
  %v1387 = vmul.f32 %v242, %v1383
  %1390 = vrot.lane.b32.xlu0 %v1386, 124
  %v1391 = vpop.permute.xlu0 %1390
  %1392 = vrot.lane.b32.xlu0 %v1387, 124
  %v1393 = vpop.permute.xlu0 %1392
  %v1396 = vsub.f32 %v1378, %v1391
  %v1397 = vsub.f32 %v1379, %v1393
  %1398 = vrot.lane.b32.xlu0 %v153, 56
  %v1399 = vpop.permute.xlu0 %1398
  %1400 = vrot.lane.b32.xlu0 %v154, 56
  %v1401 = vpop.permute.xlu0 %1400
  %v1404 = vmul.f32 %v239, %v1399
  %v1405 = vmul.f32 %v242, %v1401
  %1406 = vrot.lane.b32.xlu0 %v151, 60
  %v1407 = vpop.permute.xlu0 %1406
  %1408 = vrot.lane.b32.xlu0 %v152, 60
  %v1409 = vpop.permute.xlu0 %1408
  %v1412 = vmul.f32 %v239, %v1407
  %v1413 = vmul.f32 %v242, %v1409
  %1416 = vrot.lane.b32.xlu0 %v1412, 124
  %v1417 = vpop.permute.xlu0 %1416
  %1418 = vrot.lane.b32.xlu0 %v1413, 124
  %v1419 = vpop.permute.xlu0 %1418
  %v1422 = vadd.f32 %v1404, %v1417
  %v1423 = vadd.f32 %v1405, %v1419
  %1426 = vrot.lane.b32.xlu0 %v1396, 72
  %v1427 = vpop.permute.xlu0 %1426
  %1428 = vrot.lane.b32.xlu0 %v1397, 72
  %v1429 = vpop.permute.xlu0 %1428
  %1434 = vrot.lane.b32.xlu0 %v1422, 76
  %v1435 = vpop.permute.xlu0 %1434
  %1436 = vrot.lane.b32.xlu0 %v1423, 76
  %v1437 = vpop.permute.xlu0 %1436
  %v1440 = vsel %vm297, %v1427, %v1435
  %v1441 = vsel %vm297, %v1429, %v1437
  %vm1442 = vcmp.gt.f32.partialorder %v1440, 0.0
  %vm1443 = vcmp.gt.f32.partialorder %v1441, 0.0
  %v1444 = vadd.f32 %v1440, 1.0
  %v1445 = vadd.f32 %v1441, 1.0
  %v1446 = vmin.f32 %v1440, 0.0
  %v1447 = vmin.f32 %v1441, 0.0
  %v1448 = vmul.f32 %v1446, 1.442695
  %v1449 = vpow.pop %v1448
  %v1450 = vmul.f32 %v1447, 1.442695
  %v1451 = vpow.pop %v1450
  %v1452 = vsel %vm1442, %v1444, %v1449
  %v1453 = vsel %vm1443, %v1445, %v1451
  %v1455 = vsel %vm394, %v1370, 0
  %v1458 = vsel %vm394, %v1371, 0
  %v1461 = vsel %vm394, %v1452, 0
  %v1464 = vsel %vm394, %v1453, 0
  %1466 = vmatprep.subr.mxu0 0.0
  %1467 = vmatpush1.xpose.msra.mxu0 0.0
  %1468 = vmatprep.subr.mxu0 0.0
  %1469 = vmatpush1.xpose.msra.mxu0 0.0
  %1470 = vmatprep.subr.mxu0 0.0
  %1471 = vmatpush1.xpose.msra.mxu0 0.0
  %1472 = vmatprep.subr.mxu0 0.0
  %1473 = vmatpush1.xpose.msra.mxu0 0.0
  %1474 = vmatprep.subr.mxu0 0.0
  %1475 = vmatpush1.xpose.msra.mxu0 0.0
  %1476 = vmatprep.subr.mxu0 0.0
  %1477 = vmatpush1.xpose.msra.mxu0 0.0
  %1478 = vmatprep.subr.mxu0 0.0
  %1479 = vmatpush1.xpose.msra.mxu0 0.0
  %1480 = vmatprep.subr.mxu0 0.0
  %1481 = vmatpush1.xpose.msra.mxu0 0.0
  %1482 = vmatprep.subr.mxu0 0.0
  %1483 = vmatpush1.xpose.msra.mxu0 0.0
  %1484 = vmatprep.subr.mxu0 0.0
  %1485 = vmatpush1.xpose.msra.mxu0 0.0
  %1486 = vmatprep.subr.mxu0 0.0
  %1487 = vmatpush1.xpose.msra.mxu0 0.0
  %1488 = vmatprep.subr.mxu0 0.0
  %1489 = vmatpush1.xpose.msra.mxu0 0.0
  %1490 = vmatprep.subr.mxu0 0.0
  %1491 = vmatpush1.xpose.msra.mxu0 0.0
  %1492 = vmatprep.subr.mxu0 0.0
  %1493 = vmatpush1.xpose.msra.mxu0 0.0
  %1494 = vmatprep.subr.mxu0 0.0
  %1495 = vmatpush1.xpose.msra.mxu0 %v1464
  %1496 = vmatprep.subr.mxu0 0.0
  %1497 = vmatpush1.xpose.msra.mxu0 %v1461
  %1498 = vmatprep.subr.mxu0 0.0
  %1499 = vmatpush2.xpose.msra.mxu0 0.0
  %1500 = vmatprep.subr.mxu0 0.0
  %1501 = vmatpush2.xpose.msra.mxu0 0.0
  %1502 = vmatprep.subr.mxu0 0.0
  %1503 = vmatpush2.xpose.msra.mxu0 0.0
  %1504 = vmatprep.subr.mxu0 0.0
  %1505 = vmatpush2.xpose.msra.mxu0 0.0
  %1506 = vmatprep.subr.mxu0 0.0
  %1507 = vmatpush2.xpose.msra.mxu0 0.0
  %1508 = vmatprep.subr.mxu0 0.0
  %1509 = vmatpush2.xpose.msra.mxu0 0.0
  %1510 = vmatprep.subr.mxu0 0.0
  %1511 = vmatpush2.xpose.msra.mxu0 0.0
  %1512 = vmatprep.subr.mxu0 0.0
  %1513 = vmatpush2.xpose.msra.mxu0 0.0
  %1514 = vmatprep.subr.mxu0 0.0
  %1515 = vmatpush2.xpose.msra.mxu0 0.0
  %1516 = vmatprep.subr.mxu0 0.0
  %1517 = vmatpush2.xpose.msra.mxu0 0.0
  %1518 = vmatprep.subr.mxu0 0.0
  %1519 = vmatpush2.xpose.msra.mxu0 0.0
  %1520 = vmatprep.subr.mxu0 0.0
  %1521 = vmatpush2.xpose.msra.mxu0 0.0
  %1522 = vmatprep.subr.mxu0 0.0
  %1523 = vmatpush2.xpose.msra.mxu0 0.0
  %1524 = vmatprep.subr.mxu0 0.0
  %1525 = vmatpush2.xpose.msra.mxu0 0.0
  %1526 = vmatprep.subr.mxu0 0.0
  %1527 = vmatpush2.xpose.msra.mxu0 0.0
  %1528 = vmatprep.subr.mxu0 0.0
  %1529 = vmatpush2.xpose.msra.mxu0 0.0
  %1530 = vmatprep.mubr.f32.mxu0 0.0
  %1531 = vmatmul.mubr.f32.gmra.mxu0 %v1455
  %v1532 = vpop.f32.mrf.mxu0
  %v1533 = vadd.f32 0.0, %v1532
  %v1534 = vpop.f32.mrf.mxu0
  %1535 = vmatprep.mubr.f32.mxu0 0.0
  %1536 = vmatmul.mubr.f32.gmra.mxu0 %v1458
  %v1537 = vpop.f32.mrf.mxu0
  %v1538 = vadd.f32 0.0, %v1537
  %v1539 = vpop.f32.mrf.mxu0
  %1540 = vdwg.mxu0
  %v1541 = vmul.f32 %v1533, %v155
  %v1542 = vmul.f32 %v1538, %v156
  %v1543 = vsel %vm484, %v1541, 0.0
  %1544 = vadd.xlane.f32.xlu0 %v1543
  %v1545 = vpop.xlane.xlu0 %1544
  %v1546 = vsel %vm484, %v1542, 0.0
  %1547 = vadd.xlane.f32.xlu0 %v1546
  %v1548 = vpop.xlane.xlu0 %1547
  %v1549 = vadd.f32 %v1545, 1e-08
  %v1550 = vadd.f32 %v1548, 1e-08
  %v1551 = vrcp.pop %v1549
  %v1552 = vmul.f32 %v1541, %v1551
  %v1553 = vrcp.pop %v1550
  %v1554 = vmul.f32 %v1542, %v1553
  %1555 = vrot.lane.b32.xlu0 %v239, 40
  %v1556 = vpop.permute.xlu0 %1555
  %1557 = vrot.lane.b32.xlu0 %v242, 40
  %v1558 = vpop.permute.xlu0 %1557
  %v1562 = vsel %vm484, %v1552, 0
  %v1565 = vsel %vm484, %v1554, 0
  %1567 = vmatprep.subr.mxu0 0.0
  %1568 = vmatpush1.msra.mxu0 0.0
  %1569 = vmatprep.subr.mxu0 0.0
  %1570 = vmatpush1.msra.mxu0 0.0
  %1571 = vmatprep.subr.mxu0 0.0
  %1572 = vmatpush1.msra.mxu0 0.0
  %1573 = vmatprep.subr.mxu0 0.0
  %1574 = vmatpush1.msra.mxu0 0.0
  %1575 = vmatprep.subr.mxu0 0.0
  %1576 = vmatpush1.msra.mxu0 0.0
  %1577 = vmatprep.subr.mxu0 0.0
  %1578 = vmatpush1.msra.mxu0 0.0
  %1579 = vmatprep.subr.mxu0 0.0
  %1580 = vmatpush1.msra.mxu0 0.0
  %1581 = vmatprep.subr.mxu0 0.0
  %1582 = vmatpush1.msra.mxu0 0.0
  %1583 = vmatprep.subr.mxu0 0.0
  %1584 = vmatpush1.msra.mxu0 0.0
  %1585 = vmatprep.subr.mxu0 0.0
  %1586 = vmatpush1.msra.mxu0 0.0
  %1587 = vmatprep.subr.mxu0 0.0
  %1588 = vmatpush1.msra.mxu0 0.0
  %1589 = vmatprep.subr.mxu0 0.0
  %1590 = vmatpush1.msra.mxu0 0.0
  %1591 = vmatprep.subr.mxu0 0.0
  %1592 = vmatpush1.msra.mxu0 0.0
  %1593 = vmatprep.subr.mxu0 0.0
  %1594 = vmatpush1.msra.mxu0 0.0
  %1595 = vmatprep.subr.mxu0 0.0
  %1596 = vmatpush1.msra.mxu0 %v1558
  %1597 = vmatprep.subr.mxu0 0.0
  %1598 = vmatpush1.msra.mxu0 %v1556
  %1599 = vmatprep.subr.mxu0 0.0
  %1600 = vmatpush2.msra.mxu0 0.0
  %1601 = vmatprep.subr.mxu0 0.0
  %1602 = vmatpush2.msra.mxu0 0.0
  %1603 = vmatprep.subr.mxu0 0.0
  %1604 = vmatpush2.msra.mxu0 0.0
  %1605 = vmatprep.subr.mxu0 0.0
  %1606 = vmatpush2.msra.mxu0 0.0
  %1607 = vmatprep.subr.mxu0 0.0
  %1608 = vmatpush2.msra.mxu0 0.0
  %1609 = vmatprep.subr.mxu0 0.0
  %1610 = vmatpush2.msra.mxu0 0.0
  %1611 = vmatprep.subr.mxu0 0.0
  %1612 = vmatpush2.msra.mxu0 0.0
  %1613 = vmatprep.subr.mxu0 0.0
  %1614 = vmatpush2.msra.mxu0 0.0
  %1615 = vmatprep.subr.mxu0 0.0
  %1616 = vmatpush2.msra.mxu0 0.0
  %1617 = vmatprep.subr.mxu0 0.0
  %1618 = vmatpush2.msra.mxu0 0.0
  %1619 = vmatprep.subr.mxu0 0.0
  %1620 = vmatpush2.msra.mxu0 0.0
  %1621 = vmatprep.subr.mxu0 0.0
  %1622 = vmatpush2.msra.mxu0 0.0
  %1623 = vmatprep.subr.mxu0 0.0
  %1624 = vmatpush2.msra.mxu0 0.0
  %1625 = vmatprep.subr.mxu0 0.0
  %1626 = vmatpush2.msra.mxu0 0.0
  %1627 = vmatprep.subr.mxu0 0.0
  %1628 = vmatpush2.msra.mxu0 0.0
  %1629 = vmatprep.subr.mxu0 0.0
  %1630 = vmatpush2.msra.mxu0 0.0
  %1631 = vmatprep.mubr.f32.mxu0 0.0
  %1632 = vmatmul.mubr.f32.gmra.mxu0 %v1562
  %v1633 = vpop.f32.mrf.mxu0
  %v1634 = vadd.f32 0.0, %v1633
  %v1635 = vpop.f32.mrf.mxu0
  %1636 = vmatprep.mubr.f32.mxu0 0.0
  %1637 = vmatmul.mubr.f32.gmra.mxu0 %v1565
  %v1638 = vpop.f32.mrf.mxu0
  %v1639 = vadd.f32 0.0, %v1638
  %v1640 = vpop.f32.mrf.mxu0
  %1641 = vdwg.mxu0
  %1644 = vrot.lane.b32.xlu0 %v930, 8
  %v1645 = vpop.permute.xlu0 %1644
  %1646 = vrot.lane.b32.xlu0 %v935, 8
  %v1647 = vpop.permute.xlu0 %1646
  %1652 = vrot.lane.b32.xlu0 %v1282, 16
  %v1653 = vpop.permute.xlu0 %1652
  %1654 = vrot.lane.b32.xlu0 %v1287, 16
  %v1655 = vpop.permute.xlu0 %1654
  %1660 = vrot.lane.b32.xlu0 %v1634, 24
  %v1661 = vpop.permute.xlu0 %1660
  %1662 = vrot.lane.b32.xlu0 %v1639, 24
  %v1663 = vpop.permute.xlu0 %1662
  %v1666 = vsel %vm394, %v578, %v1645
  %v1667 = vsel %vm394, %v583, %v1647
  %v1668 = vsel %vm484, %v1666, %v1653
  %v1669 = vsel %vm484, %v1667, %v1655
  %vm1670 = vcmask 195584
  %v1671 = vsel %vm1670, %v1668, %v1661
  %v1672 = vsel %vm1670, %v1669, %v1663
  %v1673 = vpack.c.bf16 %v1672, %v1671
  %v1674 = vld [vmem:[%s7] sm:$0xf]
  %v1675 = vld [vmem:[%s7 + $0x4] sm:$0xf]
  %v1676 = vld [vmem:[%s7 + $0x8] sm:$0xf]
  %v1677 = vld [vmem:[%s7 + $0xc] sm:$0xf]
  %v1682 = vunpack.c.l.b16 %v1674
  %v1683 = vunpack.c.l.b16 %v1675
  %v1684 = vunpack.c.l.b16 %v1676
  %v1685 = vunpack.c.l.b16 %v1677
  %v1686 = vpack.c.b16 %v1683, %v1682
  %v1687 = vpack.c.b16 %v1685, %v1684
  %v1691 = vsel %vm160, %v1673, 0
  %1693 = vmatprep.subr.bf16.mxu0 0
  %1694 = vmatpush1.bf16.msra.mxu0 0
  %1695 = vmatprep.subr.bf16.mxu0 0
  %1696 = vmatpush1.bf16.msra.mxu0 0
  %1697 = vmatprep.subr.bf16.mxu0 0
  %1698 = vmatpush1.bf16.msra.mxu0 0
  %1699 = vmatprep.subr.bf16.mxu0 0
  %1700 = vmatpush1.bf16.msra.mxu0 0
  %1701 = vmatprep.subr.bf16.mxu0 0
  %1702 = vmatpush1.bf16.msra.mxu0 0
  %1703 = vmatprep.subr.bf16.mxu0 0
  %1704 = vmatpush1.bf16.msra.mxu0 0
  %1705 = vmatprep.subr.bf16.mxu0 0
  %1706 = vmatpush1.bf16.msra.mxu0 %v1687
  %1707 = vmatprep.subr.bf16.mxu0 0
  %1708 = vmatpush1.bf16.msra.mxu0 %v1686
  %1709 = vmatprep.subr.bf16.mxu0 0
  %1710 = vmatpush2.bf16.msra.mxu0 0
  %1711 = vmatprep.subr.bf16.mxu0 0
  %1712 = vmatpush2.bf16.msra.mxu0 0
  %1713 = vmatprep.subr.bf16.mxu0 0
  %1714 = vmatpush2.bf16.msra.mxu0 0
  %1715 = vmatprep.subr.bf16.mxu0 0
  %1716 = vmatpush2.bf16.msra.mxu0 0
  %1717 = vmatprep.subr.bf16.mxu0 0
  %1718 = vmatpush2.bf16.msra.mxu0 0
  %1719 = vmatprep.subr.bf16.mxu0 0
  %1720 = vmatpush2.bf16.msra.mxu0 0
  %1721 = vmatprep.subr.bf16.mxu0 0
  %1722 = vmatpush2.bf16.msra.mxu0 0
  %1723 = vmatprep.subr.bf16.mxu0 0
  %1724 = vmatpush2.bf16.msra.mxu0 0
  %1725 = vmatprep.mubr.bf16.mxu0 0
  %1726 = vmatmul.mubr.bf16.gmra.mxu0 %v1691
  %v1727 = vpop.f32.mrf.mxu0
  %v1728 = vadd.f32 0.0, %v1727
  %v1729 = vpop.f32.mrf.mxu0
  %v1730 = vpop.f32.mrf.mxu0
  %v1731 = vadd.f32 0.0, %v1730
  %v1732 = vpop.f32.mrf.mxu0
  %1733 = vdwg.mxu0
  %v1734 = vadd.f32 %v143, %v1728
  %v1735 = vadd.f32 %v148, %v1731
  %v1736 = vld [vmem:[%s8] sm:$0x1]
  %v1737 = vmul.f32 %v1734, %v1734
  %v1738 = vmul.f32 %v1735, %v1735
  %v1739 = vsel %vm160, %v1737, 0.0
  %1740 = vadd.xlane.f32.xlu0 %v1739
  %v1741 = vpop.xlane.xlu0 %1740
  %v1742 = vsel %vm160, %v1738, 0.0
  %1743 = vadd.xlane.f32.xlu0 %v1742
  %v1744 = vpop.xlane.xlu0 %1743
  %v1745 = vmul.f32 %v1741, %v167
  %v1746 = vmul.f32 %v1744, %v167
  %v1747 = vadd.f32 %v1745, 1e-05
  %v1748 = vadd.f32 %v1746, 1e-05
  %v1749 = vrsqrt.pop %v1747
  %v1750 = vrsqrt.pop %v1748
  %v1751 = vmul.f32 %v1734, %v1749
  %v1752 = vmul.f32 %v1735, %v1750
  %v1754 = vlaneseq
  %v1755 = vshrl.u32 %v1754, 7
  %v1756 = vsub.s32 0, %v1755
  %v1757 = vrot.slane %v1736, %v1756
  %v1759 = vmul.f32 %v1751, %v1757
  %v1760 = vmul.f32 %v1752, %v1757
  %v1761 = vpack.c.bf16 %v1760, %v1759
  %v1762 = vld [vmem:[%s9] sm:$0xf]
  %v1763 = vld [vmem:[%s9 + $0x4] sm:$0xf]
  %v1764 = vld [vmem:[%s9 + $0x8] sm:$0xf]
  %v1765 = vld [vmem:[%s9 + $0xc] sm:$0xf]
  %v1770 = vunpack.c.l.b16 %v1762
  %v1771 = vunpack.c.l.b16 %v1763
  %v1772 = vunpack.c.l.b16 %v1764
  %v1773 = vunpack.c.l.b16 %v1765
  %v1774 = vpack.c.b16 %v1771, %v1770
  %v1775 = vpack.c.b16 %v1773, %v1772
  %v1779 = vsel %vm160, %v1761, 0
  %1781 = vmatprep.subr.bf16.mxu0 0
  %1782 = vmatpush1.bf16.msra.mxu0 0
  %1783 = vmatprep.subr.bf16.mxu0 0
  %1784 = vmatpush1.bf16.msra.mxu0 0
  %1785 = vmatprep.subr.bf16.mxu0 0
  %1786 = vmatpush1.bf16.msra.mxu0 0
  %1787 = vmatprep.subr.bf16.mxu0 0
  %1788 = vmatpush1.bf16.msra.mxu0 0
  %1789 = vmatprep.subr.bf16.mxu0 0
  %1790 = vmatpush1.bf16.msra.mxu0 0
  %1791 = vmatprep.subr.bf16.mxu0 0
  %1792 = vmatpush1.bf16.msra.mxu0 0
  %1793 = vmatprep.subr.bf16.mxu0 0
  %1794 = vmatpush1.bf16.msra.mxu0 %v1775
  %1795 = vmatprep.subr.bf16.mxu0 0
  %1796 = vmatpush1.bf16.msra.mxu0 %v1774
  %1797 = vmatprep.subr.bf16.mxu0 0
  %1798 = vmatpush2.bf16.msra.mxu0 0
  %1799 = vmatprep.subr.bf16.mxu0 0
  %1800 = vmatpush2.bf16.msra.mxu0 0
  %1801 = vmatprep.subr.bf16.mxu0 0
  %1802 = vmatpush2.bf16.msra.mxu0 0
  %1803 = vmatprep.subr.bf16.mxu0 0
  %1804 = vmatpush2.bf16.msra.mxu0 0
  %1805 = vmatprep.subr.bf16.mxu0 0
  %1806 = vmatpush2.bf16.msra.mxu0 0
  %1807 = vmatprep.subr.bf16.mxu0 0
  %1808 = vmatpush2.bf16.msra.mxu0 0
  %1809 = vmatprep.subr.bf16.mxu0 0
  %1810 = vmatpush2.bf16.msra.mxu0 0
  %1811 = vmatprep.subr.bf16.mxu0 0
  %1812 = vmatpush2.bf16.msra.mxu0 0
  %1813 = vmatprep.mubr.bf16.mxu0 0
  %1814 = vmatmul.mubr.bf16.gmra.mxu0 %v1779
  %v1815 = vpop.f32.mrf.mxu0
  %v1816 = vadd.f32 0.0, %v1815
  %v1817 = vpop.f32.mrf.mxu0
  %v1818 = vpop.f32.mrf.mxu0
  %v1819 = vadd.f32 0.0, %v1818
  %v1820 = vpop.f32.mrf.mxu0
  %1821 = vdwg.mxu0
  %v1822 = vsub.f32 0.0, %v1816
  %v1823 = vsub.f32 0.0, %v1819
  %v1824 = vmul.f32 %v1822, 1.442695
  %v1825 = vpow.pop %v1824
  %v1826 = vmul.f32 %v1823, 1.442695
  %v1827 = vpow.pop %v1826
  %v1828 = vadd.f32 %v1825, 1.0
  %v1829 = vadd.f32 %v1827, 1.0
  %v1830 = vrcp.pop %v1828
  %v1831 = vmul.f32 1.0, %v1830
  %v1832 = vrcp.pop %v1829
  %v1833 = vmul.f32 1.0, %v1832
  %v1834 = vmul.f32 %v1816, %v1831
  %v1835 = vmul.f32 %v1819, %v1833
  %1838 = vrot.lane.b32.xlu0 %v1816, 64
  %v1839 = vpop.permute.xlu0 %1838
  %1840 = vrot.lane.b32.xlu0 %v1819, 64
  %v1841 = vpop.permute.xlu0 %1840
  %v1844 = vmul.f32 %v1834, %v1839
  %v1845 = vmul.f32 %v1835, %v1841
  %v1846 = vpack.c.bf16 %v1845, %v1844
  %v1847 = vld [vmem:[%s10] sm:$0xf]
  %v1848 = vld [vmem:[%s10 + $0x4] sm:$0xf]
  %v1849 = vld [vmem:[%s10 + $0x8] sm:$0xf]
  %v1850 = vld [vmem:[%s10 + $0xc] sm:$0xf]
  %v1851 = vld [vmem:[%s10 + $0x10] sm:$0xf]
  %v1852 = vld [vmem:[%s10 + $0x14] sm:$0xf]
  %v1853 = vld [vmem:[%s10 + $0x18] sm:$0xf]
  %v1854 = vld [vmem:[%s10 + $0x1c] sm:$0xf]
  %v1863 = vunpack.c.l.b16 %v1847
  %v1864 = vunpack.c.l.b16 %v1848
  %v1865 = vunpack.c.l.b16 %v1849
  %v1866 = vunpack.c.l.b16 %v1850
  %v1867 = vunpack.c.l.b16 %v1851
  %v1868 = vunpack.c.l.b16 %v1852
  %v1869 = vunpack.c.l.b16 %v1853
  %v1870 = vunpack.c.l.b16 %v1854
  %v1871 = vpack.c.b16 %v1864, %v1863
  %v1872 = vpack.c.b16 %v1866, %v1865
  %v1873 = vpack.c.b16 %v1868, %v1867
  %v1874 = vpack.c.b16 %v1870, %v1869
  %v1880 = vsel %vm69, %v1846, 0
  %1882 = vmatprep.subr.bf16.mxu0 0
  %1883 = vmatpush1.bf16.msra.mxu0 0
  %1884 = vmatprep.subr.bf16.mxu0 0
  %1885 = vmatpush1.bf16.msra.mxu0 0
  %1886 = vmatprep.subr.bf16.mxu0 0
  %1887 = vmatpush1.bf16.msra.mxu0 0
  %1888 = vmatprep.subr.bf16.mxu0 0
  %1889 = vmatpush1.bf16.msra.mxu0 0
  %1890 = vmatprep.subr.bf16.mxu0 0
  %1891 = vmatpush1.bf16.msra.mxu0 %v1874
  %1892 = vmatprep.subr.bf16.mxu0 0
  %1893 = vmatpush1.bf16.msra.mxu0 %v1873
  %1894 = vmatprep.subr.bf16.mxu0 0
  %1895 = vmatpush1.bf16.msra.mxu0 %v1872
  %1896 = vmatprep.subr.bf16.mxu0 0
  %1897 = vmatpush1.bf16.msra.mxu0 %v1871
  %1898 = vmatprep.subr.bf16.mxu0 0
  %1899 = vmatpush2.bf16.msra.mxu0 0
  %1900 = vmatprep.subr.bf16.mxu0 0
  %1901 = vmatpush2.bf16.msra.mxu0 0
  %1902 = vmatprep.subr.bf16.mxu0 0
  %1903 = vmatpush2.bf16.msra.mxu0 0
  %1904 = vmatprep.subr.bf16.mxu0 0
  %1905 = vmatpush2.bf16.msra.mxu0 0
  %1906 = vmatprep.subr.bf16.mxu0 0
  %1907 = vmatpush2.bf16.msra.mxu0 0
  %1908 = vmatprep.subr.bf16.mxu0 0
  %1909 = vmatpush2.bf16.msra.mxu0 0
  %1910 = vmatprep.subr.bf16.mxu0 0
  %1911 = vmatpush2.bf16.msra.mxu0 0
  %1912 = vmatprep.subr.bf16.mxu0 0
  %1913 = vmatpush2.bf16.msra.mxu0 0
  %1914 = vmatprep.mubr.bf16.mxu0 0
  %1915 = vmatmul.mubr.bf16.gmra.mxu0 %v1880
  %v1916 = vpop.f32.mrf.mxu0
  %v1917 = vadd.f32 0.0, %v1916
  %v1918 = vpop.f32.mrf.mxu0
  %v1919 = vpop.f32.mrf.mxu0
  %v1920 = vadd.f32 0.0, %v1919
  %v1921 = vpop.f32.mrf.mxu0
  %1922 = vdwg.mxu0
  %v1923 = vadd.f32 %v1734, %v1917
  %v1924 = vadd.f32 %v1735, %v1920
  %s1925 = scalar_lea.vmem %s5, 1
  %v1926 = vld [vmem:[%s1925] sm:$0x1]
  %v1927 = vmul.f32 %v1923, %v1923
  %v1928 = vmul.f32 %v1924, %v1924
  %v1929 = vsel %vm160, %v1927, 0.0
  %1930 = vadd.xlane.f32.xlu0 %v1929
  %v1931 = vpop.xlane.xlu0 %1930
  %v1932 = vsel %vm160, %v1928, 0.0
  %1933 = vadd.xlane.f32.xlu0 %v1932
  %v1934 = vpop.xlane.xlu0 %1933
  %v1935 = vmul.f32 %v1931, %v167
  %v1936 = vmul.f32 %v1934, %v167
  %v1937 = vadd.f32 %v1935, 1e-05
  %v1938 = vadd.f32 %v1936, 1e-05
  %v1939 = vrsqrt.pop %v1937
  %v1940 = vrsqrt.pop %v1938
  %v1941 = vmul.f32 %v1923, %v1939
  %v1942 = vmul.f32 %v1924, %v1940
  %v1944 = vlaneseq
  %v1945 = vshrl.u32 %v1944, 7
  %v1946 = vsub.s32 0, %v1945
  %v1947 = vrot.slane %v1926, %v1946
  %v1949 = vmul.f32 %v1941, %v1947
  %v1950 = vmul.f32 %v1942, %v1947
  %v1951 = vpack.c.bf16 %v1950, %v1949
  %s1952 = scalar_lea.vmem %s6, 16
  %v1953 = vld [vmem:[%s1952] sm:$0xf]
  %v1954 = vld [vmem:[%s1952 + $0x4] sm:$0xf]
  %v1955 = vld [vmem:[%s1952 + $0x8] sm:$0xf]
  %v1956 = vld [vmem:[%s1952 + $0xc] sm:$0xf]
  %v1961 = vunpack.c.l.b16 %v1953
  %v1962 = vunpack.c.l.b16 %v1954
  %v1963 = vunpack.c.l.b16 %v1955
  %v1964 = vunpack.c.l.b16 %v1956
  %v1965 = vpack.c.b16 %v1962, %v1961
  %v1966 = vpack.c.b16 %v1964, %v1963
  %v1970 = vsel %vm160, %v1951, 0
  %1972 = vmatprep.subr.bf16.mxu0 0
  %1973 = vmatpush1.bf16.msra.mxu0 0
  %1974 = vmatprep.subr.bf16.mxu0 0
  %1975 = vmatpush1.bf16.msra.mxu0 0
  %1976 = vmatprep.subr.bf16.mxu0 0
  %1977 = vmatpush1.bf16.msra.mxu0 0
  %1978 = vmatprep.subr.bf16.mxu0 0
  %1979 = vmatpush1.bf16.msra.mxu0 0
  %1980 = vmatprep.subr.bf16.mxu0 0
  %1981 = vmatpush1.bf16.msra.mxu0 0
  %1982 = vmatprep.subr.bf16.mxu0 0
  %1983 = vmatpush1.bf16.msra.mxu0 0
  %1984 = vmatprep.subr.bf16.mxu0 0
  %1985 = vmatpush1.bf16.msra.mxu0 %v1966
  %1986 = vmatprep.subr.bf16.mxu0 0
  %1987 = vmatpush1.bf16.msra.mxu0 %v1965
  %1988 = vmatprep.subr.bf16.mxu0 0
  %1989 = vmatpush2.bf16.msra.mxu0 0
  %1990 = vmatprep.subr.bf16.mxu0 0
  %1991 = vmatpush2.bf16.msra.mxu0 0
  %1992 = vmatprep.subr.bf16.mxu0 0
  %1993 = vmatpush2.bf16.msra.mxu0 0
  %1994 = vmatprep.subr.bf16.mxu0 0
  %1995 = vmatpush2.bf16.msra.mxu0 0
  %1996 = vmatprep.subr.bf16.mxu0 0
  %1997 = vmatpush2.bf16.msra.mxu0 0
  %1998 = vmatprep.subr.bf16.mxu0 0
  %1999 = vmatpush2.bf16.msra.mxu0 0
  %2000 = vmatprep.subr.bf16.mxu0 0
  %2001 = vmatpush2.bf16.msra.mxu0 0
  %2002 = vmatprep.subr.bf16.mxu0 0
  %2003 = vmatpush2.bf16.msra.mxu0 0
  %2004 = vmatprep.mubr.bf16.mxu0 0
  %2005 = vmatmul.mubr.bf16.gmra.mxu0 %v1970
  %v2006 = vpop.f32.mrf.mxu0
  %v2007 = vadd.f32 0.0, %v2006
  %v2008 = vpop.f32.mrf.mxu0
  %v2009 = vpop.f32.mrf.mxu0
  %v2010 = vadd.f32 0.0, %v2009
  %v2011 = vpop.f32.mrf.mxu0
  %2012 = vdwg.mxu0
  %v2013 = vmul.f32 %v2007, %v151
  %v2014 = vmul.f32 %v2010, %v152
  %v2015 = vmul.f32 %v2007, %v250
  %v2016 = vmul.f32 %v2010, %v252
  %2019 = vrot.lane.b32.xlu0 %v2015, 124
  %v2020 = vpop.permute.xlu0 %2019
  %2021 = vrot.lane.b32.xlu0 %v2016, 124
  %v2022 = vpop.permute.xlu0 %2021
  %v2025 = vsub.f32 %v2013, %v2020
  %v2026 = vsub.f32 %v2014, %v2022
  %v2027 = vmul.f32 %v2007, %v153
  %v2028 = vmul.f32 %v2010, %v154
  %v2029 = vmul.f32 %v2007, %v272
  %v2030 = vmul.f32 %v2010, %v274
  %2033 = vrot.lane.b32.xlu0 %v2029, 124
  %v2034 = vpop.permute.xlu0 %2033
  %2035 = vrot.lane.b32.xlu0 %v2030, 124
  %v2036 = vpop.permute.xlu0 %2035
  %v2039 = vadd.f32 %v2027, %v2034
  %v2040 = vadd.f32 %v2028, %v2036
  %2043 = vrot.lane.b32.xlu0 %v2039, 4
  %v2044 = vpop.permute.xlu0 %2043
  %2045 = vrot.lane.b32.xlu0 %v2040, 4
  %v2046 = vpop.permute.xlu0 %2045
  %v2049 = vsel %vm297, %v2025, %v2044
  %v2050 = vsel %vm297, %v2026, %v2046
  %vm2051 = vcmp.gt.f32.partialorder %v2049, 0.0
  %vm2052 = vcmp.gt.f32.partialorder %v2050, 0.0
  %v2053 = vadd.f32 %v2049, 1.0
  %v2054 = vadd.f32 %v2050, 1.0
  %v2055 = vmin.f32 %v2049, 0.0
  %v2056 = vmin.f32 %v2050, 0.0
  %v2057 = vmul.f32 %v2055, 1.442695
  %v2058 = vpow.pop %v2057
  %v2059 = vmul.f32 %v2056, 1.442695
  %v2060 = vpow.pop %v2059
  %v2061 = vsel %vm2051, %v2053, %v2058
  %v2062 = vsel %vm2052, %v2054, %v2060
  %v2063 = vmul.f32 %v2007, %v313
  %v2064 = vmul.f32 %v2010, %v315
  %v2065 = vmul.f32 %v2007, %v321
  %v2066 = vmul.f32 %v2010, %v323
  %2069 = vrot.lane.b32.xlu0 %v2065, 124
  %v2070 = vpop.permute.xlu0 %2069
  %2071 = vrot.lane.b32.xlu0 %v2066, 124
  %v2072 = vpop.permute.xlu0 %2071
  %v2075 = vsub.f32 %v2063, %v2070
  %v2076 = vsub.f32 %v2064, %v2072
  %v2077 = vmul.f32 %v2007, %v339
  %v2078 = vmul.f32 %v2010, %v341
  %v2079 = vmul.f32 %v2007, %v347
  %v2080 = vmul.f32 %v2010, %v349
  %2083 = vrot.lane.b32.xlu0 %v2079, 124
  %v2084 = vpop.permute.xlu0 %2083
  %2085 = vrot.lane.b32.xlu0 %v2080, 124
  %v2086 = vpop.permute.xlu0 %2085
  %v2089 = vadd.f32 %v2077, %v2084
  %v2090 = vadd.f32 %v2078, %v2086
  %2093 = vrot.lane.b32.xlu0 %v2075, 96
  %v2094 = vpop.permute.xlu0 %2093
  %2095 = vrot.lane.b32.xlu0 %v2076, 96
  %v2096 = vpop.permute.xlu0 %2095
  %2101 = vrot.lane.b32.xlu0 %v2089, 100
  %v2102 = vpop.permute.xlu0 %2101
  %2103 = vrot.lane.b32.xlu0 %v2090, 100
  %v2104 = vpop.permute.xlu0 %2103
  %v2107 = vsel %vm297, %v2094, %v2102
  %v2108 = vsel %vm297, %v2096, %v2104
  %vm2109 = vcmp.gt.f32.partialorder %v2107, 0.0
  %vm2110 = vcmp.gt.f32.partialorder %v2108, 0.0
  %v2111 = vadd.f32 %v2107, 1.0
  %v2112 = vadd.f32 %v2108, 1.0
  %v2113 = vmin.f32 %v2107, 0.0
  %v2114 = vmin.f32 %v2108, 0.0
  %v2115 = vmul.f32 %v2113, 1.442695
  %v2116 = vpow.pop %v2115
  %v2117 = vmul.f32 %v2114, 1.442695
  %v2118 = vpow.pop %v2117
  %v2119 = vsel %vm2109, %v2111, %v2116
  %v2120 = vsel %vm2110, %v2112, %v2118
  %v2122 = vsel %vm394, %v2061, 0
  %v2125 = vsel %vm394, %v2062, 0
  %v2128 = vsel %vm394, %v2119, 0
  %v2131 = vsel %vm394, %v2120, 0
  %2133 = vmatprep.subr.mxu0 0.0
  %2134 = vmatpush1.xpose.msra.mxu0 0.0
  %2135 = vmatprep.subr.mxu0 0.0
  %2136 = vmatpush1.xpose.msra.mxu0 0.0
  %2137 = vmatprep.subr.mxu0 0.0
  %2138 = vmatpush1.xpose.msra.mxu0 0.0
  %2139 = vmatprep.subr.mxu0 0.0
  %2140 = vmatpush1.xpose.msra.mxu0 0.0
  %2141 = vmatprep.subr.mxu0 0.0
  %2142 = vmatpush1.xpose.msra.mxu0 0.0
  %2143 = vmatprep.subr.mxu0 0.0
  %2144 = vmatpush1.xpose.msra.mxu0 0.0
  %2145 = vmatprep.subr.mxu0 0.0
  %2146 = vmatpush1.xpose.msra.mxu0 0.0
  %2147 = vmatprep.subr.mxu0 0.0
  %2148 = vmatpush1.xpose.msra.mxu0 0.0
  %2149 = vmatprep.subr.mxu0 0.0
  %2150 = vmatpush1.xpose.msra.mxu0 0.0
  %2151 = vmatprep.subr.mxu0 0.0
  %2152 = vmatpush1.xpose.msra.mxu0 0.0
  %2153 = vmatprep.subr.mxu0 0.0
  %2154 = vmatpush1.xpose.msra.mxu0 0.0
  %2155 = vmatprep.subr.mxu0 0.0
  %2156 = vmatpush1.xpose.msra.mxu0 0.0
  %2157 = vmatprep.subr.mxu0 0.0
  %2158 = vmatpush1.xpose.msra.mxu0 0.0
  %2159 = vmatprep.subr.mxu0 0.0
  %2160 = vmatpush1.xpose.msra.mxu0 0.0
  %2161 = vmatprep.subr.mxu0 0.0
  %2162 = vmatpush1.xpose.msra.mxu0 %v2131
  %2163 = vmatprep.subr.mxu0 0.0
  %2164 = vmatpush1.xpose.msra.mxu0 %v2128
  %2165 = vmatprep.subr.mxu0 0.0
  %2166 = vmatpush2.xpose.msra.mxu0 0.0
  %2167 = vmatprep.subr.mxu0 0.0
  %2168 = vmatpush2.xpose.msra.mxu0 0.0
  %2169 = vmatprep.subr.mxu0 0.0
  %2170 = vmatpush2.xpose.msra.mxu0 0.0
  %2171 = vmatprep.subr.mxu0 0.0
  %2172 = vmatpush2.xpose.msra.mxu0 0.0
  %2173 = vmatprep.subr.mxu0 0.0
  %2174 = vmatpush2.xpose.msra.mxu0 0.0
  %2175 = vmatprep.subr.mxu0 0.0
  %2176 = vmatpush2.xpose.msra.mxu0 0.0
  %2177 = vmatprep.subr.mxu0 0.0
  %2178 = vmatpush2.xpose.msra.mxu0 0.0
  %2179 = vmatprep.subr.mxu0 0.0
  %2180 = vmatpush2.xpose.msra.mxu0 0.0
  %2181 = vmatprep.subr.mxu0 0.0
  %2182 = vmatpush2.xpose.msra.mxu0 0.0
  %2183 = vmatprep.subr.mxu0 0.0
  %2184 = vmatpush2.xpose.msra.mxu0 0.0
  %2185 = vmatprep.subr.mxu0 0.0
  %2186 = vmatpush2.xpose.msra.mxu0 0.0
  %2187 = vmatprep.subr.mxu0 0.0
  %2188 = vmatpush2.xpose.msra.mxu0 0.0
  %2189 = vmatprep.subr.mxu0 0.0
  %2190 = vmatpush2.xpose.msra.mxu0 0.0
  %2191 = vmatprep.subr.mxu0 0.0
  %2192 = vmatpush2.xpose.msra.mxu0 0.0
  %2193 = vmatprep.subr.mxu0 0.0
  %2194 = vmatpush2.xpose.msra.mxu0 0.0
  %2195 = vmatprep.subr.mxu0 0.0
  %2196 = vmatpush2.xpose.msra.mxu0 0.0
  %2197 = vmatprep.mubr.f32.mxu0 0.0
  %2198 = vmatmul.mubr.f32.gmra.mxu0 %v2122
  %v2199 = vpop.f32.mrf.mxu0
  %v2200 = vadd.f32 0.0, %v2199
  %v2201 = vpop.f32.mrf.mxu0
  %2202 = vmatprep.mubr.f32.mxu0 0.0
  %2203 = vmatmul.mubr.f32.gmra.mxu0 %v2125
  %v2204 = vpop.f32.mrf.mxu0
  %v2205 = vadd.f32 0.0, %v2204
  %v2206 = vpop.f32.mrf.mxu0
  %2207 = vdwg.mxu0
  %v2208 = vmul.f32 %v2200, %v155
  %v2209 = vmul.f32 %v2205, %v156
  %v2210 = vsel %vm484, %v2208, 0.0
  %2211 = vadd.xlane.f32.xlu0 %v2210
  %v2212 = vpop.xlane.xlu0 %2211
  %v2213 = vsel %vm484, %v2209, 0.0
  %2214 = vadd.xlane.f32.xlu0 %v2213
  %v2215 = vpop.xlane.xlu0 %2214
  %v2216 = vadd.f32 %v2212, 1e-08
  %v2217 = vadd.f32 %v2215, 1e-08
  %v2218 = vrcp.pop %v2216
  %v2219 = vmul.f32 %v2208, %v2218
  %v2220 = vrcp.pop %v2217
  %v2221 = vmul.f32 %v2209, %v2220
  %2224 = vrot.lane.b32.xlu0 %v2007, 64
  %v2225 = vpop.permute.xlu0 %2224
  %2226 = vrot.lane.b32.xlu0 %v2010, 64
  %v2227 = vpop.permute.xlu0 %2226
  %v2231 = vsel %vm484, %v2219, 0
  %v2234 = vsel %vm484, %v2221, 0
  %2236 = vmatprep.subr.mxu0 0.0
  %2237 = vmatpush1.msra.mxu0 0.0
  %2238 = vmatprep.subr.mxu0 0.0
  %2239 = vmatpush1.msra.mxu0 0.0
  %2240 = vmatprep.subr.mxu0 0.0
  %2241 = vmatpush1.msra.mxu0 0.0
  %2242 = vmatprep.subr.mxu0 0.0
  %2243 = vmatpush1.msra.mxu0 0.0
  %2244 = vmatprep.subr.mxu0 0.0
  %2245 = vmatpush1.msra.mxu0 0.0
  %2246 = vmatprep.subr.mxu0 0.0
  %2247 = vmatpush1.msra.mxu0 0.0
  %2248 = vmatprep.subr.mxu0 0.0
  %2249 = vmatpush1.msra.mxu0 0.0
  %2250 = vmatprep.subr.mxu0 0.0
  %2251 = vmatpush1.msra.mxu0 0.0
  %2252 = vmatprep.subr.mxu0 0.0
  %2253 = vmatpush1.msra.mxu0 0.0
  %2254 = vmatprep.subr.mxu0 0.0
  %2255 = vmatpush1.msra.mxu0 0.0
  %2256 = vmatprep.subr.mxu0 0.0
  %2257 = vmatpush1.msra.mxu0 0.0
  %2258 = vmatprep.subr.mxu0 0.0
  %2259 = vmatpush1.msra.mxu0 0.0
  %2260 = vmatprep.subr.mxu0 0.0
  %2261 = vmatpush1.msra.mxu0 0.0
  %2262 = vmatprep.subr.mxu0 0.0
  %2263 = vmatpush1.msra.mxu0 0.0
  %2264 = vmatprep.subr.mxu0 0.0
  %2265 = vmatpush1.msra.mxu0 %v2227
  %2266 = vmatprep.subr.mxu0 0.0
  %2267 = vmatpush1.msra.mxu0 %v2225
  %2268 = vmatprep.subr.mxu0 0.0
  %2269 = vmatpush2.msra.mxu0 0.0
  %2270 = vmatprep.subr.mxu0 0.0
  %2271 = vmatpush2.msra.mxu0 0.0
  %2272 = vmatprep.subr.mxu0 0.0
  %2273 = vmatpush2.msra.mxu0 0.0
  %2274 = vmatprep.subr.mxu0 0.0
  %2275 = vmatpush2.msra.mxu0 0.0
  %2276 = vmatprep.subr.mxu0 0.0
  %2277 = vmatpush2.msra.mxu0 0.0
  %2278 = vmatprep.subr.mxu0 0.0
  %2279 = vmatpush2.msra.mxu0 0.0
  %2280 = vmatprep.subr.mxu0 0.0
  %2281 = vmatpush2.msra.mxu0 0.0
  %2282 = vmatprep.subr.mxu0 0.0
  %2283 = vmatpush2.msra.mxu0 0.0
  %2284 = vmatprep.subr.mxu0 0.0
  %2285 = vmatpush2.msra.mxu0 0.0
  %2286 = vmatprep.subr.mxu0 0.0
  %2287 = vmatpush2.msra.mxu0 0.0
  %2288 = vmatprep.subr.mxu0 0.0
  %2289 = vmatpush2.msra.mxu0 0.0
  %2290 = vmatprep.subr.mxu0 0.0
  %2291 = vmatpush2.msra.mxu0 0.0
  %2292 = vmatprep.subr.mxu0 0.0
  %2293 = vmatpush2.msra.mxu0 0.0
  %2294 = vmatprep.subr.mxu0 0.0
  %2295 = vmatpush2.msra.mxu0 0.0
  %2296 = vmatprep.subr.mxu0 0.0
  %2297 = vmatpush2.msra.mxu0 0.0
  %2298 = vmatprep.subr.mxu0 0.0
  %2299 = vmatpush2.msra.mxu0 0.0
  %2300 = vmatprep.mubr.f32.mxu0 0.0
  %2301 = vmatmul.mubr.f32.gmra.mxu0 %v2231
  %v2302 = vpop.f32.mrf.mxu0
  %v2303 = vadd.f32 0.0, %v2302
  %v2304 = vpop.f32.mrf.mxu0
  %2305 = vmatprep.mubr.f32.mxu0 0.0
  %2306 = vmatmul.mubr.f32.gmra.mxu0 %v2234
  %v2307 = vpop.f32.mrf.mxu0
  %v2308 = vadd.f32 0.0, %v2307
  %v2309 = vpop.f32.mrf.mxu0
  %2310 = vdwg.mxu0
  %v2311 = vmul.f32 %v2007, %v587
  %v2312 = vmul.f32 %v2010, %v589
  %v2313 = vmul.f32 %v2007, %v595
  %v2314 = vmul.f32 %v2010, %v597
  %2317 = vrot.lane.b32.xlu0 %v2313, 124
  %v2318 = vpop.permute.xlu0 %2317
  %2319 = vrot.lane.b32.xlu0 %v2314, 124
  %v2320 = vpop.permute.xlu0 %2319
  %v2323 = vsub.f32 %v2311, %v2318
  %v2324 = vsub.f32 %v2312, %v2320
  %v2325 = vmul.f32 %v2007, %v613
  %v2326 = vmul.f32 %v2010, %v615
  %v2327 = vmul.f32 %v2007, %v621
  %v2328 = vmul.f32 %v2010, %v623
  %2331 = vrot.lane.b32.xlu0 %v2327, 124
  %v2332 = vpop.permute.xlu0 %2331
  %2333 = vrot.lane.b32.xlu0 %v2328, 124
  %v2334 = vpop.permute.xlu0 %2333
  %v2337 = vadd.f32 %v2325, %v2332
  %v2338 = vadd.f32 %v2326, %v2334
  %2341 = vrot.lane.b32.xlu0 %v2323, 120
  %v2342 = vpop.permute.xlu0 %2341
  %2343 = vrot.lane.b32.xlu0 %v2324, 120
  %v2344 = vpop.permute.xlu0 %2343
  %2349 = vrot.lane.b32.xlu0 %v2337, 124
  %v2350 = vpop.permute.xlu0 %2349
  %2351 = vrot.lane.b32.xlu0 %v2338, 124
  %v2352 = vpop.permute.xlu0 %2351
  %v2355 = vsel %vm297, %v2342, %v2350
  %v2356 = vsel %vm297, %v2344, %v2352
  %vm2357 = vcmp.gt.f32.partialorder %v2355, 0.0
  %vm2358 = vcmp.gt.f32.partialorder %v2356, 0.0
  %v2359 = vadd.f32 %v2355, 1.0
  %v2360 = vadd.f32 %v2356, 1.0
  %v2361 = vmin.f32 %v2355, 0.0
  %v2362 = vmin.f32 %v2356, 0.0
  %v2363 = vmul.f32 %v2361, 1.442695
  %v2364 = vpow.pop %v2363
  %v2365 = vmul.f32 %v2362, 1.442695
  %v2366 = vpow.pop %v2365
  %v2367 = vsel %vm2357, %v2359, %v2364
  %v2368 = vsel %vm2358, %v2360, %v2366
  %v2369 = vmul.f32 %v2007, %v669
  %v2370 = vmul.f32 %v2010, %v671
  %v2371 = vmul.f32 %v2007, %v677
  %v2372 = vmul.f32 %v2010, %v679
  %2375 = vrot.lane.b32.xlu0 %v2371, 124
  %v2376 = vpop.permute.xlu0 %2375
  %2377 = vrot.lane.b32.xlu0 %v2372, 124
  %v2378 = vpop.permute.xlu0 %2377
  %v2381 = vsub.f32 %v2369, %v2376
  %v2382 = vsub.f32 %v2370, %v2378
  %v2383 = vmul.f32 %v2007, %v695
  %v2384 = vmul.f32 %v2010, %v697
  %v2385 = vmul.f32 %v2007, %v703
  %v2386 = vmul.f32 %v2010, %v705
  %2389 = vrot.lane.b32.xlu0 %v2385, 124
  %v2390 = vpop.permute.xlu0 %2389
  %2391 = vrot.lane.b32.xlu0 %v2386, 124
  %v2392 = vpop.permute.xlu0 %2391
  %v2395 = vadd.f32 %v2383, %v2390
  %v2396 = vadd.f32 %v2384, %v2392
  %2399 = vrot.lane.b32.xlu0 %v2381, 88
  %v2400 = vpop.permute.xlu0 %2399
  %2401 = vrot.lane.b32.xlu0 %v2382, 88
  %v2402 = vpop.permute.xlu0 %2401
  %2407 = vrot.lane.b32.xlu0 %v2395, 92
  %v2408 = vpop.permute.xlu0 %2407
  %2409 = vrot.lane.b32.xlu0 %v2396, 92
  %v2410 = vpop.permute.xlu0 %2409
  %v2413 = vsel %vm297, %v2400, %v2408
  %v2414 = vsel %vm297, %v2402, %v2410
  %vm2415 = vcmp.gt.f32.partialorder %v2413, 0.0
  %vm2416 = vcmp.gt.f32.partialorder %v2414, 0.0
  %v2417 = vadd.f32 %v2413, 1.0
  %v2418 = vadd.f32 %v2414, 1.0
  %v2419 = vmin.f32 %v2413, 0.0
  %v2420 = vmin.f32 %v2414, 0.0
  %v2421 = vmul.f32 %v2419, 1.442695
  %v2422 = vpow.pop %v2421
  %v2423 = vmul.f32 %v2420, 1.442695
  %v2424 = vpow.pop %v2423
  %v2425 = vsel %vm2415, %v2417, %v2422
  %v2426 = vsel %vm2416, %v2418, %v2424
  %v2428 = vsel %vm394, %v2367, 0
  %v2431 = vsel %vm394, %v2368, 0
  %v2434 = vsel %vm394, %v2425, 0
  %v2437 = vsel %vm394, %v2426, 0
  %2439 = vmatprep.subr.mxu0 0.0
  %2440 = vmatpush1.xpose.msra.mxu0 0.0
  %2441 = vmatprep.subr.mxu0 0.0
  %2442 = vmatpush1.xpose.msra.mxu0 0.0
  %2443 = vmatprep.subr.mxu0 0.0
  %2444 = vmatpush1.xpose.msra.mxu0 0.0
  %2445 = vmatprep.subr.mxu0 0.0
  %2446 = vmatpush1.xpose.msra.mxu0 0.0
  %2447 = vmatprep.subr.mxu0 0.0
  %2448 = vmatpush1.xpose.msra.mxu0 0.0
  %2449 = vmatprep.subr.mxu0 0.0
  %2450 = vmatpush1.xpose.msra.mxu0 0.0
  %2451 = vmatprep.subr.mxu0 0.0
  %2452 = vmatpush1.xpose.msra.mxu0 0.0
  %2453 = vmatprep.subr.mxu0 0.0
  %2454 = vmatpush1.xpose.msra.mxu0 0.0
  %2455 = vmatprep.subr.mxu0 0.0
  %2456 = vmatpush1.xpose.msra.mxu0 0.0
  %2457 = vmatprep.subr.mxu0 0.0
  %2458 = vmatpush1.xpose.msra.mxu0 0.0
  %2459 = vmatprep.subr.mxu0 0.0
  %2460 = vmatpush1.xpose.msra.mxu0 0.0
  %2461 = vmatprep.subr.mxu0 0.0
  %2462 = vmatpush1.xpose.msra.mxu0 0.0
  %2463 = vmatprep.subr.mxu0 0.0
  %2464 = vmatpush1.xpose.msra.mxu0 0.0
  %2465 = vmatprep.subr.mxu0 0.0
  %2466 = vmatpush1.xpose.msra.mxu0 0.0
  %2467 = vmatprep.subr.mxu0 0.0
  %2468 = vmatpush1.xpose.msra.mxu0 %v2437
  %2469 = vmatprep.subr.mxu0 0.0
  %2470 = vmatpush1.xpose.msra.mxu0 %v2434
  %2471 = vmatprep.subr.mxu0 0.0
  %2472 = vmatpush2.xpose.msra.mxu0 0.0
  %2473 = vmatprep.subr.mxu0 0.0
  %2474 = vmatpush2.xpose.msra.mxu0 0.0
  %2475 = vmatprep.subr.mxu0 0.0
  %2476 = vmatpush2.xpose.msra.mxu0 0.0
  %2477 = vmatprep.subr.mxu0 0.0
  %2478 = vmatpush2.xpose.msra.mxu0 0.0
  %2479 = vmatprep.subr.mxu0 0.0
  %2480 = vmatpush2.xpose.msra.mxu0 0.0
  %2481 = vmatprep.subr.mxu0 0.0
  %2482 = vmatpush2.xpose.msra.mxu0 0.0
  %2483 = vmatprep.subr.mxu0 0.0
  %2484 = vmatpush2.xpose.msra.mxu0 0.0
  %2485 = vmatprep.subr.mxu0 0.0
  %2486 = vmatpush2.xpose.msra.mxu0 0.0
  %2487 = vmatprep.subr.mxu0 0.0
  %2488 = vmatpush2.xpose.msra.mxu0 0.0
  %2489 = vmatprep.subr.mxu0 0.0
  %2490 = vmatpush2.xpose.msra.mxu0 0.0
  %2491 = vmatprep.subr.mxu0 0.0
  %2492 = vmatpush2.xpose.msra.mxu0 0.0
  %2493 = vmatprep.subr.mxu0 0.0
  %2494 = vmatpush2.xpose.msra.mxu0 0.0
  %2495 = vmatprep.subr.mxu0 0.0
  %2496 = vmatpush2.xpose.msra.mxu0 0.0
  %2497 = vmatprep.subr.mxu0 0.0
  %2498 = vmatpush2.xpose.msra.mxu0 0.0
  %2499 = vmatprep.subr.mxu0 0.0
  %2500 = vmatpush2.xpose.msra.mxu0 0.0
  %2501 = vmatprep.subr.mxu0 0.0
  %2502 = vmatpush2.xpose.msra.mxu0 0.0
  %2503 = vmatprep.mubr.f32.mxu0 0.0
  %2504 = vmatmul.mubr.f32.gmra.mxu0 %v2428
  %v2505 = vpop.f32.mrf.mxu0
  %v2506 = vadd.f32 0.0, %v2505
  %v2507 = vpop.f32.mrf.mxu0
  %2508 = vmatprep.mubr.f32.mxu0 0.0
  %2509 = vmatmul.mubr.f32.gmra.mxu0 %v2431
  %v2510 = vpop.f32.mrf.mxu0
  %v2511 = vadd.f32 0.0, %v2510
  %v2512 = vpop.f32.mrf.mxu0
  %2513 = vdwg.mxu0
  %v2514 = vmul.f32 %v2506, %v155
  %v2515 = vmul.f32 %v2511, %v156
  %v2516 = vsel %vm484, %v2514, 0.0
  %2517 = vadd.xlane.f32.xlu0 %v2516
  %v2518 = vpop.xlane.xlu0 %2517
  %v2519 = vsel %vm484, %v2515, 0.0
  %2520 = vadd.xlane.f32.xlu0 %v2519
  %v2521 = vpop.xlane.xlu0 %2520
  %v2522 = vadd.f32 %v2518, 1e-08
  %v2523 = vadd.f32 %v2521, 1e-08
  %v2524 = vrcp.pop %v2522
  %v2525 = vmul.f32 %v2514, %v2524
  %v2526 = vrcp.pop %v2523
  %v2527 = vmul.f32 %v2515, %v2526
  %2528 = vrot.lane.b32.xlu0 %v2007, 56
  %v2529 = vpop.permute.xlu0 %2528
  %2530 = vrot.lane.b32.xlu0 %v2010, 56
  %v2531 = vpop.permute.xlu0 %2530
  %v2535 = vsel %vm484, %v2525, 0
  %v2538 = vsel %vm484, %v2527, 0
  %2540 = vmatprep.subr.mxu0 0.0
  %2541 = vmatpush1.msra.mxu0 0.0
  %2542 = vmatprep.subr.mxu0 0.0
  %2543 = vmatpush1.msra.mxu0 0.0
  %2544 = vmatprep.subr.mxu0 0.0
  %2545 = vmatpush1.msra.mxu0 0.0
  %2546 = vmatprep.subr.mxu0 0.0
  %2547 = vmatpush1.msra.mxu0 0.0
  %2548 = vmatprep.subr.mxu0 0.0
  %2549 = vmatpush1.msra.mxu0 0.0
  %2550 = vmatprep.subr.mxu0 0.0
  %2551 = vmatpush1.msra.mxu0 0.0
  %2552 = vmatprep.subr.mxu0 0.0
  %2553 = vmatpush1.msra.mxu0 0.0
  %2554 = vmatprep.subr.mxu0 0.0
  %2555 = vmatpush1.msra.mxu0 0.0
  %2556 = vmatprep.subr.mxu0 0.0
  %2557 = vmatpush1.msra.mxu0 0.0
  %2558 = vmatprep.subr.mxu0 0.0
  %2559 = vmatpush1.msra.mxu0 0.0
  %2560 = vmatprep.subr.mxu0 0.0
  %2561 = vmatpush1.msra.mxu0 0.0
  %2562 = vmatprep.subr.mxu0 0.0
  %2563 = vmatpush1.msra.mxu0 0.0
  %2564 = vmatprep.subr.mxu0 0.0
  %2565 = vmatpush1.msra.mxu0 0.0
  %2566 = vmatprep.subr.mxu0 0.0
  %2567 = vmatpush1.msra.mxu0 0.0
  %2568 = vmatprep.subr.mxu0 0.0
  %2569 = vmatpush1.msra.mxu0 %v2531
  %2570 = vmatprep.subr.mxu0 0.0
  %2571 = vmatpush1.msra.mxu0 %v2529
  %2572 = vmatprep.subr.mxu0 0.0
  %2573 = vmatpush2.msra.mxu0 0.0
  %2574 = vmatprep.subr.mxu0 0.0
  %2575 = vmatpush2.msra.mxu0 0.0
  %2576 = vmatprep.subr.mxu0 0.0
  %2577 = vmatpush2.msra.mxu0 0.0
  %2578 = vmatprep.subr.mxu0 0.0
  %2579 = vmatpush2.msra.mxu0 0.0
  %2580 = vmatprep.subr.mxu0 0.0
  %2581 = vmatpush2.msra.mxu0 0.0
  %2582 = vmatprep.subr.mxu0 0.0
  %2583 = vmatpush2.msra.mxu0 0.0
  %2584 = vmatprep.subr.mxu0 0.0
  %2585 = vmatpush2.msra.mxu0 0.0
  %2586 = vmatprep.subr.mxu0 0.0
  %2587 = vmatpush2.msra.mxu0 0.0
  %2588 = vmatprep.subr.mxu0 0.0
  %2589 = vmatpush2.msra.mxu0 0.0
  %2590 = vmatprep.subr.mxu0 0.0
  %2591 = vmatpush2.msra.mxu0 0.0
  %2592 = vmatprep.subr.mxu0 0.0
  %2593 = vmatpush2.msra.mxu0 0.0
  %2594 = vmatprep.subr.mxu0 0.0
  %2595 = vmatpush2.msra.mxu0 0.0
  %2596 = vmatprep.subr.mxu0 0.0
  %2597 = vmatpush2.msra.mxu0 0.0
  %2598 = vmatprep.subr.mxu0 0.0
  %2599 = vmatpush2.msra.mxu0 0.0
  %2600 = vmatprep.subr.mxu0 0.0
  %2601 = vmatpush2.msra.mxu0 0.0
  %2602 = vmatprep.subr.mxu0 0.0
  %2603 = vmatpush2.msra.mxu0 0.0
  %2604 = vmatprep.mubr.f32.mxu0 0.0
  %2605 = vmatmul.mubr.f32.gmra.mxu0 %v2535
  %v2606 = vpop.f32.mrf.mxu0
  %v2607 = vadd.f32 0.0, %v2606
  %v2608 = vpop.f32.mrf.mxu0
  %2609 = vmatprep.mubr.f32.mxu0 0.0
  %2610 = vmatmul.mubr.f32.gmra.mxu0 %v2538
  %v2611 = vpop.f32.mrf.mxu0
  %v2612 = vadd.f32 0.0, %v2611
  %v2613 = vpop.f32.mrf.mxu0
  %2614 = vdwg.mxu0
  %v2615 = vmul.f32 %v2007, %v939
  %v2616 = vmul.f32 %v2010, %v941
  %v2617 = vmul.f32 %v2007, %v947
  %v2618 = vmul.f32 %v2010, %v949
  %2621 = vrot.lane.b32.xlu0 %v2617, 124
  %v2622 = vpop.permute.xlu0 %2621
  %2623 = vrot.lane.b32.xlu0 %v2618, 124
  %v2624 = vpop.permute.xlu0 %2623
  %v2627 = vsub.f32 %v2615, %v2622
  %v2628 = vsub.f32 %v2616, %v2624
  %v2629 = vmul.f32 %v2007, %v965
  %v2630 = vmul.f32 %v2010, %v967
  %v2631 = vmul.f32 %v2007, %v973
  %v2632 = vmul.f32 %v2010, %v975
  %2635 = vrot.lane.b32.xlu0 %v2631, 124
  %v2636 = vpop.permute.xlu0 %2635
  %2637 = vrot.lane.b32.xlu0 %v2632, 124
  %v2638 = vpop.permute.xlu0 %2637
  %v2641 = vadd.f32 %v2629, %v2636
  %v2642 = vadd.f32 %v2630, %v2638
  %2645 = vrot.lane.b32.xlu0 %v2627, 112
  %v2646 = vpop.permute.xlu0 %2645
  %2647 = vrot.lane.b32.xlu0 %v2628, 112
  %v2648 = vpop.permute.xlu0 %2647
  %2653 = vrot.lane.b32.xlu0 %v2641, 116
  %v2654 = vpop.permute.xlu0 %2653
  %2655 = vrot.lane.b32.xlu0 %v2642, 116
  %v2656 = vpop.permute.xlu0 %2655
  %v2659 = vsel %vm297, %v2646, %v2654
  %v2660 = vsel %vm297, %v2648, %v2656
  %vm2661 = vcmp.gt.f32.partialorder %v2659, 0.0
  %vm2662 = vcmp.gt.f32.partialorder %v2660, 0.0
  %v2663 = vadd.f32 %v2659, 1.0
  %v2664 = vadd.f32 %v2660, 1.0
  %v2665 = vmin.f32 %v2659, 0.0
  %v2666 = vmin.f32 %v2660, 0.0
  %v2667 = vmul.f32 %v2665, 1.442695
  %v2668 = vpow.pop %v2667
  %v2669 = vmul.f32 %v2666, 1.442695
  %v2670 = vpow.pop %v2669
  %v2671 = vsel %vm2661, %v2663, %v2668
  %v2672 = vsel %vm2662, %v2664, %v2670
  %v2673 = vmul.f32 %v2007, %v1021
  %v2674 = vmul.f32 %v2010, %v1023
  %v2675 = vmul.f32 %v2007, %v1029
  %v2676 = vmul.f32 %v2010, %v1031
  %2679 = vrot.lane.b32.xlu0 %v2675, 124
  %v2680 = vpop.permute.xlu0 %2679
  %2681 = vrot.lane.b32.xlu0 %v2676, 124
  %v2682 = vpop.permute.xlu0 %2681
  %v2685 = vsub.f32 %v2673, %v2680
  %v2686 = vsub.f32 %v2674, %v2682
  %v2687 = vmul.f32 %v2007, %v1047
  %v2688 = vmul.f32 %v2010, %v1049
  %v2689 = vmul.f32 %v2007, %v1055
  %v2690 = vmul.f32 %v2010, %v1057
  %2693 = vrot.lane.b32.xlu0 %v2689, 124
  %v2694 = vpop.permute.xlu0 %2693
  %2695 = vrot.lane.b32.xlu0 %v2690, 124
  %v2696 = vpop.permute.xlu0 %2695
  %v2699 = vadd.f32 %v2687, %v2694
  %v2700 = vadd.f32 %v2688, %v2696
  %2703 = vrot.lane.b32.xlu0 %v2685, 80
  %v2704 = vpop.permute.xlu0 %2703
  %2705 = vrot.lane.b32.xlu0 %v2686, 80
  %v2706 = vpop.permute.xlu0 %2705
  %2711 = vrot.lane.b32.xlu0 %v2699, 84
  %v2712 = vpop.permute.xlu0 %2711
  %2713 = vrot.lane.b32.xlu0 %v2700, 84
  %v2714 = vpop.permute.xlu0 %2713
  %v2717 = vsel %vm297, %v2704, %v2712
  %v2718 = vsel %vm297, %v2706, %v2714
  %vm2719 = vcmp.gt.f32.partialorder %v2717, 0.0
  %vm2720 = vcmp.gt.f32.partialorder %v2718, 0.0
  %v2721 = vadd.f32 %v2717, 1.0
  %v2722 = vadd.f32 %v2718, 1.0
  %v2723 = vmin.f32 %v2717, 0.0
  %v2724 = vmin.f32 %v2718, 0.0
  %v2725 = vmul.f32 %v2723, 1.442695
  %v2726 = vpow.pop %v2725
  %v2727 = vmul.f32 %v2724, 1.442695
  %v2728 = vpow.pop %v2727
  %v2729 = vsel %vm2719, %v2721, %v2726
  %v2730 = vsel %vm2720, %v2722, %v2728
  %v2732 = vsel %vm394, %v2671, 0
  %v2735 = vsel %vm394, %v2672, 0
  %v2738 = vsel %vm394, %v2729, 0
  %v2741 = vsel %vm394, %v2730, 0
  %2743 = vmatprep.subr.mxu0 0.0
  %2744 = vmatpush1.xpose.msra.mxu0 0.0
  %2745 = vmatprep.subr.mxu0 0.0
  %2746 = vmatpush1.xpose.msra.mxu0 0.0
  %2747 = vmatprep.subr.mxu0 0.0
  %2748 = vmatpush1.xpose.msra.mxu0 0.0
  %2749 = vmatprep.subr.mxu0 0.0
  %2750 = vmatpush1.xpose.msra.mxu0 0.0
  %2751 = vmatprep.subr.mxu0 0.0
  %2752 = vmatpush1.xpose.msra.mxu0 0.0
  %2753 = vmatprep.subr.mxu0 0.0
  %2754 = vmatpush1.xpose.msra.mxu0 0.0
  %2755 = vmatprep.subr.mxu0 0.0
  %2756 = vmatpush1.xpose.msra.mxu0 0.0
  %2757 = vmatprep.subr.mxu0 0.0
  %2758 = vmatpush1.xpose.msra.mxu0 0.0
  %2759 = vmatprep.subr.mxu0 0.0
  %2760 = vmatpush1.xpose.msra.mxu0 0.0
  %2761 = vmatprep.subr.mxu0 0.0
  %2762 = vmatpush1.xpose.msra.mxu0 0.0
  %2763 = vmatprep.subr.mxu0 0.0
  %2764 = vmatpush1.xpose.msra.mxu0 0.0
  %2765 = vmatprep.subr.mxu0 0.0
  %2766 = vmatpush1.xpose.msra.mxu0 0.0
  %2767 = vmatprep.subr.mxu0 0.0
  %2768 = vmatpush1.xpose.msra.mxu0 0.0
  %2769 = vmatprep.subr.mxu0 0.0
  %2770 = vmatpush1.xpose.msra.mxu0 0.0
  %2771 = vmatprep.subr.mxu0 0.0
  %2772 = vmatpush1.xpose.msra.mxu0 %v2741
  %2773 = vmatprep.subr.mxu0 0.0
  %2774 = vmatpush1.xpose.msra.mxu0 %v2738
  %2775 = vmatprep.subr.mxu0 0.0
  %2776 = vmatpush2.xpose.msra.mxu0 0.0
  %2777 = vmatprep.subr.mxu0 0.0
  %2778 = vmatpush2.xpose.msra.mxu0 0.0
  %2779 = vmatprep.subr.mxu0 0.0
  %2780 = vmatpush2.xpose.msra.mxu0 0.0
  %2781 = vmatprep.subr.mxu0 0.0
  %2782 = vmatpush2.xpose.msra.mxu0 0.0
  %2783 = vmatprep.subr.mxu0 0.0
  %2784 = vmatpush2.xpose.msra.mxu0 0.0
  %2785 = vmatprep.subr.mxu0 0.0
  %2786 = vmatpush2.xpose.msra.mxu0 0.0
  %2787 = vmatprep.subr.mxu0 0.0
  %2788 = vmatpush2.xpose.msra.mxu0 0.0
  %2789 = vmatprep.subr.mxu0 0.0
  %2790 = vmatpush2.xpose.msra.mxu0 0.0
  %2791 = vmatprep.subr.mxu0 0.0
  %2792 = vmatpush2.xpose.msra.mxu0 0.0
  %2793 = vmatprep.subr.mxu0 0.0
  %2794 = vmatpush2.xpose.msra.mxu0 0.0
  %2795 = vmatprep.subr.mxu0 0.0
  %2796 = vmatpush2.xpose.msra.mxu0 0.0
  %2797 = vmatprep.subr.mxu0 0.0
  %2798 = vmatpush2.xpose.msra.mxu0 0.0
  %2799 = vmatprep.subr.mxu0 0.0
  %2800 = vmatpush2.xpose.msra.mxu0 0.0
  %2801 = vmatprep.subr.mxu0 0.0
  %2802 = vmatpush2.xpose.msra.mxu0 0.0
  %2803 = vmatprep.subr.mxu0 0.0
  %2804 = vmatpush2.xpose.msra.mxu0 0.0
  %2805 = vmatprep.subr.mxu0 0.0
  %2806 = vmatpush2.xpose.msra.mxu0 0.0
  %2807 = vmatprep.mubr.f32.mxu0 0.0
  %2808 = vmatmul.mubr.f32.gmra.mxu0 %v2732
  %v2809 = vpop.f32.mrf.mxu0
  %v2810 = vadd.f32 0.0, %v2809
  %v2811 = vpop.f32.mrf.mxu0
  %2812 = vmatprep.mubr.f32.mxu0 0.0
  %2813 = vmatmul.mubr.f32.gmra.mxu0 %v2735
  %v2814 = vpop.f32.mrf.mxu0
  %v2815 = vadd.f32 0.0, %v2814
  %v2816 = vpop.f32.mrf.mxu0
  %2817 = vdwg.mxu0
  %v2818 = vmul.f32 %v2810, %v155
  %v2819 = vmul.f32 %v2815, %v156
  %v2820 = vsel %vm484, %v2818, 0.0
  %2821 = vadd.xlane.f32.xlu0 %v2820
  %v2822 = vpop.xlane.xlu0 %2821
  %v2823 = vsel %vm484, %v2819, 0.0
  %2824 = vadd.xlane.f32.xlu0 %v2823
  %v2825 = vpop.xlane.xlu0 %2824
  %v2826 = vadd.f32 %v2822, 1e-08
  %v2827 = vadd.f32 %v2825, 1e-08
  %v2828 = vrcp.pop %v2826
  %v2829 = vmul.f32 %v2818, %v2828
  %v2830 = vrcp.pop %v2827
  %v2831 = vmul.f32 %v2819, %v2830
  %2832 = vrot.lane.b32.xlu0 %v2007, 48
  %v2833 = vpop.permute.xlu0 %2832
  %2834 = vrot.lane.b32.xlu0 %v2010, 48
  %v2835 = vpop.permute.xlu0 %2834
  %v2839 = vsel %vm484, %v2829, 0
  %v2842 = vsel %vm484, %v2831, 0
  %2844 = vmatprep.subr.mxu0 0.0
  %2845 = vmatpush1.msra.mxu0 0.0
  %2846 = vmatprep.subr.mxu0 0.0
  %2847 = vmatpush1.msra.mxu0 0.0
  %2848 = vmatprep.subr.mxu0 0.0
  %2849 = vmatpush1.msra.mxu0 0.0
  %2850 = vmatprep.subr.mxu0 0.0
  %2851 = vmatpush1.msra.mxu0 0.0
  %2852 = vmatprep.subr.mxu0 0.0
  %2853 = vmatpush1.msra.mxu0 0.0
  %2854 = vmatprep.subr.mxu0 0.0
  %2855 = vmatpush1.msra.mxu0 0.0
  %2856 = vmatprep.subr.mxu0 0.0
  %2857 = vmatpush1.msra.mxu0 0.0
  %2858 = vmatprep.subr.mxu0 0.0
  %2859 = vmatpush1.msra.mxu0 0.0
  %2860 = vmatprep.subr.mxu0 0.0
  %2861 = vmatpush1.msra.mxu0 0.0
  %2862 = vmatprep.subr.mxu0 0.0
  %2863 = vmatpush1.msra.mxu0 0.0
  %2864 = vmatprep.subr.mxu0 0.0
  %2865 = vmatpush1.msra.mxu0 0.0
  %2866 = vmatprep.subr.mxu0 0.0
  %2867 = vmatpush1.msra.mxu0 0.0
  %2868 = vmatprep.subr.mxu0 0.0
  %2869 = vmatpush1.msra.mxu0 0.0
  %2870 = vmatprep.subr.mxu0 0.0
  %2871 = vmatpush1.msra.mxu0 0.0
  %2872 = vmatprep.subr.mxu0 0.0
  %2873 = vmatpush1.msra.mxu0 %v2835
  %2874 = vmatprep.subr.mxu0 0.0
  %2875 = vmatpush1.msra.mxu0 %v2833
  %2876 = vmatprep.subr.mxu0 0.0
  %2877 = vmatpush2.msra.mxu0 0.0
  %2878 = vmatprep.subr.mxu0 0.0
  %2879 = vmatpush2.msra.mxu0 0.0
  %2880 = vmatprep.subr.mxu0 0.0
  %2881 = vmatpush2.msra.mxu0 0.0
  %2882 = vmatprep.subr.mxu0 0.0
  %2883 = vmatpush2.msra.mxu0 0.0
  %2884 = vmatprep.subr.mxu0 0.0
  %2885 = vmatpush2.msra.mxu0 0.0
  %2886 = vmatprep.subr.mxu0 0.0
  %2887 = vmatpush2.msra.mxu0 0.0
  %2888 = vmatprep.subr.mxu0 0.0
  %2889 = vmatpush2.msra.mxu0 0.0
  %2890 = vmatprep.subr.mxu0 0.0
  %2891 = vmatpush2.msra.mxu0 0.0
  %2892 = vmatprep.subr.mxu0 0.0
  %2893 = vmatpush2.msra.mxu0 0.0
  %2894 = vmatprep.subr.mxu0 0.0
  %2895 = vmatpush2.msra.mxu0 0.0
  %2896 = vmatprep.subr.mxu0 0.0
  %2897 = vmatpush2.msra.mxu0 0.0
  %2898 = vmatprep.subr.mxu0 0.0
  %2899 = vmatpush2.msra.mxu0 0.0
  %2900 = vmatprep.subr.mxu0 0.0
  %2901 = vmatpush2.msra.mxu0 0.0
  %2902 = vmatprep.subr.mxu0 0.0
  %2903 = vmatpush2.msra.mxu0 0.0
  %2904 = vmatprep.subr.mxu0 0.0
  %2905 = vmatpush2.msra.mxu0 0.0
  %2906 = vmatprep.subr.mxu0 0.0
  %2907 = vmatpush2.msra.mxu0 0.0
  %2908 = vmatprep.mubr.f32.mxu0 0.0
  %2909 = vmatmul.mubr.f32.gmra.mxu0 %v2839
  %v2910 = vpop.f32.mrf.mxu0
  %v2911 = vadd.f32 0.0, %v2910
  %v2912 = vpop.f32.mrf.mxu0
  %2913 = vmatprep.mubr.f32.mxu0 0.0
  %2914 = vmatmul.mubr.f32.gmra.mxu0 %v2842
  %v2915 = vpop.f32.mrf.mxu0
  %v2916 = vadd.f32 0.0, %v2915
  %v2917 = vpop.f32.mrf.mxu0
  %2918 = vdwg.mxu0
  %v2919 = vmul.f32 %v2007, %v1291
  %v2920 = vmul.f32 %v2010, %v1293
  %v2921 = vmul.f32 %v2007, %v1299
  %v2922 = vmul.f32 %v2010, %v1301
  %2925 = vrot.lane.b32.xlu0 %v2921, 124
  %v2926 = vpop.permute.xlu0 %2925
  %2927 = vrot.lane.b32.xlu0 %v2922, 124
  %v2928 = vpop.permute.xlu0 %2927
  %v2931 = vsub.f32 %v2919, %v2926
  %v2932 = vsub.f32 %v2920, %v2928
  %v2933 = vmul.f32 %v2007, %v1317
  %v2934 = vmul.f32 %v2010, %v1319
  %v2935 = vmul.f32 %v2007, %v1325
  %v2936 = vmul.f32 %v2010, %v1327
  %2939 = vrot.lane.b32.xlu0 %v2935, 124
  %v2940 = vpop.permute.xlu0 %2939
  %2941 = vrot.lane.b32.xlu0 %v2936, 124
  %v2942 = vpop.permute.xlu0 %2941
  %v2945 = vadd.f32 %v2933, %v2940
  %v2946 = vadd.f32 %v2934, %v2942
  %2949 = vrot.lane.b32.xlu0 %v2931, 104
  %v2950 = vpop.permute.xlu0 %2949
  %2951 = vrot.lane.b32.xlu0 %v2932, 104
  %v2952 = vpop.permute.xlu0 %2951
  %2957 = vrot.lane.b32.xlu0 %v2945, 108
  %v2958 = vpop.permute.xlu0 %2957
  %2959 = vrot.lane.b32.xlu0 %v2946, 108
  %v2960 = vpop.permute.xlu0 %2959
  %v2963 = vsel %vm297, %v2950, %v2958
  %v2964 = vsel %vm297, %v2952, %v2960
  %vm2965 = vcmp.gt.f32.partialorder %v2963, 0.0
  %vm2966 = vcmp.gt.f32.partialorder %v2964, 0.0
  %v2967 = vadd.f32 %v2963, 1.0
  %v2968 = vadd.f32 %v2964, 1.0
  %v2969 = vmin.f32 %v2963, 0.0
  %v2970 = vmin.f32 %v2964, 0.0
  %v2971 = vmul.f32 %v2969, 1.442695
  %v2972 = vpow.pop %v2971
  %v2973 = vmul.f32 %v2970, 1.442695
  %v2974 = vpow.pop %v2973
  %v2975 = vsel %vm2965, %v2967, %v2972
  %v2976 = vsel %vm2966, %v2968, %v2974
  %v2977 = vmul.f32 %v2007, %v1373
  %v2978 = vmul.f32 %v2010, %v1375
  %v2979 = vmul.f32 %v2007, %v1381
  %v2980 = vmul.f32 %v2010, %v1383
  %2983 = vrot.lane.b32.xlu0 %v2979, 124
  %v2984 = vpop.permute.xlu0 %2983
  %2985 = vrot.lane.b32.xlu0 %v2980, 124
  %v2986 = vpop.permute.xlu0 %2985
  %v2989 = vsub.f32 %v2977, %v2984
  %v2990 = vsub.f32 %v2978, %v2986
  %v2991 = vmul.f32 %v2007, %v1399
  %v2992 = vmul.f32 %v2010, %v1401
  %v2993 = vmul.f32 %v2007, %v1407
  %v2994 = vmul.f32 %v2010, %v1409
  %2997 = vrot.lane.b32.xlu0 %v2993, 124
  %v2998 = vpop.permute.xlu0 %2997
  %2999 = vrot.lane.b32.xlu0 %v2994, 124
  %v3000 = vpop.permute.xlu0 %2999
  %v3003 = vadd.f32 %v2991, %v2998
  %v3004 = vadd.f32 %v2992, %v3000
  %3007 = vrot.lane.b32.xlu0 %v2989, 72
  %v3008 = vpop.permute.xlu0 %3007
  %3009 = vrot.lane.b32.xlu0 %v2990, 72
  %v3010 = vpop.permute.xlu0 %3009
  %3015 = vrot.lane.b32.xlu0 %v3003, 76
  %v3016 = vpop.permute.xlu0 %3015
  %3017 = vrot.lane.b32.xlu0 %v3004, 76
  %v3018 = vpop.permute.xlu0 %3017
  %v3021 = vsel %vm297, %v3008, %v3016
  %v3022 = vsel %vm297, %v3010, %v3018
  %vm3023 = vcmp.gt.f32.partialorder %v3021, 0.0
  %vm3024 = vcmp.gt.f32.partialorder %v3022, 0.0
  %v3025 = vadd.f32 %v3021, 1.0
  %v3026 = vadd.f32 %v3022, 1.0
  %v3027 = vmin.f32 %v3021, 0.0
  %v3028 = vmin.f32 %v3022, 0.0
  %v3029 = vmul.f32 %v3027, 1.442695
  %v3030 = vpow.pop %v3029
  %v3031 = vmul.f32 %v3028, 1.442695
  %v3032 = vpow.pop %v3031
  %v3033 = vsel %vm3023, %v3025, %v3030
  %v3034 = vsel %vm3024, %v3026, %v3032
  %v3036 = vsel %vm394, %v2975, 0
  %v3039 = vsel %vm394, %v2976, 0
  %v3042 = vsel %vm394, %v3033, 0
  %v3045 = vsel %vm394, %v3034, 0
  %3047 = vmatprep.subr.mxu0 0.0
  %3048 = vmatpush1.xpose.msra.mxu0 0.0
  %3049 = vmatprep.subr.mxu0 0.0
  %3050 = vmatpush1.xpose.msra.mxu0 0.0
  %3051 = vmatprep.subr.mxu0 0.0
  %3052 = vmatpush1.xpose.msra.mxu0 0.0
  %3053 = vmatprep.subr.mxu0 0.0
  %3054 = vmatpush1.xpose.msra.mxu0 0.0
  %3055 = vmatprep.subr.mxu0 0.0
  %3056 = vmatpush1.xpose.msra.mxu0 0.0
  %3057 = vmatprep.subr.mxu0 0.0
  %3058 = vmatpush1.xpose.msra.mxu0 0.0
  %3059 = vmatprep.subr.mxu0 0.0
  %3060 = vmatpush1.xpose.msra.mxu0 0.0
  %3061 = vmatprep.subr.mxu0 0.0
  %3062 = vmatpush1.xpose.msra.mxu0 0.0
  %3063 = vmatprep.subr.mxu0 0.0
  %3064 = vmatpush1.xpose.msra.mxu0 0.0
  %3065 = vmatprep.subr.mxu0 0.0
  %3066 = vmatpush1.xpose.msra.mxu0 0.0
  %3067 = vmatprep.subr.mxu0 0.0
  %3068 = vmatpush1.xpose.msra.mxu0 0.0
  %3069 = vmatprep.subr.mxu0 0.0
  %3070 = vmatpush1.xpose.msra.mxu0 0.0
  %3071 = vmatprep.subr.mxu0 0.0
  %3072 = vmatpush1.xpose.msra.mxu0 0.0
  %3073 = vmatprep.subr.mxu0 0.0
  %3074 = vmatpush1.xpose.msra.mxu0 0.0
  %3075 = vmatprep.subr.mxu0 0.0
  %3076 = vmatpush1.xpose.msra.mxu0 %v3045
  %3077 = vmatprep.subr.mxu0 0.0
  %3078 = vmatpush1.xpose.msra.mxu0 %v3042
  %3079 = vmatprep.subr.mxu0 0.0
  %3080 = vmatpush2.xpose.msra.mxu0 0.0
  %3081 = vmatprep.subr.mxu0 0.0
  %3082 = vmatpush2.xpose.msra.mxu0 0.0
  %3083 = vmatprep.subr.mxu0 0.0
  %3084 = vmatpush2.xpose.msra.mxu0 0.0
  %3085 = vmatprep.subr.mxu0 0.0
  %3086 = vmatpush2.xpose.msra.mxu0 0.0
  %3087 = vmatprep.subr.mxu0 0.0
  %3088 = vmatpush2.xpose.msra.mxu0 0.0
  %3089 = vmatprep.subr.mxu0 0.0
  %3090 = vmatpush2.xpose.msra.mxu0 0.0
  %3091 = vmatprep.subr.mxu0 0.0
  %3092 = vmatpush2.xpose.msra.mxu0 0.0
  %3093 = vmatprep.subr.mxu0 0.0
  %3094 = vmatpush2.xpose.msra.mxu0 0.0
  %3095 = vmatprep.subr.mxu0 0.0
  %3096 = vmatpush2.xpose.msra.mxu0 0.0
  %3097 = vmatprep.subr.mxu0 0.0
  %3098 = vmatpush2.xpose.msra.mxu0 0.0
  %3099 = vmatprep.subr.mxu0 0.0
  %3100 = vmatpush2.xpose.msra.mxu0 0.0
  %3101 = vmatprep.subr.mxu0 0.0
  %3102 = vmatpush2.xpose.msra.mxu0 0.0
  %3103 = vmatprep.subr.mxu0 0.0
  %3104 = vmatpush2.xpose.msra.mxu0 0.0
  %3105 = vmatprep.subr.mxu0 0.0
  %3106 = vmatpush2.xpose.msra.mxu0 0.0
  %3107 = vmatprep.subr.mxu0 0.0
  %3108 = vmatpush2.xpose.msra.mxu0 0.0
  %3109 = vmatprep.subr.mxu0 0.0
  %3110 = vmatpush2.xpose.msra.mxu0 0.0
  %3111 = vmatprep.mubr.f32.mxu0 0.0
  %3112 = vmatmul.mubr.f32.gmra.mxu0 %v3036
  %v3113 = vpop.f32.mrf.mxu0
  %v3114 = vadd.f32 0.0, %v3113
  %v3115 = vpop.f32.mrf.mxu0
  %3116 = vmatprep.mubr.f32.mxu0 0.0
  %3117 = vmatmul.mubr.f32.gmra.mxu0 %v3039
  %v3118 = vpop.f32.mrf.mxu0
  %v3119 = vadd.f32 0.0, %v3118
  %v3120 = vpop.f32.mrf.mxu0
  %3121 = vdwg.mxu0
  %v3122 = vmul.f32 %v3114, %v155
  %v3123 = vmul.f32 %v3119, %v156
  %v3124 = vsel %vm484, %v3122, 0.0
  %3125 = vadd.xlane.f32.xlu0 %v3124
  %v3126 = vpop.xlane.xlu0 %3125
  %v3127 = vsel %vm484, %v3123, 0.0
  %3128 = vadd.xlane.f32.xlu0 %v3127
  %v3129 = vpop.xlane.xlu0 %3128
  %v3130 = vadd.f32 %v3126, 1e-08
  %v3131 = vadd.f32 %v3129, 1e-08
  %v3132 = vrcp.pop %v3130
  %v3133 = vmul.f32 %v3122, %v3132
  %v3134 = vrcp.pop %v3131
  %v3135 = vmul.f32 %v3123, %v3134
  %3136 = vrot.lane.b32.xlu0 %v2007, 40
  %v3137 = vpop.permute.xlu0 %3136
  %3138 = vrot.lane.b32.xlu0 %v2010, 40
  %v3139 = vpop.permute.xlu0 %3138
  %v3143 = vsel %vm484, %v3133, 0
  %v3146 = vsel %vm484, %v3135, 0
  %3148 = vmatprep.subr.mxu0 0.0
  %3149 = vmatpush1.msra.mxu0 0.0
  %3150 = vmatprep.subr.mxu0 0.0
  %3151 = vmatpush1.msra.mxu0 0.0
  %3152 = vmatprep.subr.mxu0 0.0
  %3153 = vmatpush1.msra.mxu0 0.0
  %3154 = vmatprep.subr.mxu0 0.0
  %3155 = vmatpush1.msra.mxu0 0.0
  %3156 = vmatprep.subr.mxu0 0.0
  %3157 = vmatpush1.msra.mxu0 0.0
  %3158 = vmatprep.subr.mxu0 0.0
  %3159 = vmatpush1.msra.mxu0 0.0
  %3160 = vmatprep.subr.mxu0 0.0
  %3161 = vmatpush1.msra.mxu0 0.0
  %3162 = vmatprep.subr.mxu0 0.0
  %3163 = vmatpush1.msra.mxu0 0.0
  %3164 = vmatprep.subr.mxu0 0.0
  %3165 = vmatpush1.msra.mxu0 0.0
  %3166 = vmatprep.subr.mxu0 0.0
  %3167 = vmatpush1.msra.mxu0 0.0
  %3168 = vmatprep.subr.mxu0 0.0
  %3169 = vmatpush1.msra.mxu0 0.0
  %3170 = vmatprep.subr.mxu0 0.0
  %3171 = vmatpush1.msra.mxu0 0.0
  %3172 = vmatprep.subr.mxu0 0.0
  %3173 = vmatpush1.msra.mxu0 0.0
  %3174 = vmatprep.subr.mxu0 0.0
  %3175 = vmatpush1.msra.mxu0 0.0
  %3176 = vmatprep.subr.mxu0 0.0
  %3177 = vmatpush1.msra.mxu0 %v3139
  %3178 = vmatprep.subr.mxu0 0.0
  %3179 = vmatpush1.msra.mxu0 %v3137
  %3180 = vmatprep.subr.mxu0 0.0
  %3181 = vmatpush2.msra.mxu0 0.0
  %3182 = vmatprep.subr.mxu0 0.0
  %3183 = vmatpush2.msra.mxu0 0.0
  %3184 = vmatprep.subr.mxu0 0.0
  %3185 = vmatpush2.msra.mxu0 0.0
  %3186 = vmatprep.subr.mxu0 0.0
  %3187 = vmatpush2.msra.mxu0 0.0
  %3188 = vmatprep.subr.mxu0 0.0
  %3189 = vmatpush2.msra.mxu0 0.0
  %3190 = vmatprep.subr.mxu0 0.0
  %3191 = vmatpush2.msra.mxu0 0.0
  %3192 = vmatprep.subr.mxu0 0.0
  %3193 = vmatpush2.msra.mxu0 0.0
  %3194 = vmatprep.subr.mxu0 0.0
  %3195 = vmatpush2.msra.mxu0 0.0
  %3196 = vmatprep.subr.mxu0 0.0
  %3197 = vmatpush2.msra.mxu0 0.0
  %3198 = vmatprep.subr.mxu0 0.0
  %3199 = vmatpush2.msra.mxu0 0.0
  %3200 = vmatprep.subr.mxu0 0.0
  %3201 = vmatpush2.msra.mxu0 0.0
  %3202 = vmatprep.subr.mxu0 0.0
  %3203 = vmatpush2.msra.mxu0 0.0
  %3204 = vmatprep.subr.mxu0 0.0
  %3205 = vmatpush2.msra.mxu0 0.0
  %3206 = vmatprep.subr.mxu0 0.0
  %3207 = vmatpush2.msra.mxu0 0.0
  %3208 = vmatprep.subr.mxu0 0.0
  %3209 = vmatpush2.msra.mxu0 0.0
  %3210 = vmatprep.subr.mxu0 0.0
  %3211 = vmatpush2.msra.mxu0 0.0
  %3212 = vmatprep.mubr.f32.mxu0 0.0
  %3213 = vmatmul.mubr.f32.gmra.mxu0 %v3143
  %v3214 = vpop.f32.mrf.mxu0
  %v3215 = vadd.f32 0.0, %v3214
  %v3216 = vpop.f32.mrf.mxu0
  %3217 = vmatprep.mubr.f32.mxu0 0.0
  %3218 = vmatmul.mubr.f32.gmra.mxu0 %v3146
  %v3219 = vpop.f32.mrf.mxu0
  %v3220 = vadd.f32 0.0, %v3219
  %v3221 = vpop.f32.mrf.mxu0
  %3222 = vdwg.mxu0
  %3225 = vrot.lane.b32.xlu0 %v2607, 8
  %v3226 = vpop.permute.xlu0 %3225
  %3227 = vrot.lane.b32.xlu0 %v2612, 8
  %v3228 = vpop.permute.xlu0 %3227
  %3233 = vrot.lane.b32.xlu0 %v2911, 16
  %v3234 = vpop.permute.xlu0 %3233
  %3235 = vrot.lane.b32.xlu0 %v2916, 16
  %v3236 = vpop.permute.xlu0 %3235
  %3241 = vrot.lane.b32.xlu0 %v3215, 24
  %v3242 = vpop.permute.xlu0 %3241
  %3243 = vrot.lane.b32.xlu0 %v3220, 24
  %v3244 = vpop.permute.xlu0 %3243
  %v3247 = vsel %vm394, %v2303, %v3226
  %v3248 = vsel %vm394, %v2308, %v3228
  %v3249 = vsel %vm484, %v3247, %v3234
  %v3250 = vsel %vm484, %v3248, %v3236
  %v3251 = vsel %vm1670, %v3249, %v3242
  %v3252 = vsel %vm1670, %v3250, %v3244
  %v3253 = vpack.c.bf16 %v3252, %v3251
  %s3254 = scalar_lea.vmem %s7, 16
  %v3255 = vld [vmem:[%s3254] sm:$0xf]
  %v3256 = vld [vmem:[%s3254 + $0x4] sm:$0xf]
  %v3257 = vld [vmem:[%s3254 + $0x8] sm:$0xf]
  %v3258 = vld [vmem:[%s3254 + $0xc] sm:$0xf]
  %v3263 = vunpack.c.l.b16 %v3255
  %v3264 = vunpack.c.l.b16 %v3256
  %v3265 = vunpack.c.l.b16 %v3257
  %v3266 = vunpack.c.l.b16 %v3258
  %v3267 = vpack.c.b16 %v3264, %v3263
  %v3268 = vpack.c.b16 %v3266, %v3265
  %v3272 = vsel %vm160, %v3253, 0
  %3274 = vmatprep.subr.bf16.mxu0 0
  %3275 = vmatpush1.bf16.msra.mxu0 0
  %3276 = vmatprep.subr.bf16.mxu0 0
  %3277 = vmatpush1.bf16.msra.mxu0 0
  %3278 = vmatprep.subr.bf16.mxu0 0
  %3279 = vmatpush1.bf16.msra.mxu0 0
  %3280 = vmatprep.subr.bf16.mxu0 0
  %3281 = vmatpush1.bf16.msra.mxu0 0
  %3282 = vmatprep.subr.bf16.mxu0 0
  %3283 = vmatpush1.bf16.msra.mxu0 0
  %3284 = vmatprep.subr.bf16.mxu0 0
  %3285 = vmatpush1.bf16.msra.mxu0 0
  %3286 = vmatprep.subr.bf16.mxu0 0
  %3287 = vmatpush1.bf16.msra.mxu0 %v3268
  %3288 = vmatprep.subr.bf16.mxu0 0
  %3289 = vmatpush1.bf16.msra.mxu0 %v3267
  %3290 = vmatprep.subr.bf16.mxu0 0
  %3291 = vmatpush2.bf16.msra.mxu0 0
  %3292 = vmatprep.subr.bf16.mxu0 0
  %3293 = vmatpush2.bf16.msra.mxu0 0
  %3294 = vmatprep.subr.bf16.mxu0 0
  %3295 = vmatpush2.bf16.msra.mxu0 0
  %3296 = vmatprep.subr.bf16.mxu0 0
  %3297 = vmatpush2.bf16.msra.mxu0 0
  %3298 = vmatprep.subr.bf16.mxu0 0
  %3299 = vmatpush2.bf16.msra.mxu0 0
  %3300 = vmatprep.subr.bf16.mxu0 0
  %3301 = vmatpush2.bf16.msra.mxu0 0
  %3302 = vmatprep.subr.bf16.mxu0 0
  %3303 = vmatpush2.bf16.msra.mxu0 0
  %3304 = vmatprep.subr.bf16.mxu0 0
  %3305 = vmatpush2.bf16.msra.mxu0 0
  %3306 = vmatprep.mubr.bf16.mxu0 0
  %3307 = vmatmul.mubr.bf16.gmra.mxu0 %v3272
  %v3308 = vpop.f32.mrf.mxu0
  %v3309 = vadd.f32 0.0, %v3308
  %v3310 = vpop.f32.mrf.mxu0
  %v3311 = vpop.f32.mrf.mxu0
  %v3312 = vadd.f32 0.0, %v3311
  %v3313 = vpop.f32.mrf.mxu0
  %3314 = vdwg.mxu0
  %v3315 = vadd.f32 %v1923, %v3309
  %v3316 = vadd.f32 %v1924, %v3312
  %s3317 = scalar_lea.vmem %s8, 1
  %v3318 = vld [vmem:[%s3317] sm:$0x1]
  %v3319 = vmul.f32 %v3315, %v3315
  %v3320 = vmul.f32 %v3316, %v3316
  %v3321 = vsel %vm160, %v3319, 0.0
  %3322 = vadd.xlane.f32.xlu0 %v3321
  %v3323 = vpop.xlane.xlu0 %3322
  %v3324 = vsel %vm160, %v3320, 0.0
  %3325 = vadd.xlane.f32.xlu0 %v3324
  %v3326 = vpop.xlane.xlu0 %3325
  %v3327 = vmul.f32 %v3323, %v167
  %v3328 = vmul.f32 %v3326, %v167
  %v3329 = vadd.f32 %v3327, 1e-05
  %v3330 = vadd.f32 %v3328, 1e-05
  %v3331 = vrsqrt.pop %v3329
  %v3332 = vrsqrt.pop %v3330
  %v3333 = vmul.f32 %v3315, %v3331
  %v3334 = vmul.f32 %v3316, %v3332
  %v3336 = vlaneseq
  %v3337 = vshrl.u32 %v3336, 7
  %v3338 = vsub.s32 0, %v3337
  %v3339 = vrot.slane %v3318, %v3338
  %v3341 = vmul.f32 %v3333, %v3339
  %v3342 = vmul.f32 %v3334, %v3339
  %v3343 = vpack.c.bf16 %v3342, %v3341
  %s3344 = scalar_lea.vmem %s9, 16
  %v3345 = vld [vmem:[%s3344] sm:$0xf]
  %v3346 = vld [vmem:[%s3344 + $0x4] sm:$0xf]
  %v3347 = vld [vmem:[%s3344 + $0x8] sm:$0xf]
  %v3348 = vld [vmem:[%s3344 + $0xc] sm:$0xf]
  %v3353 = vunpack.c.l.b16 %v3345
  %v3354 = vunpack.c.l.b16 %v3346
  %v3355 = vunpack.c.l.b16 %v3347
  %v3356 = vunpack.c.l.b16 %v3348
  %v3357 = vpack.c.b16 %v3354, %v3353
  %v3358 = vpack.c.b16 %v3356, %v3355
  %v3362 = vsel %vm160, %v3343, 0
  %3364 = vmatprep.subr.bf16.mxu0 0
  %3365 = vmatpush1.bf16.msra.mxu0 0
  %3366 = vmatprep.subr.bf16.mxu0 0
  %3367 = vmatpush1.bf16.msra.mxu0 0
  %3368 = vmatprep.subr.bf16.mxu0 0
  %3369 = vmatpush1.bf16.msra.mxu0 0
  %3370 = vmatprep.subr.bf16.mxu0 0
  %3371 = vmatpush1.bf16.msra.mxu0 0
  %3372 = vmatprep.subr.bf16.mxu0 0
  %3373 = vmatpush1.bf16.msra.mxu0 0
  %3374 = vmatprep.subr.bf16.mxu0 0
  %3375 = vmatpush1.bf16.msra.mxu0 0
  %3376 = vmatprep.subr.bf16.mxu0 0
  %3377 = vmatpush1.bf16.msra.mxu0 %v3358
  %3378 = vmatprep.subr.bf16.mxu0 0
  %3379 = vmatpush1.bf16.msra.mxu0 %v3357
  %3380 = vmatprep.subr.bf16.mxu0 0
  %3381 = vmatpush2.bf16.msra.mxu0 0
  %3382 = vmatprep.subr.bf16.mxu0 0
  %3383 = vmatpush2.bf16.msra.mxu0 0
  %3384 = vmatprep.subr.bf16.mxu0 0
  %3385 = vmatpush2.bf16.msra.mxu0 0
  %3386 = vmatprep.subr.bf16.mxu0 0
  %3387 = vmatpush2.bf16.msra.mxu0 0
  %3388 = vmatprep.subr.bf16.mxu0 0
  %3389 = vmatpush2.bf16.msra.mxu0 0
  %3390 = vmatprep.subr.bf16.mxu0 0
  %3391 = vmatpush2.bf16.msra.mxu0 0
  %3392 = vmatprep.subr.bf16.mxu0 0
  %3393 = vmatpush2.bf16.msra.mxu0 0
  %3394 = vmatprep.subr.bf16.mxu0 0
  %3395 = vmatpush2.bf16.msra.mxu0 0
  %3396 = vmatprep.mubr.bf16.mxu0 0
  %3397 = vmatmul.mubr.bf16.gmra.mxu0 %v3362
  %v3398 = vpop.f32.mrf.mxu0
  %v3399 = vadd.f32 0.0, %v3398
  %v3400 = vpop.f32.mrf.mxu0
  %v3401 = vpop.f32.mrf.mxu0
  %v3402 = vadd.f32 0.0, %v3401
  %v3403 = vpop.f32.mrf.mxu0
  %3404 = vdwg.mxu0
  %v3405 = vsub.f32 0.0, %v3399
  %v3406 = vsub.f32 0.0, %v3402
  %v3407 = vmul.f32 %v3405, 1.442695
  %v3408 = vpow.pop %v3407
  %v3409 = vmul.f32 %v3406, 1.442695
  %v3410 = vpow.pop %v3409
  %v3411 = vadd.f32 %v3408, 1.0
  %v3412 = vadd.f32 %v3410, 1.0
  %v3413 = vrcp.pop %v3411
  %v3414 = vmul.f32 1.0, %v3413
  %v3415 = vrcp.pop %v3412
  %v3416 = vmul.f32 1.0, %v3415
  %v3417 = vmul.f32 %v3399, %v3414
  %v3418 = vmul.f32 %v3402, %v3416
  %3421 = vrot.lane.b32.xlu0 %v3399, 64
  %v3422 = vpop.permute.xlu0 %3421
  %3423 = vrot.lane.b32.xlu0 %v3402, 64
  %v3424 = vpop.permute.xlu0 %3423
  %v3427 = vmul.f32 %v3417, %v3422
  %v3428 = vmul.f32 %v3418, %v3424
  %v3429 = vpack.c.bf16 %v3428, %v3427
  %s3430 = scalar_lea.vmem %s10, 32
  %v3431 = vld [vmem:[%s3430] sm:$0xf]
  %v3432 = vld [vmem:[%s3430 + $0x4] sm:$0xf]
  %v3433 = vld [vmem:[%s3430 + $0x8] sm:$0xf]
  %v3434 = vld [vmem:[%s3430 + $0xc] sm:$0xf]
  %v3435 = vld [vmem:[%s3430 + $0x10] sm:$0xf]
  %v3436 = vld [vmem:[%s3430 + $0x14] sm:$0xf]
  %v3437 = vld [vmem:[%s3430 + $0x18] sm:$0xf]
  %v3438 = vld [vmem:[%s3430 + $0x1c] sm:$0xf]
  %v3447 = vunpack.c.l.b16 %v3431
  %v3448 = vunpack.c.l.b16 %v3432
  %v3449 = vunpack.c.l.b16 %v3433
  %v3450 = vunpack.c.l.b16 %v3434
  %v3451 = vunpack.c.l.b16 %v3435
  %v3452 = vunpack.c.l.b16 %v3436
  %v3453 = vunpack.c.l.b16 %v3437
  %v3454 = vunpack.c.l.b16 %v3438
  %v3455 = vpack.c.b16 %v3448, %v3447
  %v3456 = vpack.c.b16 %v3450, %v3449
  %v3457 = vpack.c.b16 %v3452, %v3451
  %v3458 = vpack.c.b16 %v3454, %v3453
  %v3464 = vsel %vm69, %v3429, 0
  %3466 = vmatprep.subr.bf16.mxu0 0
  %3467 = vmatpush1.bf16.msra.mxu0 0
  %3468 = vmatprep.subr.bf16.mxu0 0
  %3469 = vmatpush1.bf16.msra.mxu0 0
  %3470 = vmatprep.subr.bf16.mxu0 0
  %3471 = vmatpush1.bf16.msra.mxu0 0
  %3472 = vmatprep.subr.bf16.mxu0 0
  %3473 = vmatpush1.bf16.msra.mxu0 0
  %3474 = vmatprep.subr.bf16.mxu0 0
  %3475 = vmatpush1.bf16.msra.mxu0 %v3458
  %3476 = vmatprep.subr.bf16.mxu0 0
  %3477 = vmatpush1.bf16.msra.mxu0 %v3457
  %3478 = vmatprep.subr.bf16.mxu0 0
  %3479 = vmatpush1.bf16.msra.mxu0 %v3456
  %3480 = vmatprep.subr.bf16.mxu0 0
  %3481 = vmatpush1.bf16.msra.mxu0 %v3455
  %3482 = vmatprep.subr.bf16.mxu0 0
  %3483 = vmatpush2.bf16.msra.mxu0 0
  %3484 = vmatprep.subr.bf16.mxu0 0
  %3485 = vmatpush2.bf16.msra.mxu0 0
  %3486 = vmatprep.subr.bf16.mxu0 0
  %3487 = vmatpush2.bf16.msra.mxu0 0
  %3488 = vmatprep.subr.bf16.mxu0 0
  %3489 = vmatpush2.bf16.msra.mxu0 0
  %3490 = vmatprep.subr.bf16.mxu0 0
  %3491 = vmatpush2.bf16.msra.mxu0 0
  %3492 = vmatprep.subr.bf16.mxu0 0
  %3493 = vmatpush2.bf16.msra.mxu0 0
  %3494 = vmatprep.subr.bf16.mxu0 0
  %3495 = vmatpush2.bf16.msra.mxu0 0
  %3496 = vmatprep.subr.bf16.mxu0 0
  %3497 = vmatpush2.bf16.msra.mxu0 0
  %3498 = vmatprep.mubr.bf16.mxu0 0
  %3499 = vmatmul.mubr.bf16.gmra.mxu0 %v3464
  %v3500 = vpop.f32.mrf.mxu0
  %v3501 = vadd.f32 0.0, %v3500
  %v3502 = vpop.f32.mrf.mxu0
  %v3503 = vpop.f32.mrf.mxu0
  %v3504 = vadd.f32 0.0, %v3503
  %v3505 = vpop.f32.mrf.mxu0
  %3506 = vdwg.mxu0
  %v3507 = vadd.f32 %v3315, %v3501
  %v3508 = vadd.f32 %v3316, %v3504
  %v3509 = vld [vmem:[%s11] sm:$0x1]
  %v3510 = vmul.f32 %v3507, %v3507
  %v3511 = vmul.f32 %v3508, %v3508
  %v3512 = vsel %vm160, %v3510, 0.0
  %3513 = vadd.xlane.f32.xlu0 %v3512
  %v3514 = vpop.xlane.xlu0 %3513
  %v3515 = vsel %vm160, %v3511, 0.0
  %3516 = vadd.xlane.f32.xlu0 %v3515
  %v3517 = vpop.xlane.xlu0 %3516
  %v3518 = vmul.f32 %v3514, %v167
  %v3519 = vmul.f32 %v3517, %v167
  %v3520 = vadd.f32 %v3518, 1e-05
  %v3521 = vadd.f32 %v3519, 1e-05
  %v3522 = vrsqrt.pop %v3520
  %v3523 = vrsqrt.pop %v3521
  %v3524 = vmul.f32 %v3507, %v3522
  %v3525 = vmul.f32 %v3508, %v3523
  %v3527 = vlaneseq
  %v3528 = vshrl.u32 %v3527, 7
  %v3529 = vsub.s32 0, %v3528
  %v3530 = vrot.slane %v3509, %v3529
  %v3532 = vmul.f32 %v3524, %v3530
  %v3533 = vmul.f32 %v3525, %v3530
  %v3534 = vpack.c.bf16 %v3533, %v3532
  %v3535 = vld [vmem:[%s12] sm:$0xf]
  %v3536 = vld [vmem:[%s12 + $0x4] sm:$0xf]
  %v3537 = vld [vmem:[%s12 + $0x8] sm:$0xf]
  %v3538 = vld [vmem:[%s12 + $0xc] sm:$0xf]
  %v3543 = vunpack.c.l.b16 %v3535
  %v3544 = vunpack.c.l.b16 %v3536
  %v3545 = vunpack.c.l.b16 %v3537
  %v3546 = vunpack.c.l.b16 %v3538
  %v3547 = vpack.c.b16 %v3544, %v3543
  %v3548 = vpack.c.b16 %v3546, %v3545
  %v3552 = vsel %vm160, %v3534, 0
  %3554 = vmatprep.subr.bf16.mxu0 0
  %3555 = vmatpush1.bf16.msra.mxu0 0
  %3556 = vmatprep.subr.bf16.mxu0 0
  %3557 = vmatpush1.bf16.msra.mxu0 0
  %3558 = vmatprep.subr.bf16.mxu0 0
  %3559 = vmatpush1.bf16.msra.mxu0 0
  %3560 = vmatprep.subr.bf16.mxu0 0
  %3561 = vmatpush1.bf16.msra.mxu0 0
  %3562 = vmatprep.subr.bf16.mxu0 0
  %3563 = vmatpush1.bf16.msra.mxu0 0
  %3564 = vmatprep.subr.bf16.mxu0 0
  %3565 = vmatpush1.bf16.msra.mxu0 0
  %3566 = vmatprep.subr.bf16.mxu0 0
  %3567 = vmatpush1.bf16.msra.mxu0 %v3548
  %3568 = vmatprep.subr.bf16.mxu0 0
  %3569 = vmatpush1.bf16.msra.mxu0 %v3547
  %3570 = vmatprep.subr.bf16.mxu0 0
  %3571 = vmatpush2.bf16.msra.mxu0 0
  %3572 = vmatprep.subr.bf16.mxu0 0
  %3573 = vmatpush2.bf16.msra.mxu0 0
  %3574 = vmatprep.subr.bf16.mxu0 0
  %3575 = vmatpush2.bf16.msra.mxu0 0
  %3576 = vmatprep.subr.bf16.mxu0 0
  %3577 = vmatpush2.bf16.msra.mxu0 0
  %3578 = vmatprep.subr.bf16.mxu0 0
  %3579 = vmatpush2.bf16.msra.mxu0 0
  %3580 = vmatprep.subr.bf16.mxu0 0
  %3581 = vmatpush2.bf16.msra.mxu0 0
  %3582 = vmatprep.subr.bf16.mxu0 0
  %3583 = vmatpush2.bf16.msra.mxu0 0
  %3584 = vmatprep.subr.bf16.mxu0 0
  %3585 = vmatpush2.bf16.msra.mxu0 0
  %3586 = vmatprep.mubr.bf16.mxu0 0
  %3587 = vmatmul.mubr.bf16.gmra.mxu0 %v3552
  %v3588 = vpop.f32.mrf.mxu0
  %v3589 = vadd.f32 0.0, %v3588
  %v3590 = vpop.f32.mrf.mxu0
  %v3591 = vpop.f32.mrf.mxu0
  %v3592 = vadd.f32 0.0, %v3591
  %v3593 = vpop.f32.mrf.mxu0
  %3594 = vdwg.mxu0
  %3595 = vst [vmem:[%s13] sm:$0xff] %v3589
  %3596 = vst [vmem:[%s13 + $0x8] sm:$0xff] %v3592
  // Predicated region
  $region54: #{gpt_forward.1} parent=0 // pred_check
    _
  $region55: #{gpt_forward.1} parent=0 // pred_check_branch
    %3598 = sbr.rel (0) target = $region57
  $region56: #{gpt_forward.1} parent=0 // pred_region
    _
  $region57: #{gpt_forward.1} parent=0 // pred_fallthru
    _
  // Predicated region
  $region58: #{gpt_forward.1} parent=0 // pred_check
    _
  $region59: #{gpt_forward.1} parent=0 // pred_check_branch
    %3600 = sbr.rel (0) target = $region61
  $region60: #{gpt_forward.1} parent=0 // pred_region
    _
  $region61: #{gpt_forward.1} parent=0 // pred_fallthru
    _

</llo_original>
